<compile_context>
chip_gen: v6e
topology: v6e:2x2x1
jax: 0.10.0
libtpu: 0.0.40
codegen_flags: <defaults>
</compile_context>

<pallas_src>
import jax
import jax.numpy as jnp
from jax.experimental import pallas as pl
from jax.experimental.pallas import tpu as pltpu


# ---------------------------------------------------------------------------
# Kernel
# ---------------------------------------------------------------------------
def _lstm_ae_kernel(
    x_ref,
    wih_e0_ref, whh_e0_ref, b_e0_ref,
    wih_e1_ref, whh_e1_ref, b_e1_ref,
    wih_d0_ref, whh_d0_ref, b_d0_ref,
    wih_d1_ref, whh_d1_ref, b_d1_ref,
    wout_ref, bout_ref,
    out_ref,
):
    B, T, I = x_ref.shape                      # B here = batch block
    H = whh_e0_ref.shape[0]
    f32 = jnp.float32

    x = x_ref[...].astype(f32)                 # (B, T, I)

    # Weights are tiny; load once into vregs/VMEM values.
    wih_e0 = wih_e0_ref[...]; whh_e0 = whh_e0_ref[...]; b_e0 = b_e0_ref[...]
    wih_e1 = wih_e1_ref[...]; whh_e1 = whh_e1_ref[...]; b_e1 = b_e1_ref[...]
    wih_d0 = wih_d0_ref[...]; whh_d0 = whh_d0_ref[...]; b_d0 = b_d0_ref[...]
    wih_d1 = wih_d1_ref[...]; whh_d1 = whh_d1_ref[...]; b_d1 = b_d1_ref[...]
    wout   = wout_ref[...];   bout   = bout_ref[...]

    def cell(xg_t, h, c, whh):
        # xg_t: precomputed x_t @ W_ih + b  (B, 4H); only h @ W_hh is left
        # on the sequential critical path.
        gates = xg_t + jnp.dot(h, whh, preferred_element_type=f32)
        i_g = jax.nn.sigmoid(gates[:, 0 * H:1 * H])
        f_g = jax.nn.sigmoid(gates[:, 1 * H:2 * H])
        g_g = jnp.tanh(gates[:, 2 * H:3 * H])
        o_g = jax.nn.sigmoid(gates[:, 3 * H:4 * H])
        c_new = f_g * c + i_g * g_g
        h_new = o_g * jnp.tanh(c_new)
        return h_new, c_new

    zeros = jnp.zeros((B, H), dtype=f32)

    # ---------------- Encoder layer 0 ----------------
    # Bulk input projection: one (B*T, I) @ (I, 4H) matmul, bias folded in.
    xg_e0 = (jnp.dot(x.reshape(B * T, I), wih_e0, preferred_element_type=f32)
             + b_e0).reshape(B, T, 4 * H)
    h0, c0 = zeros, zeros
    l0_out = []
    for t in range(T):                          # static unroll (small T)
        h0, c0 = cell(xg_e0[:, t, :], h0, c0, whh_e0)
        l0_out.append(h0)

    # ---------------- Encoder layer 1 ----------------
    # Project all layer-0 hidden states at once (time-major stack).
    L0 = jnp.stack(l0_out, axis=0).reshape(T * B, H)
    xg_e1 = (jnp.dot(L0, wih_e1, preferred_element_type=f32)
             + b_e1).reshape(T, B, 4 * H)
    h1, c1 = zeros, zeros
    for t in range(T):
        h1, c1 = cell(xg_e1[t], h1, c1, whh_e1)

    latent = h1                                 # encoded[:, -1, :]  (B, H)

    # ---------------- Decoder layer 0 ----------------
    # Input is `latent` at every timestep -> project once, reuse T times.
    xg_d0 = jnp.dot(latent, wih_d0, preferred_element_type=f32) + b_d0  # (B, 4H)
    hd0, cd0 = zeros, zeros
    d0_out = []
    for t in range(T):
        hd0, cd0 = cell(xg_d0, hd0, cd0, whh_d0)
        d0_out.append(hd0)

    # ---------------- Decoder layer 1 ----------------
    D0 = jnp.stack(d0_out, axis=0).reshape(T * B, H)
    xg_d1 = (jnp.dot(D0, wih_d1, preferred_element_type=f32)
             + b_d1).reshape(T, B, 4 * H)
    hd1, cd1 = zeros, zeros
    d1_out = []
    for t in range(T):
        hd1, cd1 = cell(xg_d1[t], hd1, cd1, whh_d1)
        d1_out.append(hd1)

    # ---------------- Output head ----------------
    # One (B*T, H) @ (H, I) matmul + one full-tile store (no per-t stores).
    D1 = jnp.stack(d1_out, axis=1).reshape(B * T, H)     # batch-major
    rec = jnp.dot(D1, wout, preferred_element_type=f32) + bout          # (B*T, I)
    out_ref[...] = rec.reshape(B, T, I).astype(out_ref.dtype)


# ---------------------------------------------------------------------------
# Wrapper
# ---------------------------------------------------------------------------
def masked_lstm_autoencoder_forward(x, params, *, batch_block=None):
    """x: (B, T, I) float32. params: dict of pre-transposed weights."""
    B, T, I = x.shape

    if batch_block is None:
        batch_block = min(B, 8)
    assert B % batch_block == 0, "batch must be divisible by batch_block"
    grid = (B // batch_block,)

    weights = (
        params["wih_e0"], params["whh_e0"], params["b_e0"],
        params["wih_e1"], params["whh_e1"], params["b_e1"],
        params["wih_d0"], params["whh_d0"], params["b_d0"],
        params["wih_d1"], params["whh_d1"], params["b_d1"],
        params["wout"], params["bout"],
    )

    def _full_spec(arr):
        nd = arr.ndim
        return pl.BlockSpec(arr.shape, lambda b, _nd=nd: (0,) * _nd)

    x_spec = pl.BlockSpec((batch_block, T, I), lambda b: (b, 0, 0))
    in_specs = [x_spec] + [_full_spec(w) for w in weights]
    out_spec = pl.BlockSpec((batch_block, T, I), lambda b: (b, 0, 0))

    return pl.pallas_call(
        _lstm_ae_kernel,
        out_shape=jax.ShapeDtypeStruct((B, T, I), x.dtype),
        grid=grid,
        in_specs=in_specs,
        out_specs=out_spec,
        compiler_params=pltpu.CompilerParams(
            dimension_semantics=("parallel",)),
    )(x, *weights)


# ---------------------------------------------------------------------------
# Deterministic parameter init (PyTorch-style U(-1/sqrt(H), 1/sqrt(H)))
# ---------------------------------------------------------------------------
def init_params(key, input_size, hidden_size):
    H, I = hidden_size, input_size
    bound = 1.0 / jnp.sqrt(jnp.float32(H))
    keys = iter(jax.random.split(key, 32))

    def u(shape):
        return jax.random.uniform(next(keys), shape, jnp.float32, -bound, bound)

    def lstm_layer(in_size):
        # returns (wih^T, whh^T, combined bias) matching PyTorch param shapes
        wih = u((in_size, 4 * H))          # transposed weight_ih  (in, 4H)
        whh = u((H, 4 * H))                # transposed weight_hh  (H, 4H)
        b = u((1, 4 * H)) + u((1, 4 * H))  # bias_ih + bias_hh
        return wih, whh, b

    p = {}
    p["wih_e0"], p["whh_e0"], p["b_e0"] = lstm_layer(I)   # encoder layer 0
    p["wih_e1"], p["whh_e1"], p["b_e1"] = lstm_layer(H)   # encoder layer 1
    p["wih_d0"], p["whh_d0"], p["b_d0"] = lstm_layer(H)   # decoder layer 0
    p["wih_d1"], p["whh_d1"], p["b_d1"] = lstm_layer(H)   # decoder layer 1
    # output_layer = nn.Linear(H, I): weight (I, H) -> store transposed (H, I)
    lin_bound = 1.0 / jnp.sqrt(jnp.float32(H))
    p["wout"] = jax.random.uniform(next(keys), (H, I), jnp.float32,
                                   -lin_bound, lin_bound)
    p["bout"] = jax.random.uniform(next(keys), (1, I), jnp.float32,
                                   -lin_bound, lin_bound)
    return p


# ---------------------------------------------------------------------------
# Pure-JAX reference (same math) for correctness checking
# ---------------------------------------------------------------------------
def reference_forward(x, p):
    B, T, I = x.shape
    H = p["whh_e0"].shape[0]

    def cell(x_t, h, c, wih, whh, b):
        g = x_t @ wih + h @ whh + b
        i = jax.nn.sigmoid(g[:, :H])
        f = jax.nn.sigmoid(g[:, H:2 * H])
        gg = jnp.tanh(g[:, 2 * H:3 * H])
        o = jax.nn.sigmoid(g[:, 3 * H:])
        c = f * c + i * gg
        return o * jnp.tanh(c), c

    z = jnp.zeros((B, H), jnp.float32)
    h0, c0 = z, z
    outs0 = []
    for t in range(T):
        h0, c0 = cell(x[:, t, :], h0, c0, p["wih_e0"], p["whh_e0"], p["b_e0"])
        outs0.append(h0)
    h1, c1 = z, z
    for t in range(T):
        h1, c1 = cell(outs0[t], h1, c1, p["wih_e1"], p["whh_e1"], p["b_e1"])
    latent = h1
    hd0, cd0, hd1, cd1 = z, z, z, z
    recs = []
    for t in range(T):
        hd0, cd0 = cell(latent, hd0, cd0, p["wih_d0"], p["whh_d0"], p["b_d0"])
        hd1, cd1 = cell(hd0, hd1, cd1, p["wih_d1"], p["whh_d1"], p["b_d1"])
        recs.append(hd1 @ p["wout"] + p["bout"])
    return jnp.stack(recs, axis=1)


# ---------------------------------------------------------------------------
if __name__ == "__main__":
    B, T, I, H = 2, 8, 8, 32          # batch, sequence_length, input_size, hidden_size

    key = jax.random.PRNGKey(0)
    k_x, k_p = jax.random.split(key)
    x = jax.random.normal(k_x, (B, T, I), dtype=jnp.float32)
    params = init_params(k_p, input_size=I, hidden_size=H)

    # batch_block=1 exercises the batch-parallel grid (2 grid steps; on v7x
    # each TensorCore takes one).
    out = masked_lstm_autoencoder_forward(x, params, batch_block=1)
    out = jax.block_until_ready(out)

    ref = reference_forward(x, params)
    assert out.shape == (B, T, I)
    assert jnp.allclose(out, ref, atol=1e-4, rtol=1e-4), "mismatch vs reference"

    print("KERNEL_OK")
</pallas_src>

<mosaic_0001>
module attributes {stable_mosaic.version = 11 : i64} {
  func.func @_lstm_ae_kernel(%arg0: i32, %arg1: memref<1x8x8xf32, #tpu.memory_space<vmem>>, %arg2: memref<8x128xf32, #tpu.memory_space<vmem>>, %arg3: memref<32x128xf32, #tpu.memory_space<vmem>>, %arg4: memref<1x128xf32, #tpu.memory_space<vmem>>, %arg5: memref<32x128xf32, #tpu.memory_space<vmem>>, %arg6: memref<32x128xf32, #tpu.memory_space<vmem>>, %arg7: memref<1x128xf32, #tpu.memory_space<vmem>>, %arg8: memref<32x128xf32, #tpu.memory_space<vmem>>, %arg9: memref<32x128xf32, #tpu.memory_space<vmem>>, %arg10: memref<1x128xf32, #tpu.memory_space<vmem>>, %arg11: memref<32x128xf32, #tpu.memory_space<vmem>>, %arg12: memref<32x128xf32, #tpu.memory_space<vmem>>, %arg13: memref<1x128xf32, #tpu.memory_space<vmem>>, %arg14: memref<32x8xf32, #tpu.memory_space<vmem>>, %arg15: memref<1x8xf32, #tpu.memory_space<vmem>>, %arg16: memref<1x8x8xf32, #tpu.memory_space<vmem>>) attributes {dimension_semantics = [#tpu.dimension_semantics<parallel>], iteration_bounds = array<i64: 2>, scalar_prefetch = 0 : i64, scratch_operands = 0 : i64, tpu.core_type = #tpu.core_type<tc>, window_params = [{transform_indices = @transform_0, window_bounds = array<i64: 1, 8, 8>}, {pipeline_mode = #tpu.pipeline_mode<synchronous>, transform_indices = @transform_1, window_bounds = array<i64: 8, 128>}, {pipeline_mode = #tpu.pipeline_mode<synchronous>, transform_indices = @transform_2, window_bounds = array<i64: 32, 128>}, {pipeline_mode = #tpu.pipeline_mode<synchronous>, transform_indices = @transform_3, window_bounds = array<i64: 1, 128>}, {pipeline_mode = #tpu.pipeline_mode<synchronous>, transform_indices = @transform_4, window_bounds = array<i64: 32, 128>}, {pipeline_mode = #tpu.pipeline_mode<synchronous>, transform_indices = @transform_5, window_bounds = array<i64: 32, 128>}, {pipeline_mode = #tpu.pipeline_mode<synchronous>, transform_indices = @transform_6, window_bounds = array<i64: 1, 128>}, {pipeline_mode = #tpu.pipeline_mode<synchronous>, transform_indices = @transform_7, window_bounds = array<i64: 32, 128>}, {pipeline_mode = #tpu.pipeline_mode<synchronous>, transform_indices = @transform_8, window_bounds = array<i64: 32, 128>}, {pipeline_mode = #tpu.pipeline_mode<synchronous>, transform_indices = @transform_9, window_bounds = array<i64: 1, 128>}, {pipeline_mode = #tpu.pipeline_mode<synchronous>, transform_indices = @transform_10, window_bounds = array<i64: 32, 128>}, {pipeline_mode = #tpu.pipeline_mode<synchronous>, transform_indices = @transform_11, window_bounds = array<i64: 32, 128>}, {pipeline_mode = #tpu.pipeline_mode<synchronous>, transform_indices = @transform_12, window_bounds = array<i64: 1, 128>}, {pipeline_mode = #tpu.pipeline_mode<synchronous>, transform_indices = @transform_13, window_bounds = array<i64: 32, 8>}, {pipeline_mode = #tpu.pipeline_mode<synchronous>, transform_indices = @transform_14, window_bounds = array<i64: 1, 8>}, {transform_indices = @transform_15, window_bounds = array<i64: 1, 8, 8>}]} {
    %c0 = arith.constant 0 : index
    %c0_0 = arith.constant 0 : index
    %c0_1 = arith.constant 0 : index
    %0 = vector.load %arg1[%c0, %c0_0, %c0_1] : memref<1x8x8xf32, #tpu.memory_space<vmem>>, vector<1x8x8xf32>
    %c0_2 = arith.constant 0 : index
    %c0_3 = arith.constant 0 : index
    %1 = vector.load %arg2[%c0_2, %c0_3] : memref<8x128xf32, #tpu.memory_space<vmem>>, vector<8x128xf32>
    %c0_4 = arith.constant 0 : index
    %c0_5 = arith.constant 0 : index
    %2 = vector.load %arg3[%c0_4, %c0_5] : memref<32x128xf32, #tpu.memory_space<vmem>>, vector<32x128xf32>
    %c0_6 = arith.constant 0 : index
    %c0_7 = arith.constant 0 : index
    %3 = vector.load %arg4[%c0_6, %c0_7] : memref<1x128xf32, #tpu.memory_space<vmem>>, vector<1x128xf32>
    %c0_8 = arith.constant 0 : index
    %c0_9 = arith.constant 0 : index
    %4 = vector.load %arg5[%c0_8, %c0_9] : memref<32x128xf32, #tpu.memory_space<vmem>>, vector<32x128xf32>
    %c0_10 = arith.constant 0 : index
    %c0_11 = arith.constant 0 : index
    %5 = vector.load %arg6[%c0_10, %c0_11] : memref<32x128xf32, #tpu.memory_space<vmem>>, vector<32x128xf32>
    %c0_12 = arith.constant 0 : index
    %c0_13 = arith.constant 0 : index
    %6 = vector.load %arg7[%c0_12, %c0_13] : memref<1x128xf32, #tpu.memory_space<vmem>>, vector<1x128xf32>
    %c0_14 = arith.constant 0 : index
    %c0_15 = arith.constant 0 : index
    %7 = vector.load %arg8[%c0_14, %c0_15] : memref<32x128xf32, #tpu.memory_space<vmem>>, vector<32x128xf32>
    %c0_16 = arith.constant 0 : index
    %c0_17 = arith.constant 0 : index
    %8 = vector.load %arg9[%c0_16, %c0_17] : memref<32x128xf32, #tpu.memory_space<vmem>>, vector<32x128xf32>
    %c0_18 = arith.constant 0 : index
    %c0_19 = arith.constant 0 : index
    %9 = vector.load %arg10[%c0_18, %c0_19] : memref<1x128xf32, #tpu.memory_space<vmem>>, vector<1x128xf32>
    %c0_20 = arith.constant 0 : index
    %c0_21 = arith.constant 0 : index
    %10 = vector.load %arg11[%c0_20, %c0_21] : memref<32x128xf32, #tpu.memory_space<vmem>>, vector<32x128xf32>
    %c0_22 = arith.constant 0 : index
    %c0_23 = arith.constant 0 : index
    %11 = vector.load %arg12[%c0_22, %c0_23] : memref<32x128xf32, #tpu.memory_space<vmem>>, vector<32x128xf32>
    %c0_24 = arith.constant 0 : index
    %c0_25 = arith.constant 0 : index
    %12 = vector.load %arg13[%c0_24, %c0_25] : memref<1x128xf32, #tpu.memory_space<vmem>>, vector<1x128xf32>
    %c0_26 = arith.constant 0 : index
    %c0_27 = arith.constant 0 : index
    %13 = vector.load %arg14[%c0_26, %c0_27] : memref<32x8xf32, #tpu.memory_space<vmem>>, vector<32x8xf32>
    %c0_28 = arith.constant 0 : index
    %c0_29 = arith.constant 0 : index
    %14 = vector.load %arg15[%c0_28, %c0_29] : memref<1x8xf32, #tpu.memory_space<vmem>>, vector<1x8xf32>
    %cst = arith.constant 0.000000e+00 : f32
    %15 = vector.broadcast %cst : f32 to vector<1x32xf32>
    %16 = vector.shape_cast %0 : vector<1x8x8xf32> to vector<8x8xf32>
    %cst_30 = arith.constant dense<0.000000e+00> : vector<8x128xf32>
    %17 = tpu.matmul %16, %1, %cst_30 {dimension_numbers = #tpu.dot_dimension_numbers<[1], [0], [0], [1], [0, 0, 1, 1], [], []>} : vector<8x8xf32>, vector<8x128xf32>, vector<8x128xf32> -> vector<8x128xf32>
    %18 = vector.broadcast %3 : vector<1x128xf32> to vector<8x128xf32>
    %19 = arith.addf %17, %18 : vector<8x128xf32>
    %20 = vector.shape_cast %19 : vector<8x128xf32> to vector<1x8x128xf32>
    %21 = vector.extract_strided_slice %20 {offsets = [0, 0, 0], sizes = [1, 1, 128], strides = [1, 1, 1]} : vector<1x8x128xf32> to vector<1x1x128xf32>
    %22 = vector.shape_cast %21 : vector<1x1x128xf32> to vector<1x128xf32>
    %cst_31 = arith.constant dense<0.000000e+00> : vector<1x128xf32>
    %23 = tpu.matmul %15, %2, %cst_31 {dimension_numbers = #tpu.dot_dimension_numbers<[1], [0], [0], [1], [0, 0, 1, 1], [], []>} : vector<1x32xf32>, vector<32x128xf32>, vector<1x128xf32> -> vector<1x128xf32>
    %24 = arith.addf %22, %23 : vector<1x128xf32>
    %25 = vector.extract_strided_slice %24 {offsets = [0, 0], sizes = [1, 32], strides = [1, 1]} : vector<1x128xf32> to vector<1x32xf32>
    %26 = arith.negf %25 : vector<1x32xf32>
    %27 = math.exp %26 : vector<1x32xf32>
    %cst_32 = arith.constant 1.000000e+00 : f32
    %28 = vector.broadcast %cst_32 : f32 to vector<1x32xf32>
    %29 = arith.addf %28, %27 : vector<1x32xf32>
    %30 = arith.divf %28, %29 : vector<1x32xf32>
    %31 = vector.extract_strided_slice %24 {offsets = [0, 32], sizes = [1, 32], strides = [1, 1]} : vector<1x128xf32> to vector<1x32xf32>
    %32 = arith.negf %31 : vector<1x32xf32>
    %33 = math.exp %32 : vector<1x32xf32>
    %cst_33 = arith.constant 1.000000e+00 : f32
    %34 = vector.broadcast %cst_33 : f32 to vector<1x32xf32>
    %35 = arith.addf %34, %33 : vector<1x32xf32>
    %36 = arith.divf %34, %35 : vector<1x32xf32>
    %37 = vector.extract_strided_slice %24 {offsets = [0, 64], sizes = [1, 32], strides = [1, 1]} : vector<1x128xf32> to vector<1x32xf32>
    %38 = math.tanh %37 : vector<1x32xf32>
    %39 = vector.extract_strided_slice %24 {offsets = [0, 96], sizes = [1, 32], strides = [1, 1]} : vector<1x128xf32> to vector<1x32xf32>
    %40 = arith.negf %39 : vector<1x32xf32>
    %41 = math.exp %40 : vector<1x32xf32>
    %cst_34 = arith.constant 1.000000e+00 : f32
    %42 = vector.broadcast %cst_34 : f32 to vector<1x32xf32>
    %43 = arith.addf %42, %41 : vector<1x32xf32>
    %44 = arith.divf %42, %43 : vector<1x32xf32>
    %45 = arith.mulf %36, %15 : vector<1x32xf32>
    %46 = arith.mulf %30, %38 : vector<1x32xf32>
    %47 = arith.addf %45, %46 : vector<1x32xf32>
    %48 = math.tanh %47 : vector<1x32xf32>
    %49 = arith.mulf %44, %48 : vector<1x32xf32>
    %50 = vector.extract_strided_slice %20 {offsets = [0, 1, 0], sizes = [1, 1, 128], strides = [1, 1, 1]} : vector<1x8x128xf32> to vector<1x1x128xf32>
    %51 = vector.shape_cast %50 : vector<1x1x128xf32> to vector<1x128xf32>
    %cst_35 = arith.constant dense<0.000000e+00> : vector<1x128xf32>
    %52 = tpu.matmul %49, %2, %cst_35 {dimension_numbers = #tpu.dot_dimension_numbers<[1], [0], [0], [1], [0, 0, 1, 1], [], []>} : vector<1x32xf32>, vector<32x128xf32>, vector<1x128xf32> -> vector<1x128xf32>
    %53 = arith.addf %51, %52 : vector<1x128xf32>
    %54 = vector.extract_strided_slice %53 {offsets = [0, 0], sizes = [1, 32], strides = [1, 1]} : vector<1x128xf32> to vector<1x32xf32>
    %55 = arith.negf %54 : vector<1x32xf32>
    %56 = math.exp %55 : vector<1x32xf32>
    %cst_36 = arith.constant 1.000000e+00 : f32
    %57 = vector.broadcast %cst_36 : f32 to vector<1x32xf32>
    %58 = arith.addf %57, %56 : vector<1x32xf32>
    %59 = arith.divf %57, %58 : vector<1x32xf32>
    %60 = vector.extract_strided_slice %53 {offsets = [0, 32], sizes = [1, 32], strides = [1, 1]} : vector<1x128xf32> to vector<1x32xf32>
    %61 = arith.negf %60 : vector<1x32xf32>
    %62 = math.exp %61 : vector<1x32xf32>
    %cst_37 = arith.constant 1.000000e+00 : f32
    %63 = vector.broadcast %cst_37 : f32 to vector<1x32xf32>
    %64 = arith.addf %63, %62 : vector<1x32xf32>
    %65 = arith.divf %63, %64 : vector<1x32xf32>
    %66 = vector.extract_strided_slice %53 {offsets = [0, 64], sizes = [1, 32], strides = [1, 1]} : vector<1x128xf32> to vector<1x32xf32>
    %67 = math.tanh %66 : vector<1x32xf32>
    %68 = vector.extract_strided_slice %53 {offsets = [0, 96], sizes = [1, 32], strides = [1, 1]} : vector<1x128xf32> to vector<1x32xf32>
    %69 = arith.negf %68 : vector<1x32xf32>
    %70 = math.exp %69 : vector<1x32xf32>
    %cst_38 = arith.constant 1.000000e+00 : f32
    %71 = vector.broadcast %cst_38 : f32 to vector<1x32xf32>
    %72 = arith.addf %71, %70 : vector<1x32xf32>
    %73 = arith.divf %71, %72 : vector<1x32xf32>
    %74 = arith.mulf %65, %47 : vector<1x32xf32>
    %75 = arith.mulf %59, %67 : vector<1x32xf32>
    %76 = arith.addf %74, %75 : vector<1x32xf32>
    %77 = math.tanh %76 : vector<1x32xf32>
    %78 = arith.mulf %73, %77 : vector<1x32xf32>
    %79 = vector.extract_strided_slice %20 {offsets = [0, 2, 0], sizes = [1, 1, 128], strides = [1, 1, 1]} : vector<1x8x128xf32> to vector<1x1x128xf32>
    %80 = vector.shape_cast %79 : vector<1x1x128xf32> to vector<1x128xf32>
    %cst_39 = arith.constant dense<0.000000e+00> : vector<1x128xf32>
    %81 = tpu.matmul %78, %2, %cst_39 {dimension_numbers = #tpu.dot_dimension_numbers<[1], [0], [0], [1], [0, 0, 1, 1], [], []>} : vector<1x32xf32>, vector<32x128xf32>, vector<1x128xf32> -> vector<1x128xf32>
    %82 = arith.addf %80, %81 : vector<1x128xf32>
    %83 = vector.extract_strided_slice %82 {offsets = [0, 0], sizes = [1, 32], strides = [1, 1]} : vector<1x128xf32> to vector<1x32xf32>
    %84 = arith.negf %83 : vector<1x32xf32>
    %85 = math.exp %84 : vector<1x32xf32>
    %cst_40 = arith.constant 1.000000e+00 : f32
    %86 = vector.broadcast %cst_40 : f32 to vector<1x32xf32>
    %87 = arith.addf %86, %85 : vector<1x32xf32>
    %88 = arith.divf %86, %87 : vector<1x32xf32>
    %89 = vector.extract_strided_slice %82 {offsets = [0, 32], sizes = [1, 32], strides = [1, 1]} : vector<1x128xf32> to vector<1x32xf32>
    %90 = arith.negf %89 : vector<1x32xf32>
    %91 = math.exp %90 : vector<1x32xf32>
    %cst_41 = arith.constant 1.000000e+00 : f32
    %92 = vector.broadcast %cst_41 : f32 to vector<1x32xf32>
    %93 = arith.addf %92, %91 : vector<1x32xf32>
    %94 = arith.divf %92, %93 : vector<1x32xf32>
    %95 = vector.extract_strided_slice %82 {offsets = [0, 64], sizes = [1, 32], strides = [1, 1]} : vector<1x128xf32> to vector<1x32xf32>
    %96 = math.tanh %95 : vector<1x32xf32>
    %97 = vector.extract_strided_slice %82 {offsets = [0, 96], sizes = [1, 32], strides = [1, 1]} : vector<1x128xf32> to vector<1x32xf32>
    %98 = arith.negf %97 : vector<1x32xf32>
    %99 = math.exp %98 : vector<1x32xf32>
    %cst_42 = arith.constant 1.000000e+00 : f32
    %100 = vector.broadcast %cst_42 : f32 to vector<1x32xf32>
    %101 = arith.addf %100, %99 : vector<1x32xf32>
    %102 = arith.divf %100, %101 : vector<1x32xf32>
    %103 = arith.mulf %94, %76 : vector<1x32xf32>
    %104 = arith.mulf %88, %96 : vector<1x32xf32>
    %105 = arith.addf %103, %104 : vector<1x32xf32>
    %106 = math.tanh %105 : vector<1x32xf32>
    %107 = arith.mulf %102, %106 : vector<1x32xf32>
    %108 = vector.extract_strided_slice %20 {offsets = [0, 3, 0], sizes = [1, 1, 128], strides = [1, 1, 1]} : vector<1x8x128xf32> to vector<1x1x128xf32>
    %109 = vector.shape_cast %108 : vector<1x1x128xf32> to vector<1x128xf32>
    %cst_43 = arith.constant dense<0.000000e+00> : vector<1x128xf32>
    %110 = tpu.matmul %107, %2, %cst_43 {dimension_numbers = #tpu.dot_dimension_numbers<[1], [0], [0], [1], [0, 0, 1, 1], [], []>} : vector<1x32xf32>, vector<32x128xf32>, vector<1x128xf32> -> vector<1x128xf32>
    %111 = arith.addf %109, %110 : vector<1x128xf32>
    %112 = vector.extract_strided_slice %111 {offsets = [0, 0], sizes = [1, 32], strides = [1, 1]} : vector<1x128xf32> to vector<1x32xf32>
    %113 = arith.negf %112 : vector<1x32xf32>
    %114 = math.exp %113 : vector<1x32xf32>
    %cst_44 = arith.constant 1.000000e+00 : f32
    %115 = vector.broadcast %cst_44 : f32 to vector<1x32xf32>
    %116 = arith.addf %115, %114 : vector<1x32xf32>
    %117 = arith.divf %115, %116 : vector<1x32xf32>
    %118 = vector.extract_strided_slice %111 {offsets = [0, 32], sizes = [1, 32], strides = [1, 1]} : vector<1x128xf32> to vector<1x32xf32>
    %119 = arith.negf %118 : vector<1x32xf32>
    %120 = math.exp %119 : vector<1x32xf32>
    %cst_45 = arith.constant 1.000000e+00 : f32
    %121 = vector.broadcast %cst_45 : f32 to vector<1x32xf32>
    %122 = arith.addf %121, %120 : vector<1x32xf32>
    %123 = arith.divf %121, %122 : vector<1x32xf32>
    %124 = vector.extract_strided_slice %111 {offsets = [0, 64], sizes = [1, 32], strides = [1, 1]} : vector<1x128xf32> to vector<1x32xf32>
    %125 = math.tanh %124 : vector<1x32xf32>
    %126 = vector.extract_strided_slice %111 {offsets = [0, 96], sizes = [1, 32], strides = [1, 1]} : vector<1x128xf32> to vector<1x32xf32>
    %127 = arith.negf %126 : vector<1x32xf32>
    %128 = math.exp %127 : vector<1x32xf32>
    %cst_46 = arith.constant 1.000000e+00 : f32
    %129 = vector.broadcast %cst_46 : f32 to vector<1x32xf32>
    %130 = arith.addf %129, %128 : vector<1x32xf32>
    %131 = arith.divf %129, %130 : vector<1x32xf32>
    %132 = arith.mulf %123, %105 : vector<1x32xf32>
    %133 = arith.mulf %117, %125 : vector<1x32xf32>
    %134 = arith.addf %132, %133 : vector<1x32xf32>
    %135 = math.tanh %134 : vector<1x32xf32>
    %136 = arith.mulf %131, %135 : vector<1x32xf32>
    %137 = vector.extract_strided_slice %20 {offsets = [0, 4, 0], sizes = [1, 1, 128], strides = [1, 1, 1]} : vector<1x8x128xf32> to vector<1x1x128xf32>
    %138 = vector.shape_cast %137 : vector<1x1x128xf32> to vector<1x128xf32>
    %cst_47 = arith.constant dense<0.000000e+00> : vector<1x128xf32>
    %139 = tpu.matmul %136, %2, %cst_47 {dimension_numbers = #tpu.dot_dimension_numbers<[1], [0], [0], [1], [0, 0, 1, 1], [], []>} : vector<1x32xf32>, vector<32x128xf32>, vector<1x128xf32> -> vector<1x128xf32>
    %140 = arith.addf %138, %139 : vector<1x128xf32>
    %141 = vector.extract_strided_slice %140 {offsets = [0, 0], sizes = [1, 32], strides = [1, 1]} : vector<1x128xf32> to vector<1x32xf32>
    %142 = arith.negf %141 : vector<1x32xf32>
    %143 = math.exp %142 : vector<1x32xf32>
    %cst_48 = arith.constant 1.000000e+00 : f32
    %144 = vector.broadcast %cst_48 : f32 to vector<1x32xf32>
    %145 = arith.addf %144, %143 : vector<1x32xf32>
    %146 = arith.divf %144, %145 : vector<1x32xf32>
    %147 = vector.extract_strided_slice %140 {offsets = [0, 32], sizes = [1, 32], strides = [1, 1]} : vector<1x128xf32> to vector<1x32xf32>
    %148 = arith.negf %147 : vector<1x32xf32>
    %149 = math.exp %148 : vector<1x32xf32>
    %cst_49 = arith.constant 1.000000e+00 : f32
    %150 = vector.broadcast %cst_49 : f32 to vector<1x32xf32>
    %151 = arith.addf %150, %149 : vector<1x32xf32>
    %152 = arith.divf %150, %151 : vector<1x32xf32>
    %153 = vector.extract_strided_slice %140 {offsets = [0, 64], sizes = [1, 32], strides = [1, 1]} : vector<1x128xf32> to vector<1x32xf32>
    %154 = math.tanh %153 : vector<1x32xf32>
    %155 = vector.extract_strided_slice %140 {offsets = [0, 96], sizes = [1, 32], strides = [1, 1]} : vector<1x128xf32> to vector<1x32xf32>
    %156 = arith.negf %155 : vector<1x32xf32>
    %157 = math.exp %156 : vector<1x32xf32>
    %cst_50 = arith.constant 1.000000e+00 : f32
    %158 = vector.broadcast %cst_50 : f32 to vector<1x32xf32>
    %159 = arith.addf %158, %157 : vector<1x32xf32>
    %160 = arith.divf %158, %159 : vector<1x32xf32>
    %161 = arith.mulf %152, %134 : vector<1x32xf32>
    %162 = arith.mulf %146, %154 : vector<1x32xf32>
    %163 = arith.addf %161, %162 : vector<1x32xf32>
    %164 = math.tanh %163 : vector<1x32xf32>
    %165 = arith.mulf %160, %164 : vector<1x32xf32>
    %166 = vector.extract_strided_slice %20 {offsets = [0, 5, 0], sizes = [1, 1, 128], strides = [1, 1, 1]} : vector<1x8x128xf32> to vector<1x1x128xf32>
    %167 = vector.shape_cast %166 : vector<1x1x128xf32> to vector<1x128xf32>
    %cst_51 = arith.constant dense<0.000000e+00> : vector<1x128xf32>
    %168 = tpu.matmul %165, %2, %cst_51 {dimension_numbers = #tpu.dot_dimension_numbers<[1], [0], [0], [1], [0, 0, 1, 1], [], []>} : vector<1x32xf32>, vector<32x128xf32>, vector<1x128xf32> -> vector<1x128xf32>
    %169 = arith.addf %167, %168 : vector<1x128xf32>
    %170 = vector.extract_strided_slice %169 {offsets = [0, 0], sizes = [1, 32], strides = [1, 1]} : vector<1x128xf32> to vector<1x32xf32>
    %171 = arith.negf %170 : vector<1x32xf32>
    %172 = math.exp %171 : vector<1x32xf32>
    %cst_52 = arith.constant 1.000000e+00 : f32
    %173 = vector.broadcast %cst_52 : f32 to vector<1x32xf32>
    %174 = arith.addf %173, %172 : vector<1x32xf32>
    %175 = arith.divf %173, %174 : vector<1x32xf32>
    %176 = vector.extract_strided_slice %169 {offsets = [0, 32], sizes = [1, 32], strides = [1, 1]} : vector<1x128xf32> to vector<1x32xf32>
    %177 = arith.negf %176 : vector<1x32xf32>
    %178 = math.exp %177 : vector<1x32xf32>
    %cst_53 = arith.constant 1.000000e+00 : f32
    %179 = vector.broadcast %cst_53 : f32 to vector<1x32xf32>
    %180 = arith.addf %179, %178 : vector<1x32xf32>
    %181 = arith.divf %179, %180 : vector<1x32xf32>
    %182 = vector.extract_strided_slice %169 {offsets = [0, 64], sizes = [1, 32], strides = [1, 1]} : vector<1x128xf32> to vector<1x32xf32>
    %183 = math.tanh %182 : vector<1x32xf32>
    %184 = vector.extract_strided_slice %169 {offsets = [0, 96], sizes = [1, 32], strides = [1, 1]} : vector<1x128xf32> to vector<1x32xf32>
    %185 = arith.negf %184 : vector<1x32xf32>
    %186 = math.exp %185 : vector<1x32xf32>
    %cst_54 = arith.constant 1.000000e+00 : f32
    %187 = vector.broadcast %cst_54 : f32 to vector<1x32xf32>
    %188 = arith.addf %187, %186 : vector<1x32xf32>
    %189 = arith.divf %187, %188 : vector<1x32xf32>
    %190 = arith.mulf %181, %163 : vector<1x32xf32>
    %191 = arith.mulf %175, %183 : vector<1x32xf32>
    %192 = arith.addf %190, %191 : vector<1x32xf32>
    %193 = math.tanh %192 : vector<1x32xf32>
    %194 = arith.mulf %189, %193 : vector<1x32xf32>
    %195 = vector.extract_strided_slice %20 {offsets = [0, 6, 0], sizes = [1, 1, 128], strides = [1, 1, 1]} : vector<1x8x128xf32> to vector<1x1x128xf32>
    %196 = vector.shape_cast %195 : vector<1x1x128xf32> to vector<1x128xf32>
    %cst_55 = arith.constant dense<0.000000e+00> : vector<1x128xf32>
    %197 = tpu.matmul %194, %2, %cst_55 {dimension_numbers = #tpu.dot_dimension_numbers<[1], [0], [0], [1], [0, 0, 1, 1], [], []>} : vector<1x32xf32>, vector<32x128xf32>, vector<1x128xf32> -> vector<1x128xf32>
    %198 = arith.addf %196, %197 : vector<1x128xf32>
    %199 = vector.extract_strided_slice %198 {offsets = [0, 0], sizes = [1, 32], strides = [1, 1]} : vector<1x128xf32> to vector<1x32xf32>
    %200 = arith.negf %199 : vector<1x32xf32>
    %201 = math.exp %200 : vector<1x32xf32>
    %cst_56 = arith.constant 1.000000e+00 : f32
    %202 = vector.broadcast %cst_56 : f32 to vector<1x32xf32>
    %203 = arith.addf %202, %201 : vector<1x32xf32>
    %204 = arith.divf %202, %203 : vector<1x32xf32>
    %205 = vector.extract_strided_slice %198 {offsets = [0, 32], sizes = [1, 32], strides = [1, 1]} : vector<1x128xf32> to vector<1x32xf32>
    %206 = arith.negf %205 : vector<1x32xf32>
    %207 = math.exp %206 : vector<1x32xf32>
    %cst_57 = arith.constant 1.000000e+00 : f32
    %208 = vector.broadcast %cst_57 : f32 to vector<1x32xf32>
    %209 = arith.addf %208, %207 : vector<1x32xf32>
    %210 = arith.divf %208, %209 : vector<1x32xf32>
    %211 = vector.extract_strided_slice %198 {offsets = [0, 64], sizes = [1, 32], strides = [1, 1]} : vector<1x128xf32> to vector<1x32xf32>
    %212 = math.tanh %211 : vector<1x32xf32>
    %213 = vector.extract_strided_slice %198 {offsets = [0, 96], sizes = [1, 32], strides = [1, 1]} : vector<1x128xf32> to vector<1x32xf32>
    %214 = arith.negf %213 : vector<1x32xf32>
    %215 = math.exp %214 : vector<1x32xf32>
    %cst_58 = arith.constant 1.000000e+00 : f32
    %216 = vector.broadcast %cst_58 : f32 to vector<1x32xf32>
    %217 = arith.addf %216, %215 : vector<1x32xf32>
    %218 = arith.divf %216, %217 : vector<1x32xf32>
    %219 = arith.mulf %210, %192 : vector<1x32xf32>
    %220 = arith.mulf %204, %212 : vector<1x32xf32>
    %221 = arith.addf %219, %220 : vector<1x32xf32>
    %222 = math.tanh %221 : vector<1x32xf32>
    %223 = arith.mulf %218, %222 : vector<1x32xf32>
    %224 = vector.extract_strided_slice %20 {offsets = [0, 7, 0], sizes = [1, 1, 128], strides = [1, 1, 1]} : vector<1x8x128xf32> to vector<1x1x128xf32>
    %225 = vector.shape_cast %224 : vector<1x1x128xf32> to vector<1x128xf32>
    %cst_59 = arith.constant dense<0.000000e+00> : vector<1x128xf32>
    %226 = tpu.matmul %223, %2, %cst_59 {dimension_numbers = #tpu.dot_dimension_numbers<[1], [0], [0], [1], [0, 0, 1, 1], [], []>} : vector<1x32xf32>, vector<32x128xf32>, vector<1x128xf32> -> vector<1x128xf32>
    %227 = arith.addf %225, %226 : vector<1x128xf32>
    %228 = vector.extract_strided_slice %227 {offsets = [0, 0], sizes = [1, 32], strides = [1, 1]} : vector<1x128xf32> to vector<1x32xf32>
    %229 = arith.negf %228 : vector<1x32xf32>
    %230 = math.exp %229 : vector<1x32xf32>
    %cst_60 = arith.constant 1.000000e+00 : f32
    %231 = vector.broadcast %cst_60 : f32 to vector<1x32xf32>
    %232 = arith.addf %231, %230 : vector<1x32xf32>
    %233 = arith.divf %231, %232 : vector<1x32xf32>
    %234 = vector.extract_strided_slice %227 {offsets = [0, 32], sizes = [1, 32], strides = [1, 1]} : vector<1x128xf32> to vector<1x32xf32>
    %235 = arith.negf %234 : vector<1x32xf32>
    %236 = math.exp %235 : vector<1x32xf32>
    %cst_61 = arith.constant 1.000000e+00 : f32
    %237 = vector.broadcast %cst_61 : f32 to vector<1x32xf32>
    %238 = arith.addf %237, %236 : vector<1x32xf32>
    %239 = arith.divf %237, %238 : vector<1x32xf32>
    %240 = vector.extract_strided_slice %227 {offsets = [0, 64], sizes = [1, 32], strides = [1, 1]} : vector<1x128xf32> to vector<1x32xf32>
    %241 = math.tanh %240 : vector<1x32xf32>
    %242 = vector.extract_strided_slice %227 {offsets = [0, 96], sizes = [1, 32], strides = [1, 1]} : vector<1x128xf32> to vector<1x32xf32>
    %243 = arith.negf %242 : vector<1x32xf32>
    %244 = math.exp %243 : vector<1x32xf32>
    %cst_62 = arith.constant 1.000000e+00 : f32
    %245 = vector.broadcast %cst_62 : f32 to vector<1x32xf32>
    %246 = arith.addf %245, %244 : vector<1x32xf32>
    %247 = arith.divf %245, %246 : vector<1x32xf32>
    %248 = arith.mulf %239, %221 : vector<1x32xf32>
    %249 = arith.mulf %233, %241 : vector<1x32xf32>
    %250 = arith.addf %248, %249 : vector<1x32xf32>
    %251 = math.tanh %250 : vector<1x32xf32>
    %252 = arith.mulf %247, %251 : vector<1x32xf32>
    %253 = vector.shape_cast %49 : vector<1x32xf32> to vector<1x1x32xf32>
    %254 = vector.shape_cast %78 : vector<1x32xf32> to vector<1x1x32xf32>
    %255 = vector.shape_cast %107 : vector<1x32xf32> to vector<1x1x32xf32>
    %256 = vector.shape_cast %136 : vector<1x32xf32> to vector<1x1x32xf32>
    %257 = vector.shape_cast %165 : vector<1x32xf32> to vector<1x1x32xf32>
    %258 = vector.shape_cast %194 : vector<1x32xf32> to vector<1x1x32xf32>
    %259 = vector.shape_cast %223 : vector<1x32xf32> to vector<1x1x32xf32>
    %260 = vector.shape_cast %252 : vector<1x32xf32> to vector<1x1x32xf32>
    %261 = tpu.concatenate %253, %254, %255, %256, %257, %258, %259, %260 in 0 : vector<1x1x32xf32>, vector<1x1x32xf32>, vector<1x1x32xf32>, vector<1x1x32xf32>, vector<1x1x32xf32>, vector<1x1x32xf32>, vector<1x1x32xf32>, vector<1x1x32xf32> -> vector<8x1x32xf32>
    %262 = vector.shape_cast %261 : vector<8x1x32xf32> to vector<8x32xf32>
    %cst_63 = arith.constant dense<0.000000e+00> : vector<8x128xf32>
    %263 = tpu.matmul %262, %4, %cst_63 {dimension_numbers = #tpu.dot_dimension_numbers<[1], [0], [0], [1], [0, 0, 1, 1], [], []>} : vector<8x32xf32>, vector<32x128xf32>, vector<8x128xf32> -> vector<8x128xf32>
    %264 = vector.broadcast %6 : vector<1x128xf32> to vector<8x128xf32>
    %265 = arith.addf %263, %264 : vector<8x128xf32>
    %266 = vector.shape_cast %265 : vector<8x128xf32> to vector<8x1x128xf32>
    %267 = vector.extract_strided_slice %266 {offsets = [0, 0, 0], sizes = [1, 1, 128], strides = [1, 1, 1]} : vector<8x1x128xf32> to vector<1x1x128xf32>
    %268 = vector.shape_cast %267 : vector<1x1x128xf32> to vector<1x128xf32>
    %cst_64 = arith.constant dense<0.000000e+00> : vector<1x128xf32>
    %269 = tpu.matmul %15, %5, %cst_64 {dimension_numbers = #tpu.dot_dimension_numbers<[1], [0], [0], [1], [0, 0, 1, 1], [], []>} : vector<1x32xf32>, vector<32x128xf32>, vector<1x128xf32> -> vector<1x128xf32>
    %270 = arith.addf %268, %269 : vector<1x128xf32>
    %271 = vector.extract_strided_slice %270 {offsets = [0, 0], sizes = [1, 32], strides = [1, 1]} : vector<1x128xf32> to vector<1x32xf32>
    %272 = arith.negf %271 : vector<1x32xf32>
    %273 = math.exp %272 : vector<1x32xf32>
    %cst_65 = arith.constant 1.000000e+00 : f32
    %274 = vector.broadcast %cst_65 : f32 to vector<1x32xf32>
    %275 = arith.addf %274, %273 : vector<1x32xf32>
    %276 = arith.divf %274, %275 : vector<1x32xf32>
    %277 = vector.extract_strided_slice %270 {offsets = [0, 32], sizes = [1, 32], strides = [1, 1]} : vector<1x128xf32> to vector<1x32xf32>
    %278 = arith.negf %277 : vector<1x32xf32>
    %279 = math.exp %278 : vector<1x32xf32>
    %cst_66 = arith.constant 1.000000e+00 : f32
    %280 = vector.broadcast %cst_66 : f32 to vector<1x32xf32>
    %281 = arith.addf %280, %279 : vector<1x32xf32>
    %282 = arith.divf %280, %281 : vector<1x32xf32>
    %283 = vector.extract_strided_slice %270 {offsets = [0, 64], sizes = [1, 32], strides = [1, 1]} : vector<1x128xf32> to vector<1x32xf32>
    %284 = math.tanh %283 : vector<1x32xf32>
    %285 = vector.extract_strided_slice %270 {offsets = [0, 96], sizes = [1, 32], strides = [1, 1]} : vector<1x128xf32> to vector<1x32xf32>
    %286 = arith.negf %285 : vector<1x32xf32>
    %287 = math.exp %286 : vector<1x32xf32>
    %cst_67 = arith.constant 1.000000e+00 : f32
    %288 = vector.broadcast %cst_67 : f32 to vector<1x32xf32>
    %289 = arith.addf %288, %287 : vector<1x32xf32>
    %290 = arith.divf %288, %289 : vector<1x32xf32>
    %291 = arith.mulf %282, %15 : vector<1x32xf32>
    %292 = arith.mulf %276, %284 : vector<1x32xf32>
    %293 = arith.addf %291, %292 : vector<1x32xf32>
    %294 = math.tanh %293 : vector<1x32xf32>
    %295 = arith.mulf %290, %294 : vector<1x32xf32>
    %296 = vector.extract_strided_slice %266 {offsets = [1, 0, 0], sizes = [1, 1, 128], strides = [1, 1, 1]} : vector<8x1x128xf32> to vector<1x1x128xf32>
    %297 = vector.shape_cast %296 : vector<1x1x128xf32> to vector<1x128xf32>
    %cst_68 = arith.constant dense<0.000000e+00> : vector<1x128xf32>
    %298 = tpu.matmul %295, %5, %cst_68 {dimension_numbers = #tpu.dot_dimension_numbers<[1], [0], [0], [1], [0, 0, 1, 1], [], []>} : vector<1x32xf32>, vector<32x128xf32>, vector<1x128xf32> -> vector<1x128xf32>
    %299 = arith.addf %297, %298 : vector<1x128xf32>
    %300 = vector.extract_strided_slice %299 {offsets = [0, 0], sizes = [1, 32], strides = [1, 1]} : vector<1x128xf32> to vector<1x32xf32>
    %301 = arith.negf %300 : vector<1x32xf32>
    %302 = math.exp %301 : vector<1x32xf32>
    %cst_69 = arith.constant 1.000000e+00 : f32
    %303 = vector.broadcast %cst_69 : f32 to vector<1x32xf32>
    %304 = arith.addf %303, %302 : vector<1x32xf32>
    %305 = arith.divf %303, %304 : vector<1x32xf32>
    %306 = vector.extract_strided_slice %299 {offsets = [0, 32], sizes = [1, 32], strides = [1, 1]} : vector<1x128xf32> to vector<1x32xf32>
    %307 = arith.negf %306 : vector<1x32xf32>
    %308 = math.exp %307 : vector<1x32xf32>
    %cst_70 = arith.constant 1.000000e+00 : f32
    %309 = vector.broadcast %cst_70 : f32 to vector<1x32xf32>
    %310 = arith.addf %309, %308 : vector<1x32xf32>
    %311 = arith.divf %309, %310 : vector<1x32xf32>
    %312 = vector.extract_strided_slice %299 {offsets = [0, 64], sizes = [1, 32], strides = [1, 1]} : vector<1x128xf32> to vector<1x32xf32>
    %313 = math.tanh %312 : vector<1x32xf32>
    %314 = vector.extract_strided_slice %299 {offsets = [0, 96], sizes = [1, 32], strides = [1, 1]} : vector<1x128xf32> to vector<1x32xf32>
    %315 = arith.negf %314 : vector<1x32xf32>
    %316 = math.exp %315 : vector<1x32xf32>
    %cst_71 = arith.constant 1.000000e+00 : f32
    %317 = vector.broadcast %cst_71 : f32 to vector<1x32xf32>
    %318 = arith.addf %317, %316 : vector<1x32xf32>
    %319 = arith.divf %317, %318 : vector<1x32xf32>
    %320 = arith.mulf %311, %293 : vector<1x32xf32>
    %321 = arith.mulf %305, %313 : vector<1x32xf32>
    %322 = arith.addf %320, %321 : vector<1x32xf32>
    %323 = math.tanh %322 : vector<1x32xf32>
    %324 = arith.mulf %319, %323 : vector<1x32xf32>
    %325 = vector.extract_strided_slice %266 {offsets = [2, 0, 0], sizes = [1, 1, 128], strides = [1, 1, 1]} : vector<8x1x128xf32> to vector<1x1x128xf32>
    %326 = vector.shape_cast %325 : vector<1x1x128xf32> to vector<1x128xf32>
    %cst_72 = arith.constant dense<0.000000e+00> : vector<1x128xf32>
    %327 = tpu.matmul %324, %5, %cst_72 {dimension_numbers = #tpu.dot_dimension_numbers<[1], [0], [0], [1], [0, 0, 1, 1], [], []>} : vector<1x32xf32>, vector<32x128xf32>, vector<1x128xf32> -> vector<1x128xf32>
    %328 = arith.addf %326, %327 : vector<1x128xf32>
    %329 = vector.extract_strided_slice %328 {offsets = [0, 0], sizes = [1, 32], strides = [1, 1]} : vector<1x128xf32> to vector<1x32xf32>
    %330 = arith.negf %329 : vector<1x32xf32>
    %331 = math.exp %330 : vector<1x32xf32>
    %cst_73 = arith.constant 1.000000e+00 : f32
    %332 = vector.broadcast %cst_73 : f32 to vector<1x32xf32>
    %333 = arith.addf %332, %331 : vector<1x32xf32>
    %334 = arith.divf %332, %333 : vector<1x32xf32>
    %335 = vector.extract_strided_slice %328 {offsets = [0, 32], sizes = [1, 32], strides = [1, 1]} : vector<1x128xf32> to vector<1x32xf32>
    %336 = arith.negf %335 : vector<1x32xf32>
    %337 = math.exp %336 : vector<1x32xf32>
    %cst_74 = arith.constant 1.000000e+00 : f32
    %338 = vector.broadcast %cst_74 : f32 to vector<1x32xf32>
    %339 = arith.addf %338, %337 : vector<1x32xf32>
    %340 = arith.divf %338, %339 : vector<1x32xf32>
    %341 = vector.extract_strided_slice %328 {offsets = [0, 64], sizes = [1, 32], strides = [1, 1]} : vector<1x128xf32> to vector<1x32xf32>
    %342 = math.tanh %341 : vector<1x32xf32>
    %343 = vector.extract_strided_slice %328 {offsets = [0, 96], sizes = [1, 32], strides = [1, 1]} : vector<1x128xf32> to vector<1x32xf32>
    %344 = arith.negf %343 : vector<1x32xf32>
    %345 = math.exp %344 : vector<1x32xf32>
    %cst_75 = arith.constant 1.000000e+00 : f32
    %346 = vector.broadcast %cst_75 : f32 to vector<1x32xf32>
    %347 = arith.addf %346, %345 : vector<1x32xf32>
    %348 = arith.divf %346, %347 : vector<1x32xf32>
    %349 = arith.mulf %340, %322 : vector<1x32xf32>
    %350 = arith.mulf %334, %342 : vector<1x32xf32>
    %351 = arith.addf %349, %350 : vector<1x32xf32>
    %352 = math.tanh %351 : vector<1x32xf32>
    %353 = arith.mulf %348, %352 : vector<1x32xf32>
    %354 = vector.extract_strided_slice %266 {offsets = [3, 0, 0], sizes = [1, 1, 128], strides = [1, 1, 1]} : vector<8x1x128xf32> to vector<1x1x128xf32>
    %355 = vector.shape_cast %354 : vector<1x1x128xf32> to vector<1x128xf32>
    %cst_76 = arith.constant dense<0.000000e+00> : vector<1x128xf32>
    %356 = tpu.matmul %353, %5, %cst_76 {dimension_numbers = #tpu.dot_dimension_numbers<[1], [0], [0], [1], [0, 0, 1, 1], [], []>} : vector<1x32xf32>, vector<32x128xf32>, vector<1x128xf32> -> vector<1x128xf32>
    %357 = arith.addf %355, %356 : vector<1x128xf32>
    %358 = vector.extract_strided_slice %357 {offsets = [0, 0], sizes = [1, 32], strides = [1, 1]} : vector<1x128xf32> to vector<1x32xf32>
    %359 = arith.negf %358 : vector<1x32xf32>
    %360 = math.exp %359 : vector<1x32xf32>
    %cst_77 = arith.constant 1.000000e+00 : f32
    %361 = vector.broadcast %cst_77 : f32 to vector<1x32xf32>
    %362 = arith.addf %361, %360 : vector<1x32xf32>
    %363 = arith.divf %361, %362 : vector<1x32xf32>
    %364 = vector.extract_strided_slice %357 {offsets = [0, 32], sizes = [1, 32], strides = [1, 1]} : vector<1x128xf32> to vector<1x32xf32>
    %365 = arith.negf %364 : vector<1x32xf32>
    %366 = math.exp %365 : vector<1x32xf32>
    %cst_78 = arith.constant 1.000000e+00 : f32
    %367 = vector.broadcast %cst_78 : f32 to vector<1x32xf32>
    %368 = arith.addf %367, %366 : vector<1x32xf32>
    %369 = arith.divf %367, %368 : vector<1x32xf32>
    %370 = vector.extract_strided_slice %357 {offsets = [0, 64], sizes = [1, 32], strides = [1, 1]} : vector<1x128xf32> to vector<1x32xf32>
    %371 = math.tanh %370 : vector<1x32xf32>
    %372 = vector.extract_strided_slice %357 {offsets = [0, 96], sizes = [1, 32], strides = [1, 1]} : vector<1x128xf32> to vector<1x32xf32>
    %373 = arith.negf %372 : vector<1x32xf32>
    %374 = math.exp %373 : vector<1x32xf32>
    %cst_79 = arith.constant 1.000000e+00 : f32
    %375 = vector.broadcast %cst_79 : f32 to vector<1x32xf32>
    %376 = arith.addf %375, %374 : vector<1x32xf32>
    %377 = arith.divf %375, %376 : vector<1x32xf32>
    %378 = arith.mulf %369, %351 : vector<1x32xf32>
    %379 = arith.mulf %363, %371 : vector<1x32xf32>
    %380 = arith.addf %378, %379 : vector<1x32xf32>
    %381 = math.tanh %380 : vector<1x32xf32>
    %382 = arith.mulf %377, %381 : vector<1x32xf32>
    %383 = vector.extract_strided_slice %266 {offsets = [4, 0, 0], sizes = [1, 1, 128], strides = [1, 1, 1]} : vector<8x1x128xf32> to vector<1x1x128xf32>
    %384 = vector.shape_cast %383 : vector<1x1x128xf32> to vector<1x128xf32>
    %cst_80 = arith.constant dense<0.000000e+00> : vector<1x128xf32>
    %385 = tpu.matmul %382, %5, %cst_80 {dimension_numbers = #tpu.dot_dimension_numbers<[1], [0], [0], [1], [0, 0, 1, 1], [], []>} : vector<1x32xf32>, vector<32x128xf32>, vector<1x128xf32> -> vector<1x128xf32>
    %386 = arith.addf %384, %385 : vector<1x128xf32>
    %387 = vector.extract_strided_slice %386 {offsets = [0, 0], sizes = [1, 32], strides = [1, 1]} : vector<1x128xf32> to vector<1x32xf32>
    %388 = arith.negf %387 : vector<1x32xf32>
    %389 = math.exp %388 : vector<1x32xf32>
    %cst_81 = arith.constant 1.000000e+00 : f32
    %390 = vector.broadcast %cst_81 : f32 to vector<1x32xf32>
    %391 = arith.addf %390, %389 : vector<1x32xf32>
    %392 = arith.divf %390, %391 : vector<1x32xf32>
    %393 = vector.extract_strided_slice %386 {offsets = [0, 32], sizes = [1, 32], strides = [1, 1]} : vector<1x128xf32> to vector<1x32xf32>
    %394 = arith.negf %393 : vector<1x32xf32>
    %395 = math.exp %394 : vector<1x32xf32>
    %cst_82 = arith.constant 1.000000e+00 : f32
    %396 = vector.broadcast %cst_82 : f32 to vector<1x32xf32>
    %397 = arith.addf %396, %395 : vector<1x32xf32>
    %398 = arith.divf %396, %397 : vector<1x32xf32>
    %399 = vector.extract_strided_slice %386 {offsets = [0, 64], sizes = [1, 32], strides = [1, 1]} : vector<1x128xf32> to vector<1x32xf32>
    %400 = math.tanh %399 : vector<1x32xf32>
    %401 = vector.extract_strided_slice %386 {offsets = [0, 96], sizes = [1, 32], strides = [1, 1]} : vector<1x128xf32> to vector<1x32xf32>
    %402 = arith.negf %401 : vector<1x32xf32>
    %403 = math.exp %402 : vector<1x32xf32>
    %cst_83 = arith.constant 1.000000e+00 : f32
    %404 = vector.broadcast %cst_83 : f32 to vector<1x32xf32>
    %405 = arith.addf %404, %403 : vector<1x32xf32>
    %406 = arith.divf %404, %405 : vector<1x32xf32>
    %407 = arith.mulf %398, %380 : vector<1x32xf32>
    %408 = arith.mulf %392, %400 : vector<1x32xf32>
    %409 = arith.addf %407, %408 : vector<1x32xf32>
    %410 = math.tanh %409 : vector<1x32xf32>
    %411 = arith.mulf %406, %410 : vector<1x32xf32>
    %412 = vector.extract_strided_slice %266 {offsets = [5, 0, 0], sizes = [1, 1, 128], strides = [1, 1, 1]} : vector<8x1x128xf32> to vector<1x1x128xf32>
    %413 = vector.shape_cast %412 : vector<1x1x128xf32> to vector<1x128xf32>
    %cst_84 = arith.constant dense<0.000000e+00> : vector<1x128xf32>
    %414 = tpu.matmul %411, %5, %cst_84 {dimension_numbers = #tpu.dot_dimension_numbers<[1], [0], [0], [1], [0, 0, 1, 1], [], []>} : vector<1x32xf32>, vector<32x128xf32>, vector<1x128xf32> -> vector<1x128xf32>
    %415 = arith.addf %413, %414 : vector<1x128xf32>
    %416 = vector.extract_strided_slice %415 {offsets = [0, 0], sizes = [1, 32], strides = [1, 1]} : vector<1x128xf32> to vector<1x32xf32>
    %417 = arith.negf %416 : vector<1x32xf32>
    %418 = math.exp %417 : vector<1x32xf32>
    %cst_85 = arith.constant 1.000000e+00 : f32
    %419 = vector.broadcast %cst_85 : f32 to vector<1x32xf32>
    %420 = arith.addf %419, %418 : vector<1x32xf32>
    %421 = arith.divf %419, %420 : vector<1x32xf32>
    %422 = vector.extract_strided_slice %415 {offsets = [0, 32], sizes = [1, 32], strides = [1, 1]} : vector<1x128xf32> to vector<1x32xf32>
    %423 = arith.negf %422 : vector<1x32xf32>
    %424 = math.exp %423 : vector<1x32xf32>
    %cst_86 = arith.constant 1.000000e+00 : f32
    %425 = vector.broadcast %cst_86 : f32 to vector<1x32xf32>
    %426 = arith.addf %425, %424 : vector<1x32xf32>
    %427 = arith.divf %425, %426 : vector<1x32xf32>
    %428 = vector.extract_strided_slice %415 {offsets = [0, 64], sizes = [1, 32], strides = [1, 1]} : vector<1x128xf32> to vector<1x32xf32>
    %429 = math.tanh %428 : vector<1x32xf32>
    %430 = vector.extract_strided_slice %415 {offsets = [0, 96], sizes = [1, 32], strides = [1, 1]} : vector<1x128xf32> to vector<1x32xf32>
    %431 = arith.negf %430 : vector<1x32xf32>
    %432 = math.exp %431 : vector<1x32xf32>
    %cst_87 = arith.constant 1.000000e+00 : f32
    %433 = vector.broadcast %cst_87 : f32 to vector<1x32xf32>
    %434 = arith.addf %433, %432 : vector<1x32xf32>
    %435 = arith.divf %433, %434 : vector<1x32xf32>
    %436 = arith.mulf %427, %409 : vector<1x32xf32>
    %437 = arith.mulf %421, %429 : vector<1x32xf32>
    %438 = arith.addf %436, %437 : vector<1x32xf32>
    %439 = math.tanh %438 : vector<1x32xf32>
    %440 = arith.mulf %435, %439 : vector<1x32xf32>
    %441 = vector.extract_strided_slice %266 {offsets = [6, 0, 0], sizes = [1, 1, 128], strides = [1, 1, 1]} : vector<8x1x128xf32> to vector<1x1x128xf32>
    %442 = vector.shape_cast %441 : vector<1x1x128xf32> to vector<1x128xf32>
    %cst_88 = arith.constant dense<0.000000e+00> : vector<1x128xf32>
    %443 = tpu.matmul %440, %5, %cst_88 {dimension_numbers = #tpu.dot_dimension_numbers<[1], [0], [0], [1], [0, 0, 1, 1], [], []>} : vector<1x32xf32>, vector<32x128xf32>, vector<1x128xf32> -> vector<1x128xf32>
    %444 = arith.addf %442, %443 : vector<1x128xf32>
    %445 = vector.extract_strided_slice %444 {offsets = [0, 0], sizes = [1, 32], strides = [1, 1]} : vector<1x128xf32> to vector<1x32xf32>
    %446 = arith.negf %445 : vector<1x32xf32>
    %447 = math.exp %446 : vector<1x32xf32>
    %cst_89 = arith.constant 1.000000e+00 : f32
    %448 = vector.broadcast %cst_89 : f32 to vector<1x32xf32>
    %449 = arith.addf %448, %447 : vector<1x32xf32>
    %450 = arith.divf %448, %449 : vector<1x32xf32>
    %451 = vector.extract_strided_slice %444 {offsets = [0, 32], sizes = [1, 32], strides = [1, 1]} : vector<1x128xf32> to vector<1x32xf32>
    %452 = arith.negf %451 : vector<1x32xf32>
    %453 = math.exp %452 : vector<1x32xf32>
    %cst_90 = arith.constant 1.000000e+00 : f32
    %454 = vector.broadcast %cst_90 : f32 to vector<1x32xf32>
    %455 = arith.addf %454, %453 : vector<1x32xf32>
    %456 = arith.divf %454, %455 : vector<1x32xf32>
    %457 = vector.extract_strided_slice %444 {offsets = [0, 64], sizes = [1, 32], strides = [1, 1]} : vector<1x128xf32> to vector<1x32xf32>
    %458 = math.tanh %457 : vector<1x32xf32>
    %459 = vector.extract_strided_slice %444 {offsets = [0, 96], sizes = [1, 32], strides = [1, 1]} : vector<1x128xf32> to vector<1x32xf32>
    %460 = arith.negf %459 : vector<1x32xf32>
    %461 = math.exp %460 : vector<1x32xf32>
    %cst_91 = arith.constant 1.000000e+00 : f32
    %462 = vector.broadcast %cst_91 : f32 to vector<1x32xf32>
    %463 = arith.addf %462, %461 : vector<1x32xf32>
    %464 = arith.divf %462, %463 : vector<1x32xf32>
    %465 = arith.mulf %456, %438 : vector<1x32xf32>
    %466 = arith.mulf %450, %458 : vector<1x32xf32>
    %467 = arith.addf %465, %466 : vector<1x32xf32>
    %468 = math.tanh %467 : vector<1x32xf32>
    %469 = arith.mulf %464, %468 : vector<1x32xf32>
    %470 = vector.extract_strided_slice %266 {offsets = [7, 0, 0], sizes = [1, 1, 128], strides = [1, 1, 1]} : vector<8x1x128xf32> to vector<1x1x128xf32>
    %471 = vector.shape_cast %470 : vector<1x1x128xf32> to vector<1x128xf32>
    %cst_92 = arith.constant dense<0.000000e+00> : vector<1x128xf32>
    %472 = tpu.matmul %469, %5, %cst_92 {dimension_numbers = #tpu.dot_dimension_numbers<[1], [0], [0], [1], [0, 0, 1, 1], [], []>} : vector<1x32xf32>, vector<32x128xf32>, vector<1x128xf32> -> vector<1x128xf32>
    %473 = arith.addf %471, %472 : vector<1x128xf32>
    %474 = vector.extract_strided_slice %473 {offsets = [0, 0], sizes = [1, 32], strides = [1, 1]} : vector<1x128xf32> to vector<1x32xf32>
    %475 = arith.negf %474 : vector<1x32xf32>
    %476 = math.exp %475 : vector<1x32xf32>
    %cst_93 = arith.constant 1.000000e+00 : f32
    %477 = vector.broadcast %cst_93 : f32 to vector<1x32xf32>
    %478 = arith.addf %477, %476 : vector<1x32xf32>
    %479 = arith.divf %477, %478 : vector<1x32xf32>
    %480 = vector.extract_strided_slice %473 {offsets = [0, 32], sizes = [1, 32], strides = [1, 1]} : vector<1x128xf32> to vector<1x32xf32>
    %481 = arith.negf %480 : vector<1x32xf32>
    %482 = math.exp %481 : vector<1x32xf32>
    %cst_94 = arith.constant 1.000000e+00 : f32
    %483 = vector.broadcast %cst_94 : f32 to vector<1x32xf32>
    %484 = arith.addf %483, %482 : vector<1x32xf32>
    %485 = arith.divf %483, %484 : vector<1x32xf32>
    %486 = vector.extract_strided_slice %473 {offsets = [0, 64], sizes = [1, 32], strides = [1, 1]} : vector<1x128xf32> to vector<1x32xf32>
    %487 = math.tanh %486 : vector<1x32xf32>
    %488 = vector.extract_strided_slice %473 {offsets = [0, 96], sizes = [1, 32], strides = [1, 1]} : vector<1x128xf32> to vector<1x32xf32>
    %489 = arith.negf %488 : vector<1x32xf32>
    %490 = math.exp %489 : vector<1x32xf32>
    %cst_95 = arith.constant 1.000000e+00 : f32
    %491 = vector.broadcast %cst_95 : f32 to vector<1x32xf32>
    %492 = arith.addf %491, %490 : vector<1x32xf32>
    %493 = arith.divf %491, %492 : vector<1x32xf32>
    %494 = arith.mulf %485, %467 : vector<1x32xf32>
    %495 = arith.mulf %479, %487 : vector<1x32xf32>
    %496 = arith.addf %494, %495 : vector<1x32xf32>
    %497 = math.tanh %496 : vector<1x32xf32>
    %498 = arith.mulf %493, %497 : vector<1x32xf32>
    %cst_96 = arith.constant dense<0.000000e+00> : vector<1x128xf32>
    %499 = tpu.matmul %498, %7, %cst_96 {dimension_numbers = #tpu.dot_dimension_numbers<[1], [0], [0], [1], [0, 0, 1, 1], [], []>} : vector<1x32xf32>, vector<32x128xf32>, vector<1x128xf32> -> vector<1x128xf32>
    %500 = arith.addf %499, %9 : vector<1x128xf32>
    %cst_97 = arith.constant dense<0.000000e+00> : vector<1x128xf32>
    %501 = tpu.matmul %15, %8, %cst_97 {dimension_numbers = #tpu.dot_dimension_numbers<[1], [0], [0], [1], [0, 0, 1, 1], [], []>} : vector<1x32xf32>, vector<32x128xf32>, vector<1x128xf32> -> vector<1x128xf32>
    %502 = arith.addf %500, %501 : vector<1x128xf32>
    %503 = vector.extract_strided_slice %502 {offsets = [0, 0], sizes = [1, 32], strides = [1, 1]} : vector<1x128xf32> to vector<1x32xf32>
    %504 = arith.negf %503 : vector<1x32xf32>
    %505 = math.exp %504 : vector<1x32xf32>
    %cst_98 = arith.constant 1.000000e+00 : f32
    %506 = vector.broadcast %cst_98 : f32 to vector<1x32xf32>
    %507 = arith.addf %506, %505 : vector<1x32xf32>
    %508 = arith.divf %506, %507 : vector<1x32xf32>
    %509 = vector.extract_strided_slice %502 {offsets = [0, 32], sizes = [1, 32], strides = [1, 1]} : vector<1x128xf32> to vector<1x32xf32>
    %510 = arith.negf %509 : vector<1x32xf32>
    %511 = math.exp %510 : vector<1x32xf32>
    %cst_99 = arith.constant 1.000000e+00 : f32
    %512 = vector.broadcast %cst_99 : f32 to vector<1x32xf32>
    %513 = arith.addf %512, %511 : vector<1x32xf32>
    %514 = arith.divf %512, %513 : vector<1x32xf32>
    %515 = vector.extract_strided_slice %502 {offsets = [0, 64], sizes = [1, 32], strides = [1, 1]} : vector<1x128xf32> to vector<1x32xf32>
    %516 = math.tanh %515 : vector<1x32xf32>
    %517 = vector.extract_strided_slice %502 {offsets = [0, 96], sizes = [1, 32], strides = [1, 1]} : vector<1x128xf32> to vector<1x32xf32>
    %518 = arith.negf %517 : vector<1x32xf32>
    %519 = math.exp %518 : vector<1x32xf32>
    %cst_100 = arith.constant 1.000000e+00 : f32
    %520 = vector.broadcast %cst_100 : f32 to vector<1x32xf32>
    %521 = arith.addf %520, %519 : vector<1x32xf32>
    %522 = arith.divf %520, %521 : vector<1x32xf32>
    %523 = arith.mulf %514, %15 : vector<1x32xf32>
    %524 = arith.mulf %508, %516 : vector<1x32xf32>
    %525 = arith.addf %523, %524 : vector<1x32xf32>
    %526 = math.tanh %525 : vector<1x32xf32>
    %527 = arith.mulf %522, %526 : vector<1x32xf32>
    %cst_101 = arith.constant dense<0.000000e+00> : vector<1x128xf32>
    %528 = tpu.matmul %527, %8, %cst_101 {dimension_numbers = #tpu.dot_dimension_numbers<[1], [0], [0], [1], [0, 0, 1, 1], [], []>} : vector<1x32xf32>, vector<32x128xf32>, vector<1x128xf32> -> vector<1x128xf32>
    %529 = arith.addf %500, %528 : vector<1x128xf32>
    %530 = vector.extract_strided_slice %529 {offsets = [0, 0], sizes = [1, 32], strides = [1, 1]} : vector<1x128xf32> to vector<1x32xf32>
    %531 = arith.negf %530 : vector<1x32xf32>
    %532 = math.exp %531 : vector<1x32xf32>
    %cst_102 = arith.constant 1.000000e+00 : f32
    %533 = vector.broadcast %cst_102 : f32 to vector<1x32xf32>
    %534 = arith.addf %533, %532 : vector<1x32xf32>
    %535 = arith.divf %533, %534 : vector<1x32xf32>
    %536 = vector.extract_strided_slice %529 {offsets = [0, 32], sizes = [1, 32], strides = [1, 1]} : vector<1x128xf32> to vector<1x32xf32>
    %537 = arith.negf %536 : vector<1x32xf32>
    %538 = math.exp %537 : vector<1x32xf32>
    %cst_103 = arith.constant 1.000000e+00 : f32
    %539 = vector.broadcast %cst_103 : f32 to vector<1x32xf32>
    %540 = arith.addf %539, %538 : vector<1x32xf32>
    %541 = arith.divf %539, %540 : vector<1x32xf32>
    %542 = vector.extract_strided_slice %529 {offsets = [0, 64], sizes = [1, 32], strides = [1, 1]} : vector<1x128xf32> to vector<1x32xf32>
    %543 = math.tanh %542 : vector<1x32xf32>
    %544 = vector.extract_strided_slice %529 {offsets = [0, 96], sizes = [1, 32], strides = [1, 1]} : vector<1x128xf32> to vector<1x32xf32>
    %545 = arith.negf %544 : vector<1x32xf32>
    %546 = math.exp %545 : vector<1x32xf32>
    %cst_104 = arith.constant 1.000000e+00 : f32
    %547 = vector.broadcast %cst_104 : f32 to vector<1x32xf32>
    %548 = arith.addf %547, %546 : vector<1x32xf32>
    %549 = arith.divf %547, %548 : vector<1x32xf32>
    %550 = arith.mulf %541, %525 : vector<1x32xf32>
    %551 = arith.mulf %535, %543 : vector<1x32xf32>
    %552 = arith.addf %550, %551 : vector<1x32xf32>
    %553 = math.tanh %552 : vector<1x32xf32>
    %554 = arith.mulf %549, %553 : vector<1x32xf32>
    %cst_105 = arith.constant dense<0.000000e+00> : vector<1x128xf32>
    %555 = tpu.matmul %554, %8, %cst_105 {dimension_numbers = #tpu.dot_dimension_numbers<[1], [0], [0], [1], [0, 0, 1, 1], [], []>} : vector<1x32xf32>, vector<32x128xf32>, vector<1x128xf32> -> vector<1x128xf32>
    %556 = arith.addf %500, %555 : vector<1x128xf32>
    %557 = vector.extract_strided_slice %556 {offsets = [0, 0], sizes = [1, 32], strides = [1, 1]} : vector<1x128xf32> to vector<1x32xf32>
    %558 = arith.negf %557 : vector<1x32xf32>
    %559 = math.exp %558 : vector<1x32xf32>
    %cst_106 = arith.constant 1.000000e+00 : f32
    %560 = vector.broadcast %cst_106 : f32 to vector<1x32xf32>
    %561 = arith.addf %560, %559 : vector<1x32xf32>
    %562 = arith.divf %560, %561 : vector<1x32xf32>
    %563 = vector.extract_strided_slice %556 {offsets = [0, 32], sizes = [1, 32], strides = [1, 1]} : vector<1x128xf32> to vector<1x32xf32>
    %564 = arith.negf %563 : vector<1x32xf32>
    %565 = math.exp %564 : vector<1x32xf32>
    %cst_107 = arith.constant 1.000000e+00 : f32
    %566 = vector.broadcast %cst_107 : f32 to vector<1x32xf32>
    %567 = arith.addf %566, %565 : vector<1x32xf32>
    %568 = arith.divf %566, %567 : vector<1x32xf32>
    %569 = vector.extract_strided_slice %556 {offsets = [0, 64], sizes = [1, 32], strides = [1, 1]} : vector<1x128xf32> to vector<1x32xf32>
    %570 = math.tanh %569 : vector<1x32xf32>
    %571 = vector.extract_strided_slice %556 {offsets = [0, 96], sizes = [1, 32], strides = [1, 1]} : vector<1x128xf32> to vector<1x32xf32>
    %572 = arith.negf %571 : vector<1x32xf32>
    %573 = math.exp %572 : vector<1x32xf32>
    %cst_108 = arith.constant 1.000000e+00 : f32
    %574 = vector.broadcast %cst_108 : f32 to vector<1x32xf32>
    %575 = arith.addf %574, %573 : vector<1x32xf32>
    %576 = arith.divf %574, %575 : vector<1x32xf32>
    %577 = arith.mulf %568, %552 : vector<1x32xf32>
    %578 = arith.mulf %562, %570 : vector<1x32xf32>
    %579 = arith.addf %577, %578 : vector<1x32xf32>
    %580 = math.tanh %579 : vector<1x32xf32>
    %581 = arith.mulf %576, %580 : vector<1x32xf32>
    %cst_109 = arith.constant dense<0.000000e+00> : vector<1x128xf32>
    %582 = tpu.matmul %581, %8, %cst_109 {dimension_numbers = #tpu.dot_dimension_numbers<[1], [0], [0], [1], [0, 0, 1, 1], [], []>} : vector<1x32xf32>, vector<32x128xf32>, vector<1x128xf32> -> vector<1x128xf32>
    %583 = arith.addf %500, %582 : vector<1x128xf32>
    %584 = vector.extract_strided_slice %583 {offsets = [0, 0], sizes = [1, 32], strides = [1, 1]} : vector<1x128xf32> to vector<1x32xf32>
    %585 = arith.negf %584 : vector<1x32xf32>
    %586 = math.exp %585 : vector<1x32xf32>
    %cst_110 = arith.constant 1.000000e+00 : f32
    %587 = vector.broadcast %cst_110 : f32 to vector<1x32xf32>
    %588 = arith.addf %587, %586 : vector<1x32xf32>
    %589 = arith.divf %587, %588 : vector<1x32xf32>
    %590 = vector.extract_strided_slice %583 {offsets = [0, 32], sizes = [1, 32], strides = [1, 1]} : vector<1x128xf32> to vector<1x32xf32>
    %591 = arith.negf %590 : vector<1x32xf32>
    %592 = math.exp %591 : vector<1x32xf32>
    %cst_111 = arith.constant 1.000000e+00 : f32
    %593 = vector.broadcast %cst_111 : f32 to vector<1x32xf32>
    %594 = arith.addf %593, %592 : vector<1x32xf32>
    %595 = arith.divf %593, %594 : vector<1x32xf32>
    %596 = vector.extract_strided_slice %583 {offsets = [0, 64], sizes = [1, 32], strides = [1, 1]} : vector<1x128xf32> to vector<1x32xf32>
    %597 = math.tanh %596 : vector<1x32xf32>
    %598 = vector.extract_strided_slice %583 {offsets = [0, 96], sizes = [1, 32], strides = [1, 1]} : vector<1x128xf32> to vector<1x32xf32>
    %599 = arith.negf %598 : vector<1x32xf32>
    %600 = math.exp %599 : vector<1x32xf32>
    %cst_112 = arith.constant 1.000000e+00 : f32
    %601 = vector.broadcast %cst_112 : f32 to vector<1x32xf32>
    %602 = arith.addf %601, %600 : vector<1x32xf32>
    %603 = arith.divf %601, %602 : vector<1x32xf32>
    %604 = arith.mulf %595, %579 : vector<1x32xf32>
    %605 = arith.mulf %589, %597 : vector<1x32xf32>
    %606 = arith.addf %604, %605 : vector<1x32xf32>
    %607 = math.tanh %606 : vector<1x32xf32>
    %608 = arith.mulf %603, %607 : vector<1x32xf32>
    %cst_113 = arith.constant dense<0.000000e+00> : vector<1x128xf32>
    %609 = tpu.matmul %608, %8, %cst_113 {dimension_numbers = #tpu.dot_dimension_numbers<[1], [0], [0], [1], [0, 0, 1, 1], [], []>} : vector<1x32xf32>, vector<32x128xf32>, vector<1x128xf32> -> vector<1x128xf32>
    %610 = arith.addf %500, %609 : vector<1x128xf32>
    %611 = vector.extract_strided_slice %610 {offsets = [0, 0], sizes = [1, 32], strides = [1, 1]} : vector<1x128xf32> to vector<1x32xf32>
    %612 = arith.negf %611 : vector<1x32xf32>
    %613 = math.exp %612 : vector<1x32xf32>
    %cst_114 = arith.constant 1.000000e+00 : f32
    %614 = vector.broadcast %cst_114 : f32 to vector<1x32xf32>
    %615 = arith.addf %614, %613 : vector<1x32xf32>
    %616 = arith.divf %614, %615 : vector<1x32xf32>
    %617 = vector.extract_strided_slice %610 {offsets = [0, 32], sizes = [1, 32], strides = [1, 1]} : vector<1x128xf32> to vector<1x32xf32>
    %618 = arith.negf %617 : vector<1x32xf32>
    %619 = math.exp %618 : vector<1x32xf32>
    %cst_115 = arith.constant 1.000000e+00 : f32
    %620 = vector.broadcast %cst_115 : f32 to vector<1x32xf32>
    %621 = arith.addf %620, %619 : vector<1x32xf32>
    %622 = arith.divf %620, %621 : vector<1x32xf32>
    %623 = vector.extract_strided_slice %610 {offsets = [0, 64], sizes = [1, 32], strides = [1, 1]} : vector<1x128xf32> to vector<1x32xf32>
    %624 = math.tanh %623 : vector<1x32xf32>
    %625 = vector.extract_strided_slice %610 {offsets = [0, 96], sizes = [1, 32], strides = [1, 1]} : vector<1x128xf32> to vector<1x32xf32>
    %626 = arith.negf %625 : vector<1x32xf32>
    %627 = math.exp %626 : vector<1x32xf32>
    %cst_116 = arith.constant 1.000000e+00 : f32
    %628 = vector.broadcast %cst_116 : f32 to vector<1x32xf32>
    %629 = arith.addf %628, %627 : vector<1x32xf32>
    %630 = arith.divf %628, %629 : vector<1x32xf32>
    %631 = arith.mulf %622, %606 : vector<1x32xf32>
    %632 = arith.mulf %616, %624 : vector<1x32xf32>
    %633 = arith.addf %631, %632 : vector<1x32xf32>
    %634 = math.tanh %633 : vector<1x32xf32>
    %635 = arith.mulf %630, %634 : vector<1x32xf32>
    %cst_117 = arith.constant dense<0.000000e+00> : vector<1x128xf32>
    %636 = tpu.matmul %635, %8, %cst_117 {dimension_numbers = #tpu.dot_dimension_numbers<[1], [0], [0], [1], [0, 0, 1, 1], [], []>} : vector<1x32xf32>, vector<32x128xf32>, vector<1x128xf32> -> vector<1x128xf32>
    %637 = arith.addf %500, %636 : vector<1x128xf32>
    %638 = vector.extract_strided_slice %637 {offsets = [0, 0], sizes = [1, 32], strides = [1, 1]} : vector<1x128xf32> to vector<1x32xf32>
    %639 = arith.negf %638 : vector<1x32xf32>
    %640 = math.exp %639 : vector<1x32xf32>
    %cst_118 = arith.constant 1.000000e+00 : f32
    %641 = vector.broadcast %cst_118 : f32 to vector<1x32xf32>
    %642 = arith.addf %641, %640 : vector<1x32xf32>
    %643 = arith.divf %641, %642 : vector<1x32xf32>
    %644 = vector.extract_strided_slice %637 {offsets = [0, 32], sizes = [1, 32], strides = [1, 1]} : vector<1x128xf32> to vector<1x32xf32>
    %645 = arith.negf %644 : vector<1x32xf32>
    %646 = math.exp %645 : vector<1x32xf32>
    %cst_119 = arith.constant 1.000000e+00 : f32
    %647 = vector.broadcast %cst_119 : f32 to vector<1x32xf32>
    %648 = arith.addf %647, %646 : vector<1x32xf32>
    %649 = arith.divf %647, %648 : vector<1x32xf32>
    %650 = vector.extract_strided_slice %637 {offsets = [0, 64], sizes = [1, 32], strides = [1, 1]} : vector<1x128xf32> to vector<1x32xf32>
    %651 = math.tanh %650 : vector<1x32xf32>
    %652 = vector.extract_strided_slice %637 {offsets = [0, 96], sizes = [1, 32], strides = [1, 1]} : vector<1x128xf32> to vector<1x32xf32>
    %653 = arith.negf %652 : vector<1x32xf32>
    %654 = math.exp %653 : vector<1x32xf32>
    %cst_120 = arith.constant 1.000000e+00 : f32
    %655 = vector.broadcast %cst_120 : f32 to vector<1x32xf32>
    %656 = arith.addf %655, %654 : vector<1x32xf32>
    %657 = arith.divf %655, %656 : vector<1x32xf32>
    %658 = arith.mulf %649, %633 : vector<1x32xf32>
    %659 = arith.mulf %643, %651 : vector<1x32xf32>
    %660 = arith.addf %658, %659 : vector<1x32xf32>
    %661 = math.tanh %660 : vector<1x32xf32>
    %662 = arith.mulf %657, %661 : vector<1x32xf32>
    %cst_121 = arith.constant dense<0.000000e+00> : vector<1x128xf32>
    %663 = tpu.matmul %662, %8, %cst_121 {dimension_numbers = #tpu.dot_dimension_numbers<[1], [0], [0], [1], [0, 0, 1, 1], [], []>} : vector<1x32xf32>, vector<32x128xf32>, vector<1x128xf32> -> vector<1x128xf32>
    %664 = arith.addf %500, %663 : vector<1x128xf32>
    %665 = vector.extract_strided_slice %664 {offsets = [0, 0], sizes = [1, 32], strides = [1, 1]} : vector<1x128xf32> to vector<1x32xf32>
    %666 = arith.negf %665 : vector<1x32xf32>
    %667 = math.exp %666 : vector<1x32xf32>
    %cst_122 = arith.constant 1.000000e+00 : f32
    %668 = vector.broadcast %cst_122 : f32 to vector<1x32xf32>
    %669 = arith.addf %668, %667 : vector<1x32xf32>
    %670 = arith.divf %668, %669 : vector<1x32xf32>
    %671 = vector.extract_strided_slice %664 {offsets = [0, 32], sizes = [1, 32], strides = [1, 1]} : vector<1x128xf32> to vector<1x32xf32>
    %672 = arith.negf %671 : vector<1x32xf32>
    %673 = math.exp %672 : vector<1x32xf32>
    %cst_123 = arith.constant 1.000000e+00 : f32
    %674 = vector.broadcast %cst_123 : f32 to vector<1x32xf32>
    %675 = arith.addf %674, %673 : vector<1x32xf32>
    %676 = arith.divf %674, %675 : vector<1x32xf32>
    %677 = vector.extract_strided_slice %664 {offsets = [0, 64], sizes = [1, 32], strides = [1, 1]} : vector<1x128xf32> to vector<1x32xf32>
    %678 = math.tanh %677 : vector<1x32xf32>
    %679 = vector.extract_strided_slice %664 {offsets = [0, 96], sizes = [1, 32], strides = [1, 1]} : vector<1x128xf32> to vector<1x32xf32>
    %680 = arith.negf %679 : vector<1x32xf32>
    %681 = math.exp %680 : vector<1x32xf32>
    %cst_124 = arith.constant 1.000000e+00 : f32
    %682 = vector.broadcast %cst_124 : f32 to vector<1x32xf32>
    %683 = arith.addf %682, %681 : vector<1x32xf32>
    %684 = arith.divf %682, %683 : vector<1x32xf32>
    %685 = arith.mulf %676, %660 : vector<1x32xf32>
    %686 = arith.mulf %670, %678 : vector<1x32xf32>
    %687 = arith.addf %685, %686 : vector<1x32xf32>
    %688 = math.tanh %687 : vector<1x32xf32>
    %689 = arith.mulf %684, %688 : vector<1x32xf32>
    %cst_125 = arith.constant dense<0.000000e+00> : vector<1x128xf32>
    %690 = tpu.matmul %689, %8, %cst_125 {dimension_numbers = #tpu.dot_dimension_numbers<[1], [0], [0], [1], [0, 0, 1, 1], [], []>} : vector<1x32xf32>, vector<32x128xf32>, vector<1x128xf32> -> vector<1x128xf32>
    %691 = arith.addf %500, %690 : vector<1x128xf32>
    %692 = vector.extract_strided_slice %691 {offsets = [0, 0], sizes = [1, 32], strides = [1, 1]} : vector<1x128xf32> to vector<1x32xf32>
    %693 = arith.negf %692 : vector<1x32xf32>
    %694 = math.exp %693 : vector<1x32xf32>
    %cst_126 = arith.constant 1.000000e+00 : f32
    %695 = vector.broadcast %cst_126 : f32 to vector<1x32xf32>
    %696 = arith.addf %695, %694 : vector<1x32xf32>
    %697 = arith.divf %695, %696 : vector<1x32xf32>
    %698 = vector.extract_strided_slice %691 {offsets = [0, 32], sizes = [1, 32], strides = [1, 1]} : vector<1x128xf32> to vector<1x32xf32>
    %699 = arith.negf %698 : vector<1x32xf32>
    %700 = math.exp %699 : vector<1x32xf32>
    %cst_127 = arith.constant 1.000000e+00 : f32
    %701 = vector.broadcast %cst_127 : f32 to vector<1x32xf32>
    %702 = arith.addf %701, %700 : vector<1x32xf32>
    %703 = arith.divf %701, %702 : vector<1x32xf32>
    %704 = vector.extract_strided_slice %691 {offsets = [0, 64], sizes = [1, 32], strides = [1, 1]} : vector<1x128xf32> to vector<1x32xf32>
    %705 = math.tanh %704 : vector<1x32xf32>
    %706 = vector.extract_strided_slice %691 {offsets = [0, 96], sizes = [1, 32], strides = [1, 1]} : vector<1x128xf32> to vector<1x32xf32>
    %707 = arith.negf %706 : vector<1x32xf32>
    %708 = math.exp %707 : vector<1x32xf32>
    %cst_128 = arith.constant 1.000000e+00 : f32
    %709 = vector.broadcast %cst_128 : f32 to vector<1x32xf32>
    %710 = arith.addf %709, %708 : vector<1x32xf32>
    %711 = arith.divf %709, %710 : vector<1x32xf32>
    %712 = arith.mulf %703, %687 : vector<1x32xf32>
    %713 = arith.mulf %697, %705 : vector<1x32xf32>
    %714 = arith.addf %712, %713 : vector<1x32xf32>
    %715 = math.tanh %714 : vector<1x32xf32>
    %716 = arith.mulf %711, %715 : vector<1x32xf32>
    %717 = vector.shape_cast %527 : vector<1x32xf32> to vector<1x1x32xf32>
    %718 = vector.shape_cast %554 : vector<1x32xf32> to vector<1x1x32xf32>
    %719 = vector.shape_cast %581 : vector<1x32xf32> to vector<1x1x32xf32>
    %720 = vector.shape_cast %608 : vector<1x32xf32> to vector<1x1x32xf32>
    %721 = vector.shape_cast %635 : vector<1x32xf32> to vector<1x1x32xf32>
    %722 = vector.shape_cast %662 : vector<1x32xf32> to vector<1x1x32xf32>
    %723 = vector.shape_cast %689 : vector<1x32xf32> to vector<1x1x32xf32>
    %724 = vector.shape_cast %716 : vector<1x32xf32> to vector<1x1x32xf32>
    %725 = tpu.concatenate %717, %718, %719, %720, %721, %722, %723, %724 in 0 : vector<1x1x32xf32>, vector<1x1x32xf32>, vector<1x1x32xf32>, vector<1x1x32xf32>, vector<1x1x32xf32>, vector<1x1x32xf32>, vector<1x1x32xf32>, vector<1x1x32xf32> -> vector<8x1x32xf32>
    %726 = vector.shape_cast %725 : vector<8x1x32xf32> to vector<8x32xf32>
    %cst_129 = arith.constant dense<0.000000e+00> : vector<8x128xf32>
    %727 = tpu.matmul %726, %10, %cst_129 {dimension_numbers = #tpu.dot_dimension_numbers<[1], [0], [0], [1], [0, 0, 1, 1], [], []>} : vector<8x32xf32>, vector<32x128xf32>, vector<8x128xf32> -> vector<8x128xf32>
    %728 = vector.broadcast %12 : vector<1x128xf32> to vector<8x128xf32>
    %729 = arith.addf %727, %728 : vector<8x128xf32>
    %730 = vector.shape_cast %729 : vector<8x128xf32> to vector<8x1x128xf32>
    %731 = vector.extract_strided_slice %730 {offsets = [0, 0, 0], sizes = [1, 1, 128], strides = [1, 1, 1]} : vector<8x1x128xf32> to vector<1x1x128xf32>
    %732 = vector.shape_cast %731 : vector<1x1x128xf32> to vector<1x128xf32>
    %cst_130 = arith.constant dense<0.000000e+00> : vector<1x128xf32>
    %733 = tpu.matmul %15, %11, %cst_130 {dimension_numbers = #tpu.dot_dimension_numbers<[1], [0], [0], [1], [0, 0, 1, 1], [], []>} : vector<1x32xf32>, vector<32x128xf32>, vector<1x128xf32> -> vector<1x128xf32>
    %734 = arith.addf %732, %733 : vector<1x128xf32>
    %735 = vector.extract_strided_slice %734 {offsets = [0, 0], sizes = [1, 32], strides = [1, 1]} : vector<1x128xf32> to vector<1x32xf32>
    %736 = arith.negf %735 : vector<1x32xf32>
    %737 = math.exp %736 : vector<1x32xf32>
    %cst_131 = arith.constant 1.000000e+00 : f32
    %738 = vector.broadcast %cst_131 : f32 to vector<1x32xf32>
    %739 = arith.addf %738, %737 : vector<1x32xf32>
    %740 = arith.divf %738, %739 : vector<1x32xf32>
    %741 = vector.extract_strided_slice %734 {offsets = [0, 32], sizes = [1, 32], strides = [1, 1]} : vector<1x128xf32> to vector<1x32xf32>
    %742 = arith.negf %741 : vector<1x32xf32>
    %743 = math.exp %742 : vector<1x32xf32>
    %cst_132 = arith.constant 1.000000e+00 : f32
    %744 = vector.broadcast %cst_132 : f32 to vector<1x32xf32>
    %745 = arith.addf %744, %743 : vector<1x32xf32>
    %746 = arith.divf %744, %745 : vector<1x32xf32>
    %747 = vector.extract_strided_slice %734 {offsets = [0, 64], sizes = [1, 32], strides = [1, 1]} : vector<1x128xf32> to vector<1x32xf32>
    %748 = math.tanh %747 : vector<1x32xf32>
    %749 = vector.extract_strided_slice %734 {offsets = [0, 96], sizes = [1, 32], strides = [1, 1]} : vector<1x128xf32> to vector<1x32xf32>
    %750 = arith.negf %749 : vector<1x32xf32>
    %751 = math.exp %750 : vector<1x32xf32>
    %cst_133 = arith.constant 1.000000e+00 : f32
    %752 = vector.broadcast %cst_133 : f32 to vector<1x32xf32>
    %753 = arith.addf %752, %751 : vector<1x32xf32>
    %754 = arith.divf %752, %753 : vector<1x32xf32>
    %755 = arith.mulf %746, %15 : vector<1x32xf32>
    %756 = arith.mulf %740, %748 : vector<1x32xf32>
    %757 = arith.addf %755, %756 : vector<1x32xf32>
    %758 = math.tanh %757 : vector<1x32xf32>
    %759 = arith.mulf %754, %758 : vector<1x32xf32>
    %760 = vector.extract_strided_slice %730 {offsets = [1, 0, 0], sizes = [1, 1, 128], strides = [1, 1, 1]} : vector<8x1x128xf32> to vector<1x1x128xf32>
    %761 = vector.shape_cast %760 : vector<1x1x128xf32> to vector<1x128xf32>
    %cst_134 = arith.constant dense<0.000000e+00> : vector<1x128xf32>
    %762 = tpu.matmul %759, %11, %cst_134 {dimension_numbers = #tpu.dot_dimension_numbers<[1], [0], [0], [1], [0, 0, 1, 1], [], []>} : vector<1x32xf32>, vector<32x128xf32>, vector<1x128xf32> -> vector<1x128xf32>
    %763 = arith.addf %761, %762 : vector<1x128xf32>
    %764 = vector.extract_strided_slice %763 {offsets = [0, 0], sizes = [1, 32], strides = [1, 1]} : vector<1x128xf32> to vector<1x32xf32>
    %765 = arith.negf %764 : vector<1x32xf32>
    %766 = math.exp %765 : vector<1x32xf32>
    %cst_135 = arith.constant 1.000000e+00 : f32
    %767 = vector.broadcast %cst_135 : f32 to vector<1x32xf32>
    %768 = arith.addf %767, %766 : vector<1x32xf32>
    %769 = arith.divf %767, %768 : vector<1x32xf32>
    %770 = vector.extract_strided_slice %763 {offsets = [0, 32], sizes = [1, 32], strides = [1, 1]} : vector<1x128xf32> to vector<1x32xf32>
    %771 = arith.negf %770 : vector<1x32xf32>
    %772 = math.exp %771 : vector<1x32xf32>
    %cst_136 = arith.constant 1.000000e+00 : f32
    %773 = vector.broadcast %cst_136 : f32 to vector<1x32xf32>
    %774 = arith.addf %773, %772 : vector<1x32xf32>
    %775 = arith.divf %773, %774 : vector<1x32xf32>
    %776 = vector.extract_strided_slice %763 {offsets = [0, 64], sizes = [1, 32], strides = [1, 1]} : vector<1x128xf32> to vector<1x32xf32>
    %777 = math.tanh %776 : vector<1x32xf32>
    %778 = vector.extract_strided_slice %763 {offsets = [0, 96], sizes = [1, 32], strides = [1, 1]} : vector<1x128xf32> to vector<1x32xf32>
    %779 = arith.negf %778 : vector<1x32xf32>
    %780 = math.exp %779 : vector<1x32xf32>
    %cst_137 = arith.constant 1.000000e+00 : f32
    %781 = vector.broadcast %cst_137 : f32 to vector<1x32xf32>
    %782 = arith.addf %781, %780 : vector<1x32xf32>
    %783 = arith.divf %781, %782 : vector<1x32xf32>
    %784 = arith.mulf %775, %757 : vector<1x32xf32>
    %785 = arith.mulf %769, %777 : vector<1x32xf32>
    %786 = arith.addf %784, %785 : vector<1x32xf32>
    %787 = math.tanh %786 : vector<1x32xf32>
    %788 = arith.mulf %783, %787 : vector<1x32xf32>
    %789 = vector.extract_strided_slice %730 {offsets = [2, 0, 0], sizes = [1, 1, 128], strides = [1, 1, 1]} : vector<8x1x128xf32> to vector<1x1x128xf32>
    %790 = vector.shape_cast %789 : vector<1x1x128xf32> to vector<1x128xf32>
    %cst_138 = arith.constant dense<0.000000e+00> : vector<1x128xf32>
    %791 = tpu.matmul %788, %11, %cst_138 {dimension_numbers = #tpu.dot_dimension_numbers<[1], [0], [0], [1], [0, 0, 1, 1], [], []>} : vector<1x32xf32>, vector<32x128xf32>, vector<1x128xf32> -> vector<1x128xf32>
    %792 = arith.addf %790, %791 : vector<1x128xf32>
    %793 = vector.extract_strided_slice %792 {offsets = [0, 0], sizes = [1, 32], strides = [1, 1]} : vector<1x128xf32> to vector<1x32xf32>
    %794 = arith.negf %793 : vector<1x32xf32>
    %795 = math.exp %794 : vector<1x32xf32>
    %cst_139 = arith.constant 1.000000e+00 : f32
    %796 = vector.broadcast %cst_139 : f32 to vector<1x32xf32>
    %797 = arith.addf %796, %795 : vector<1x32xf32>
    %798 = arith.divf %796, %797 : vector<1x32xf32>
    %799 = vector.extract_strided_slice %792 {offsets = [0, 32], sizes = [1, 32], strides = [1, 1]} : vector<1x128xf32> to vector<1x32xf32>
    %800 = arith.negf %799 : vector<1x32xf32>
    %801 = math.exp %800 : vector<1x32xf32>
    %cst_140 = arith.constant 1.000000e+00 : f32
    %802 = vector.broadcast %cst_140 : f32 to vector<1x32xf32>
    %803 = arith.addf %802, %801 : vector<1x32xf32>
    %804 = arith.divf %802, %803 : vector<1x32xf32>
    %805 = vector.extract_strided_slice %792 {offsets = [0, 64], sizes = [1, 32], strides = [1, 1]} : vector<1x128xf32> to vector<1x32xf32>
    %806 = math.tanh %805 : vector<1x32xf32>
    %807 = vector.extract_strided_slice %792 {offsets = [0, 96], sizes = [1, 32], strides = [1, 1]} : vector<1x128xf32> to vector<1x32xf32>
    %808 = arith.negf %807 : vector<1x32xf32>
    %809 = math.exp %808 : vector<1x32xf32>
    %cst_141 = arith.constant 1.000000e+00 : f32
    %810 = vector.broadcast %cst_141 : f32 to vector<1x32xf32>
    %811 = arith.addf %810, %809 : vector<1x32xf32>
    %812 = arith.divf %810, %811 : vector<1x32xf32>
    %813 = arith.mulf %804, %786 : vector<1x32xf32>
    %814 = arith.mulf %798, %806 : vector<1x32xf32>
    %815 = arith.addf %813, %814 : vector<1x32xf32>
    %816 = math.tanh %815 : vector<1x32xf32>
    %817 = arith.mulf %812, %816 : vector<1x32xf32>
    %818 = vector.extract_strided_slice %730 {offsets = [3, 0, 0], sizes = [1, 1, 128], strides = [1, 1, 1]} : vector<8x1x128xf32> to vector<1x1x128xf32>
    %819 = vector.shape_cast %818 : vector<1x1x128xf32> to vector<1x128xf32>
    %cst_142 = arith.constant dense<0.000000e+00> : vector<1x128xf32>
    %820 = tpu.matmul %817, %11, %cst_142 {dimension_numbers = #tpu.dot_dimension_numbers<[1], [0], [0], [1], [0, 0, 1, 1], [], []>} : vector<1x32xf32>, vector<32x128xf32>, vector<1x128xf32> -> vector<1x128xf32>
    %821 = arith.addf %819, %820 : vector<1x128xf32>
    %822 = vector.extract_strided_slice %821 {offsets = [0, 0], sizes = [1, 32], strides = [1, 1]} : vector<1x128xf32> to vector<1x32xf32>
    %823 = arith.negf %822 : vector<1x32xf32>
    %824 = math.exp %823 : vector<1x32xf32>
    %cst_143 = arith.constant 1.000000e+00 : f32
    %825 = vector.broadcast %cst_143 : f32 to vector<1x32xf32>
    %826 = arith.addf %825, %824 : vector<1x32xf32>
    %827 = arith.divf %825, %826 : vector<1x32xf32>
    %828 = vector.extract_strided_slice %821 {offsets = [0, 32], sizes = [1, 32], strides = [1, 1]} : vector<1x128xf32> to vector<1x32xf32>
    %829 = arith.negf %828 : vector<1x32xf32>
    %830 = math.exp %829 : vector<1x32xf32>
    %cst_144 = arith.constant 1.000000e+00 : f32
    %831 = vector.broadcast %cst_144 : f32 to vector<1x32xf32>
    %832 = arith.addf %831, %830 : vector<1x32xf32>
    %833 = arith.divf %831, %832 : vector<1x32xf32>
    %834 = vector.extract_strided_slice %821 {offsets = [0, 64], sizes = [1, 32], strides = [1, 1]} : vector<1x128xf32> to vector<1x32xf32>
    %835 = math.tanh %834 : vector<1x32xf32>
    %836 = vector.extract_strided_slice %821 {offsets = [0, 96], sizes = [1, 32], strides = [1, 1]} : vector<1x128xf32> to vector<1x32xf32>
    %837 = arith.negf %836 : vector<1x32xf32>
    %838 = math.exp %837 : vector<1x32xf32>
    %cst_145 = arith.constant 1.000000e+00 : f32
    %839 = vector.broadcast %cst_145 : f32 to vector<1x32xf32>
    %840 = arith.addf %839, %838 : vector<1x32xf32>
    %841 = arith.divf %839, %840 : vector<1x32xf32>
    %842 = arith.mulf %833, %815 : vector<1x32xf32>
    %843 = arith.mulf %827, %835 : vector<1x32xf32>
    %844 = arith.addf %842, %843 : vector<1x32xf32>
    %845 = math.tanh %844 : vector<1x32xf32>
    %846 = arith.mulf %841, %845 : vector<1x32xf32>
    %847 = vector.extract_strided_slice %730 {offsets = [4, 0, 0], sizes = [1, 1, 128], strides = [1, 1, 1]} : vector<8x1x128xf32> to vector<1x1x128xf32>
    %848 = vector.shape_cast %847 : vector<1x1x128xf32> to vector<1x128xf32>
    %cst_146 = arith.constant dense<0.000000e+00> : vector<1x128xf32>
    %849 = tpu.matmul %846, %11, %cst_146 {dimension_numbers = #tpu.dot_dimension_numbers<[1], [0], [0], [1], [0, 0, 1, 1], [], []>} : vector<1x32xf32>, vector<32x128xf32>, vector<1x128xf32> -> vector<1x128xf32>
    %850 = arith.addf %848, %849 : vector<1x128xf32>
    %851 = vector.extract_strided_slice %850 {offsets = [0, 0], sizes = [1, 32], strides = [1, 1]} : vector<1x128xf32> to vector<1x32xf32>
    %852 = arith.negf %851 : vector<1x32xf32>
    %853 = math.exp %852 : vector<1x32xf32>
    %cst_147 = arith.constant 1.000000e+00 : f32
    %854 = vector.broadcast %cst_147 : f32 to vector<1x32xf32>
    %855 = arith.addf %854, %853 : vector<1x32xf32>
    %856 = arith.divf %854, %855 : vector<1x32xf32>
    %857 = vector.extract_strided_slice %850 {offsets = [0, 32], sizes = [1, 32], strides = [1, 1]} : vector<1x128xf32> to vector<1x32xf32>
    %858 = arith.negf %857 : vector<1x32xf32>
    %859 = math.exp %858 : vector<1x32xf32>
    %cst_148 = arith.constant 1.000000e+00 : f32
    %860 = vector.broadcast %cst_148 : f32 to vector<1x32xf32>
    %861 = arith.addf %860, %859 : vector<1x32xf32>
    %862 = arith.divf %860, %861 : vector<1x32xf32>
    %863 = vector.extract_strided_slice %850 {offsets = [0, 64], sizes = [1, 32], strides = [1, 1]} : vector<1x128xf32> to vector<1x32xf32>
    %864 = math.tanh %863 : vector<1x32xf32>
    %865 = vector.extract_strided_slice %850 {offsets = [0, 96], sizes = [1, 32], strides = [1, 1]} : vector<1x128xf32> to vector<1x32xf32>
    %866 = arith.negf %865 : vector<1x32xf32>
    %867 = math.exp %866 : vector<1x32xf32>
    %cst_149 = arith.constant 1.000000e+00 : f32
    %868 = vector.broadcast %cst_149 : f32 to vector<1x32xf32>
    %869 = arith.addf %868, %867 : vector<1x32xf32>
    %870 = arith.divf %868, %869 : vector<1x32xf32>
    %871 = arith.mulf %862, %844 : vector<1x32xf32>
    %872 = arith.mulf %856, %864 : vector<1x32xf32>
    %873 = arith.addf %871, %872 : vector<1x32xf32>
    %874 = math.tanh %873 : vector<1x32xf32>
    %875 = arith.mulf %870, %874 : vector<1x32xf32>
    %876 = vector.extract_strided_slice %730 {offsets = [5, 0, 0], sizes = [1, 1, 128], strides = [1, 1, 1]} : vector<8x1x128xf32> to vector<1x1x128xf32>
    %877 = vector.shape_cast %876 : vector<1x1x128xf32> to vector<1x128xf32>
    %cst_150 = arith.constant dense<0.000000e+00> : vector<1x128xf32>
    %878 = tpu.matmul %875, %11, %cst_150 {dimension_numbers = #tpu.dot_dimension_numbers<[1], [0], [0], [1], [0, 0, 1, 1], [], []>} : vector<1x32xf32>, vector<32x128xf32>, vector<1x128xf32> -> vector<1x128xf32>
    %879 = arith.addf %877, %878 : vector<1x128xf32>
    %880 = vector.extract_strided_slice %879 {offsets = [0, 0], sizes = [1, 32], strides = [1, 1]} : vector<1x128xf32> to vector<1x32xf32>
    %881 = arith.negf %880 : vector<1x32xf32>
    %882 = math.exp %881 : vector<1x32xf32>
    %cst_151 = arith.constant 1.000000e+00 : f32
    %883 = vector.broadcast %cst_151 : f32 to vector<1x32xf32>
    %884 = arith.addf %883, %882 : vector<1x32xf32>
    %885 = arith.divf %883, %884 : vector<1x32xf32>
    %886 = vector.extract_strided_slice %879 {offsets = [0, 32], sizes = [1, 32], strides = [1, 1]} : vector<1x128xf32> to vector<1x32xf32>
    %887 = arith.negf %886 : vector<1x32xf32>
    %888 = math.exp %887 : vector<1x32xf32>
    %cst_152 = arith.constant 1.000000e+00 : f32
    %889 = vector.broadcast %cst_152 : f32 to vector<1x32xf32>
    %890 = arith.addf %889, %888 : vector<1x32xf32>
    %891 = arith.divf %889, %890 : vector<1x32xf32>
    %892 = vector.extract_strided_slice %879 {offsets = [0, 64], sizes = [1, 32], strides = [1, 1]} : vector<1x128xf32> to vector<1x32xf32>
    %893 = math.tanh %892 : vector<1x32xf32>
    %894 = vector.extract_strided_slice %879 {offsets = [0, 96], sizes = [1, 32], strides = [1, 1]} : vector<1x128xf32> to vector<1x32xf32>
    %895 = arith.negf %894 : vector<1x32xf32>
    %896 = math.exp %895 : vector<1x32xf32>
    %cst_153 = arith.constant 1.000000e+00 : f32
    %897 = vector.broadcast %cst_153 : f32 to vector<1x32xf32>
    %898 = arith.addf %897, %896 : vector<1x32xf32>
    %899 = arith.divf %897, %898 : vector<1x32xf32>
    %900 = arith.mulf %891, %873 : vector<1x32xf32>
    %901 = arith.mulf %885, %893 : vector<1x32xf32>
    %902 = arith.addf %900, %901 : vector<1x32xf32>
    %903 = math.tanh %902 : vector<1x32xf32>
    %904 = arith.mulf %899, %903 : vector<1x32xf32>
    %905 = vector.extract_strided_slice %730 {offsets = [6, 0, 0], sizes = [1, 1, 128], strides = [1, 1, 1]} : vector<8x1x128xf32> to vector<1x1x128xf32>
    %906 = vector.shape_cast %905 : vector<1x1x128xf32> to vector<1x128xf32>
    %cst_154 = arith.constant dense<0.000000e+00> : vector<1x128xf32>
    %907 = tpu.matmul %904, %11, %cst_154 {dimension_numbers = #tpu.dot_dimension_numbers<[1], [0], [0], [1], [0, 0, 1, 1], [], []>} : vector<1x32xf32>, vector<32x128xf32>, vector<1x128xf32> -> vector<1x128xf32>
    %908 = arith.addf %906, %907 : vector<1x128xf32>
    %909 = vector.extract_strided_slice %908 {offsets = [0, 0], sizes = [1, 32], strides = [1, 1]} : vector<1x128xf32> to vector<1x32xf32>
    %910 = arith.negf %909 : vector<1x32xf32>
    %911 = math.exp %910 : vector<1x32xf32>
    %cst_155 = arith.constant 1.000000e+00 : f32
    %912 = vector.broadcast %cst_155 : f32 to vector<1x32xf32>
    %913 = arith.addf %912, %911 : vector<1x32xf32>
    %914 = arith.divf %912, %913 : vector<1x32xf32>
    %915 = vector.extract_strided_slice %908 {offsets = [0, 32], sizes = [1, 32], strides = [1, 1]} : vector<1x128xf32> to vector<1x32xf32>
    %916 = arith.negf %915 : vector<1x32xf32>
    %917 = math.exp %916 : vector<1x32xf32>
    %cst_156 = arith.constant 1.000000e+00 : f32
    %918 = vector.broadcast %cst_156 : f32 to vector<1x32xf32>
    %919 = arith.addf %918, %917 : vector<1x32xf32>
    %920 = arith.divf %918, %919 : vector<1x32xf32>
    %921 = vector.extract_strided_slice %908 {offsets = [0, 64], sizes = [1, 32], strides = [1, 1]} : vector<1x128xf32> to vector<1x32xf32>
    %922 = math.tanh %921 : vector<1x32xf32>
    %923 = vector.extract_strided_slice %908 {offsets = [0, 96], sizes = [1, 32], strides = [1, 1]} : vector<1x128xf32> to vector<1x32xf32>
    %924 = arith.negf %923 : vector<1x32xf32>
    %925 = math.exp %924 : vector<1x32xf32>
    %cst_157 = arith.constant 1.000000e+00 : f32
    %926 = vector.broadcast %cst_157 : f32 to vector<1x32xf32>
    %927 = arith.addf %926, %925 : vector<1x32xf32>
    %928 = arith.divf %926, %927 : vector<1x32xf32>
    %929 = arith.mulf %920, %902 : vector<1x32xf32>
    %930 = arith.mulf %914, %922 : vector<1x32xf32>
    %931 = arith.addf %929, %930 : vector<1x32xf32>
    %932 = math.tanh %931 : vector<1x32xf32>
    %933 = arith.mulf %928, %932 : vector<1x32xf32>
    %934 = vector.extract_strided_slice %730 {offsets = [7, 0, 0], sizes = [1, 1, 128], strides = [1, 1, 1]} : vector<8x1x128xf32> to vector<1x1x128xf32>
    %935 = vector.shape_cast %934 : vector<1x1x128xf32> to vector<1x128xf32>
    %cst_158 = arith.constant dense<0.000000e+00> : vector<1x128xf32>
    %936 = tpu.matmul %933, %11, %cst_158 {dimension_numbers = #tpu.dot_dimension_numbers<[1], [0], [0], [1], [0, 0, 1, 1], [], []>} : vector<1x32xf32>, vector<32x128xf32>, vector<1x128xf32> -> vector<1x128xf32>
    %937 = arith.addf %935, %936 : vector<1x128xf32>
    %938 = vector.extract_strided_slice %937 {offsets = [0, 0], sizes = [1, 32], strides = [1, 1]} : vector<1x128xf32> to vector<1x32xf32>
    %939 = arith.negf %938 : vector<1x32xf32>
    %940 = math.exp %939 : vector<1x32xf32>
    %cst_159 = arith.constant 1.000000e+00 : f32
    %941 = vector.broadcast %cst_159 : f32 to vector<1x32xf32>
    %942 = arith.addf %941, %940 : vector<1x32xf32>
    %943 = arith.divf %941, %942 : vector<1x32xf32>
    %944 = vector.extract_strided_slice %937 {offsets = [0, 32], sizes = [1, 32], strides = [1, 1]} : vector<1x128xf32> to vector<1x32xf32>
    %945 = arith.negf %944 : vector<1x32xf32>
    %946 = math.exp %945 : vector<1x32xf32>
    %cst_160 = arith.constant 1.000000e+00 : f32
    %947 = vector.broadcast %cst_160 : f32 to vector<1x32xf32>
    %948 = arith.addf %947, %946 : vector<1x32xf32>
    %949 = arith.divf %947, %948 : vector<1x32xf32>
    %950 = vector.extract_strided_slice %937 {offsets = [0, 64], sizes = [1, 32], strides = [1, 1]} : vector<1x128xf32> to vector<1x32xf32>
    %951 = math.tanh %950 : vector<1x32xf32>
    %952 = vector.extract_strided_slice %937 {offsets = [0, 96], sizes = [1, 32], strides = [1, 1]} : vector<1x128xf32> to vector<1x32xf32>
    %953 = arith.negf %952 : vector<1x32xf32>
    %954 = math.exp %953 : vector<1x32xf32>
    %cst_161 = arith.constant 1.000000e+00 : f32
    %955 = vector.broadcast %cst_161 : f32 to vector<1x32xf32>
    %956 = arith.addf %955, %954 : vector<1x32xf32>
    %957 = arith.divf %955, %956 : vector<1x32xf32>
    %958 = arith.mulf %949, %931 : vector<1x32xf32>
    %959 = arith.mulf %943, %951 : vector<1x32xf32>
    %960 = arith.addf %958, %959 : vector<1x32xf32>
    %961 = math.tanh %960 : vector<1x32xf32>
    %962 = arith.mulf %957, %961 : vector<1x32xf32>
    %963 = vector.shape_cast %759 : vector<1x32xf32> to vector<1x1x32xf32>
    %964 = vector.shape_cast %788 : vector<1x32xf32> to vector<1x1x32xf32>
    %965 = vector.shape_cast %817 : vector<1x32xf32> to vector<1x1x32xf32>
    %966 = vector.shape_cast %846 : vector<1x32xf32> to vector<1x1x32xf32>
    %967 = vector.shape_cast %875 : vector<1x32xf32> to vector<1x1x32xf32>
    %968 = vector.shape_cast %904 : vector<1x32xf32> to vector<1x1x32xf32>
    %969 = vector.shape_cast %933 : vector<1x32xf32> to vector<1x1x32xf32>
    %970 = vector.shape_cast %962 : vector<1x32xf32> to vector<1x1x32xf32>
    %971 = tpu.concatenate %963, %964, %965, %966, %967, %968, %969, %970 in 1 : vector<1x1x32xf32>, vector<1x1x32xf32>, vector<1x1x32xf32>, vector<1x1x32xf32>, vector<1x1x32xf32>, vector<1x1x32xf32>, vector<1x1x32xf32>, vector<1x1x32xf32> -> vector<1x8x32xf32>
    %972 = vector.shape_cast %971 : vector<1x8x32xf32> to vector<8x32xf32>
    %cst_162 = arith.constant dense<0.000000e+00> : vector<8x8xf32>
    %973 = tpu.matmul %972, %13, %cst_162 {dimension_numbers = #tpu.dot_dimension_numbers<[1], [0], [0], [1], [0, 0, 1, 1], [], []>} : vector<8x32xf32>, vector<32x8xf32>, vector<8x8xf32> -> vector<8x8xf32>
    %974 = vector.broadcast %14 : vector<1x8xf32> to vector<8x8xf32>
    %975 = arith.addf %973, %974 : vector<8x8xf32>
    %976 = vector.shape_cast %975 : vector<8x8xf32> to vector<1x8x8xf32>
    %c0_163 = arith.constant 0 : index
    %c0_164 = arith.constant 0 : index
    %c0_165 = arith.constant 0 : index
    %977 = vector.load %arg16[%c0_163, %c0_164, %c0_165] : memref<1x8x8xf32, #tpu.memory_space<vmem>>, vector<1x8x8xf32>
    tpu.vector_store %arg16[%c0_163, %c0_164, %c0_165], %976 {strides = array<i32>} : memref<1x8x8xf32, #tpu.memory_space<vmem>>, vector<1x8x8xf32>,
    return
  }
  func.func @transform_0(%arg0: i32) -> (i32, i32, i32) {
    %c0_i32 = arith.constant 0 : i32
    %c0_i32_0 = arith.constant 0 : i32
    %c0_i32_1 = arith.constant 0 : i32
    return %arg0, %c0_i32, %c0_i32_0 : i32, i32, i32
  }
  func.func @transform_1(%arg0: i32) -> (i32, i32) {
    %c0_i32 = arith.constant 0 : i32
    %c0_i32_0 = arith.constant 0 : i32
    %c0_i32_1 = arith.constant 0 : i32
    return %c0_i32, %c0_i32_0 : i32, i32
  }
  func.func @transform_2(%arg0: i32) -> (i32, i32) {
    %c0_i32 = arith.constant 0 : i32
    %c0_i32_0 = arith.constant 0 : i32
    %c0_i32_1 = arith.constant 0 : i32
    return %c0_i32, %c0_i32_0 : i32, i32
  }
  func.func @transform_3(%arg0: i32) -> (i32, i32) {
    %c0_i32 = arith.constant 0 : i32
    %c0_i32_0 = arith.constant 0 : i32
    %c0_i32_1 = arith.constant 0 : i32
    return %c0_i32, %c0_i32_0 : i32, i32
  }
  func.func @transform_4(%arg0: i32) -> (i32, i32) {
    %c0_i32 = arith.constant 0 : i32
    %c0_i32_0 = arith.constant 0 : i32
    %c0_i32_1 = arith.constant 0 : i32
    return %c0_i32, %c0_i32_0 : i32, i32
  }
  func.func @transform_5(%arg0: i32) -> (i32, i32) {
    %c0_i32 = arith.constant 0 : i32
    %c0_i32_0 = arith.constant 0 : i32
    %c0_i32_1 = arith.constant 0 : i32
    return %c0_i32, %c0_i32_0 : i32, i32
  }
  func.func @transform_6(%arg0: i32) -> (i32, i32) {
    %c0_i32 = arith.constant 0 : i32
    %c0_i32_0 = arith.constant 0 : i32
    %c0_i32_1 = arith.constant 0 : i32
    return %c0_i32, %c0_i32_0 : i32, i32
  }
  func.func @transform_7(%arg0: i32) -> (i32, i32) {
    %c0_i32 = arith.constant 0 : i32
    %c0_i32_0 = arith.constant 0 : i32
    %c0_i32_1 = arith.constant 0 : i32
    return %c0_i32, %c0_i32_0 : i32, i32
  }
  func.func @transform_8(%arg0: i32) -> (i32, i32) {
    %c0_i32 = arith.constant 0 : i32
    %c0_i32_0 = arith.constant 0 : i32
    %c0_i32_1 = arith.constant 0 : i32
    return %c0_i32, %c0_i32_0 : i32, i32
  }
  func.func @transform_9(%arg0: i32) -> (i32, i32) {
    %c0_i32 = arith.constant 0 : i32
    %c0_i32_0 = arith.constant 0 : i32
    %c0_i32_1 = arith.constant 0 : i32
    return %c0_i32, %c0_i32_0 : i32, i32
  }
  func.func @transform_10(%arg0: i32) -> (i32, i32) {
    %c0_i32 = arith.constant 0 : i32
    %c0_i32_0 = arith.constant 0 : i32
    %c0_i32_1 = arith.constant 0 : i32
    return %c0_i32, %c0_i32_0 : i32, i32
  }
  func.func @transform_11(%arg0: i32) -> (i32, i32) {
    %c0_i32 = arith.constant 0 : i32
    %c0_i32_0 = arith.constant 0 : i32
    %c0_i32_1 = arith.constant 0 : i32
    return %c0_i32, %c0_i32_0 : i32, i32
  }
  func.func @transform_12(%arg0: i32) -> (i32, i32) {
    %c0_i32 = arith.constant 0 : i32
    %c0_i32_0 = arith.constant 0 : i32
    %c0_i32_1 = arith.constant 0 : i32
    return %c0_i32, %c0_i32_0 : i32, i32
  }
  func.func @transform_13(%arg0: i32) -> (i32, i32) {
    %c0_i32 = arith.constant 0 : i32
    %c0_i32_0 = arith.constant 0 : i32
    %c0_i32_1 = arith.constant 0 : i32
    return %c0_i32, %c0_i32_0 : i32, i32
  }
  func.func @transform_14(%arg0: i32) -> (i32, i32) {
    %c0_i32 = arith.constant 0 : i32
    %c0_i32_0 = arith.constant 0 : i32
    %c0_i32_1 = arith.constant 0 : i32
    return %c0_i32, %c0_i32_0 : i32, i32
  }
  func.func @transform_15(%arg0: i32) -> (i32, i32, i32) {
    %c0_i32 = arith.constant 0 : i32
    %c0_i32_0 = arith.constant 0 : i32
    %c0_i32_1 = arith.constant 0 : i32
    return %arg0, %c0_i32, %c0_i32_0 : i32, i32, i32
  }
}

</mosaic_0001>

<llo_original>
// kernel: tpu_custom_call.1
$region0: #{tpu_custom_call.1}
  #allocation0 [shape = 'u32[]', space=smem, size = 0x4, offset = 0x4, fixed_abs, tag = 'smem constant byte address 0x4 - core index']
  #allocation1 [shape = 'u32[144,128]{1,0:T(1,128)}', space=vmem, size = 0x12000, scoped, tag = 'internal scratch']
  %s0 = inlined_call_operand.hbm [shape: f32[2,8,8], index: 0, kind: input, shape index: {}]
  %s1 = inlined_call_operand.vmem [shape: f32[8,128], index: 1, kind: input, shape index: {}]
  %s2 = inlined_call_operand.vmem [shape: f32[32,128], index: 2, kind: input, shape index: {}]
  %s3 = inlined_call_operand.vmem [shape: f32[1,128], index: 3, kind: input, shape index: {}]
  %s4 = inlined_call_operand.hbm [shape: f32[32,128], index: 4, kind: input, shape index: {}]
  %s5 = inlined_call_operand.hbm [shape: f32[32,128], index: 5, kind: input, shape index: {}]
  %s6 = inlined_call_operand.vmem [shape: f32[1,128], index: 6, kind: input, shape index: {}]
  %s7 = inlined_call_operand.hbm [shape: f32[32,128], index: 7, kind: input, shape index: {}]
  %s8 = inlined_call_operand.hbm [shape: f32[32,128], index: 8, kind: input, shape index: {}]
  %s9 = inlined_call_operand.vmem [shape: f32[1,128], index: 9, kind: input, shape index: {}]
  %s10 = inlined_call_operand.hbm [shape: f32[32,128], index: 10, kind: input, shape index: {}]
  %s11 = inlined_call_operand.hbm [shape: f32[32,128], index: 11, kind: input, shape index: {}]
  %s12 = inlined_call_operand.vmem [shape: f32[1,128], index: 12, kind: input, shape index: {}]
  %s13 = inlined_call_operand.vmem [shape: f32[32,8], index: 13, kind: input, shape index: {}]
  %s14 = inlined_call_operand.vmem [shape: f32[1,8], index: 14, kind: input, shape index: {}]
  %s15 = inlined_call_operand.hbm [shape: f32[2,8,8], index: 15, kind: output, shape index: {}]
  %s16 = sld [smem:[#allocation0]]
  $region121: #{tpu_custom_call.1} parent=0
    _
  %s18 = ssub.s32 1, %s16
  %s19 = scalar_select 0, %s18, %s16
  $region1: #{tpu_custom_call.1} parent=0
    #allocation2 [shape = 'u8[8192]{0}', space=vmem, size = 0x2000, scoped, tag = 'input window, operand 0']
    #allocation3 [shape = 's32[2]{0}', space=sflag, size = 0x8, scoped, tag = 'scoped memory for tpu_custom_call.1']
    #allocation4 [shape = 's32[2]{0}', space=sflag, size = 0x8, scoped, tag = 'scoped memory for tpu_custom_call.1']
    #allocation5 [shape = 'u8[16384]{0}', space=vmem, size = 0x4000, scoped, tag = 'input window, operand 4, single buffered']
    #allocation6 [shape = 's32[1]{0}', space=sflag, size = 0x4, scoped, tag = 'scoped memory for tpu_custom_call.1']
    #allocation7 [shape = 'u8[16384]{0}', space=vmem, size = 0x4000, scoped, tag = 'input window, operand 5, single buffered']
    #allocation8 [shape = 'u8[16384]{0}', space=vmem, size = 0x4000, scoped, tag = 'input window, operand 7, single buffered']
    #allocation9 [shape = 's32[1]{0}', space=sflag, size = 0x4, scoped, tag = 'scoped memory for tpu_custom_call.1']
    #allocation10 [shape = 'u8[16384]{0}', space=vmem, size = 0x4000, scoped, tag = 'input window, operand 8, single buffered']
    #allocation11 [shape = 'u8[16384]{0}', space=vmem, size = 0x4000, scoped, tag = 'input window, operand 10, single buffered']
    #allocation12 [shape = 's32[1]{0}', space=sflag, size = 0x4, scoped, tag = 'scoped memory for tpu_custom_call.1']
    #allocation13 [shape = 'u8[16384]{0}', space=vmem, size = 0x4000, scoped, tag = 'input window, operand 11, single buffered']
    #allocation14 [shape = 'u8[8192]{0}', space=vmem, size = 0x2000, scoped, tag = 'output window, operand 0']
    %20 = vsyncpa [#allocation3], 0
    %s21 = scalar_lea.sflag [#allocation3], 1
    %22 = vsyncpa %s21, 0
    %23 = vsyncpa [#allocation6], 0
    %24 = vsyncpa [#allocation9], 0
    %25 = vsyncpa [#allocation12], 0
    %26 = vsyncpa [#allocation4], 0
    %s27 = scalar_lea.sflag [#allocation4], 1
    %28 = vsyncpa %s27, 0
    loop: start=0, step=1, limit=4
    $region2: #{tpu_custom_call.1} parent=1 // loop_pre_header
      _
    $region3: #{tpu_custom_call.1} parent=1 // loop_header
      %s30 = sphi 0, %s34
      %p31 = scmp.ge.s32.totalorder %s30, 4
      %s40 = sphi 0, %s42
      %s43 = sphi 0, %s40
      %s44 = sphi 0, %s43
      %s60 = sphi 0, %s44
      %s64 = sphi 0, %s64
      %s66 = sphi 0, %s64
      %s67 = sphi 0, %s66
      %s81 = sphi 0, %s67
      %s85 = sphi 0, %s85
      %s87 = sphi 0, %s85
      %s88 = sphi 0, %s87
      %s102 = sphi 0, %s88
      %s106 = sphi 0, %s106
      %s108 = sphi 0, %s106
      %s109 = sphi 0, %s108
      %s123 = sphi 0, %s109
      %s127 = sphi 0, %s127
      %s129 = sphi 0, %s127
      %s130 = sphi 0, %s129
      %s144 = sphi 0, %s130
      %s148 = sphi 0, %s148
      %s150 = sphi 0, %s148
      %s151 = sphi 0, %s150
      %s165 = sphi 0, %s151
      %s169 = sphi 0, %s169
      %s171 = sphi 0, %s169
      %s172 = sphi 0, %s171
      %s186 = sphi 0, %s172
      %s190 = sphi 0, %s190
      %s192 = sphi 0, %s190
      %s193 = sphi 0, %s192
      %s207 = sphi 0, %s193
      %s211 = sphi 0, %s211
      %s213 = sphi 0, %s211
      %s214 = sphi 0, %s213
      %s228 = sphi 0, %s214
      %s232 = sphi 0, %s232
      %s234 = sphi 0, %s232
      %s235 = sphi 0, %s234
      %s249 = sphi 0, %s235
      %s253 = sphi 0, %s253
      %s255 = sphi 0, %s253
      %s256 = sphi 0, %s255
      %s270 = sphi 0, %s256
      %s274 = sphi 0, %s274
      %s276 = sphi 0, %s274
      %s277 = sphi 0, %s276
      %s291 = sphi 0, %s277
      %s295 = sphi 0, %s295
      %s297 = sphi 0, %s295
      %s298 = sphi 0, %s297
      %s312 = sphi 0, %s298
      %s316 = sphi 0, %s316
      %s318 = sphi 0, %s316
      %s319 = sphi 0, %s318
      %s333 = sphi 0, %s319
      %s337 = sphi 0, %s337
      %s339 = sphi 0, %s337
      %s340 = sphi 0, %s339
      %s354 = sphi 0, %s340
      %s360 = sphi 0, %s362
      %s363 = sphi 0, %s360
      %s364 = sphi 0, %s363
      %s380 = sphi 0, %s364
    $region4: #{tpu_custom_call.1} parent=1 // loop_header_branch
      %33 = sbr.rel (%p31) target = $region8
    $region5: #{tpu_custom_call.1} parent=1 // loop_body
      %s35 = ssub.s32 %s30, 1
      %s36 = ssub.s32 %s30, 2
      %s37 = sadd.s32 %s30, 1
      %s38 = ssub.s32 %s30, %s37
      %p39 = scmp.eq.s32.totalorder %s38, 0
      %s41 = sadd.s32 %s40, 1
      %s42 = scalar_select %p39, %s40, %s41
      %p45 = pneg %p39
      %p46 = scmp.eq.s32.totalorder %s30, 1
      %p47 = por %p45, %p46
      %p48 = scmp.ne.s32.totalorder %s40, %s43
      %p49 = scmp.eq.s32.totalorder %s30, 0
      %p50 = por %p48, %p49
      %p51 = scmp.ne.s32.totalorder %s40, %s43
      %p52 = scmp.eq.s32.totalorder %s35, 1
      %p53 = por %p51, %p52
      %p54 = scmp.ne.s32.totalorder %s43, %s44
      %p55 = scmp.eq.s32.totalorder %s35, 0
      %p56 = por %p54, %p55
      %p57 = scmp.ne.s32.totalorder %s43, %s44
      %p58 = scmp.eq.s32.totalorder %s36, 1
      %p59 = por %p57, %p58
      %p61 = scmp.ne.s32.totalorder %s44, %s60
      %p62 = scmp.eq.s32.totalorder %s36, 0
      %p63 = por %p61, %p62
      %s65 = sadd.s32 %s64, 1
      %p68 = scmp.eq.s32.totalorder %s30, 1
      %p69 = scmp.ne.s32.totalorder %s64, %s66
      %p70 = scmp.eq.s32.totalorder %s30, 0
      %p71 = por %p69, %p70
      %p72 = scmp.ne.s32.totalorder %s64, %s66
      %p73 = scmp.eq.s32.totalorder %s35, 1
      %p74 = por %p72, %p73
      %p75 = scmp.ne.s32.totalorder %s66, %s67
      %p76 = scmp.eq.s32.totalorder %s35, 0
      %p77 = por %p75, %p76
      %p78 = scmp.ne.s32.totalorder %s66, %s67
      %p79 = scmp.eq.s32.totalorder %s36, 1
      %p80 = por %p78, %p79
      %p82 = scmp.ne.s32.totalorder %s67, %s81
      %p83 = scmp.eq.s32.totalorder %s36, 0
      %p84 = por %p82, %p83
      %s86 = sadd.s32 %s85, 1
      %p89 = scmp.eq.s32.totalorder %s30, 1
      %p90 = scmp.ne.s32.totalorder %s85, %s87
      %p91 = scmp.eq.s32.totalorder %s30, 0
      %p92 = por %p90, %p91
      %p93 = scmp.ne.s32.totalorder %s85, %s87
      %p94 = scmp.eq.s32.totalorder %s35, 1
      %p95 = por %p93, %p94
      %p96 = scmp.ne.s32.totalorder %s87, %s88
      %p97 = scmp.eq.s32.totalorder %s35, 0
      %p98 = por %p96, %p97
      %p99 = scmp.ne.s32.totalorder %s87, %s88
      %p100 = scmp.eq.s32.totalorder %s36, 1
      %p101 = por %p99, %p100
      %p103 = scmp.ne.s32.totalorder %s88, %s102
      %p104 = scmp.eq.s32.totalorder %s36, 0
      %p105 = por %p103, %p104
      %s107 = sadd.s32 %s106, 1
      %p110 = scmp.eq.s32.totalorder %s30, 1
      %p111 = scmp.ne.s32.totalorder %s106, %s108
      %p112 = scmp.eq.s32.totalorder %s30, 0
      %p113 = por %p111, %p112
      %p114 = scmp.ne.s32.totalorder %s106, %s108
      %p115 = scmp.eq.s32.totalorder %s35, 1
      %p116 = por %p114, %p115
      %p117 = scmp.ne.s32.totalorder %s108, %s109
      %p118 = scmp.eq.s32.totalorder %s35, 0
      %p119 = por %p117, %p118
      %p120 = scmp.ne.s32.totalorder %s108, %s109
      %p121 = scmp.eq.s32.totalorder %s36, 1
      %p122 = por %p120, %p121
      %p124 = scmp.ne.s32.totalorder %s109, %s123
      %p125 = scmp.eq.s32.totalorder %s36, 0
      %p126 = por %p124, %p125
      %s128 = sadd.s32 %s127, 1
      %p131 = scmp.eq.s32.totalorder %s30, 1
      %p132 = scmp.ne.s32.totalorder %s127, %s129
      %p133 = scmp.eq.s32.totalorder %s30, 0
      %p134 = por %p132, %p133
      %p135 = scmp.ne.s32.totalorder %s127, %s129
      %p136 = scmp.eq.s32.totalorder %s35, 1
      %p137 = por %p135, %p136
      %p138 = scmp.ne.s32.totalorder %s129, %s130
      %p139 = scmp.eq.s32.totalorder %s35, 0
      %p140 = por %p138, %p139
      %p141 = scmp.ne.s32.totalorder %s129, %s130
      %p142 = scmp.eq.s32.totalorder %s36, 1
      %p143 = por %p141, %p142
      %p145 = scmp.ne.s32.totalorder %s130, %s144
      %p146 = scmp.eq.s32.totalorder %s36, 0
      %p147 = por %p145, %p146
      %s149 = sadd.s32 %s148, 1
      %p152 = scmp.eq.s32.totalorder %s30, 1
      %p153 = scmp.ne.s32.totalorder %s148, %s150
      %p154 = scmp.eq.s32.totalorder %s30, 0
      %p155 = por %p153, %p154
      %p156 = scmp.ne.s32.totalorder %s148, %s150
      %p157 = scmp.eq.s32.totalorder %s35, 1
      %p158 = por %p156, %p157
      %p159 = scmp.ne.s32.totalorder %s150, %s151
      %p160 = scmp.eq.s32.totalorder %s35, 0
      %p161 = por %p159, %p160
      %p162 = scmp.ne.s32.totalorder %s150, %s151
      %p163 = scmp.eq.s32.totalorder %s36, 1
      %p164 = por %p162, %p163
      %p166 = scmp.ne.s32.totalorder %s151, %s165
      %p167 = scmp.eq.s32.totalorder %s36, 0
      %p168 = por %p166, %p167
      %s170 = sadd.s32 %s169, 1
      %p173 = scmp.eq.s32.totalorder %s30, 1
      %p174 = scmp.ne.s32.totalorder %s169, %s171
      %p175 = scmp.eq.s32.totalorder %s30, 0
      %p176 = por %p174, %p175
      %p177 = scmp.ne.s32.totalorder %s169, %s171
      %p178 = scmp.eq.s32.totalorder %s35, 1
      %p179 = por %p177, %p178
      %p180 = scmp.ne.s32.totalorder %s171, %s172
      %p181 = scmp.eq.s32.totalorder %s35, 0
      %p182 = por %p180, %p181
      %p183 = scmp.ne.s32.totalorder %s171, %s172
      %p184 = scmp.eq.s32.totalorder %s36, 1
      %p185 = por %p183, %p184
      %p187 = scmp.ne.s32.totalorder %s172, %s186
      %p188 = scmp.eq.s32.totalorder %s36, 0
      %p189 = por %p187, %p188
      %s191 = sadd.s32 %s190, 1
      %p194 = scmp.eq.s32.totalorder %s30, 1
      %p195 = scmp.ne.s32.totalorder %s190, %s192
      %p196 = scmp.eq.s32.totalorder %s30, 0
      %p197 = por %p195, %p196
      %p198 = scmp.ne.s32.totalorder %s190, %s192
      %p199 = scmp.eq.s32.totalorder %s35, 1
      %p200 = por %p198, %p199
      %p201 = scmp.ne.s32.totalorder %s192, %s193
      %p202 = scmp.eq.s32.totalorder %s35, 0
      %p203 = por %p201, %p202
      %p204 = scmp.ne.s32.totalorder %s192, %s193
      %p205 = scmp.eq.s32.totalorder %s36, 1
      %p206 = por %p204, %p205
      %p208 = scmp.ne.s32.totalorder %s193, %s207
      %p209 = scmp.eq.s32.totalorder %s36, 0
      %p210 = por %p208, %p209
      %s212 = sadd.s32 %s211, 1
      %p215 = scmp.eq.s32.totalorder %s30, 1
      %p216 = scmp.ne.s32.totalorder %s211, %s213
      %p217 = scmp.eq.s32.totalorder %s30, 0
      %p218 = por %p216, %p217
      %p219 = scmp.ne.s32.totalorder %s211, %s213
      %p220 = scmp.eq.s32.totalorder %s35, 1
      %p221 = por %p219, %p220
      %p222 = scmp.ne.s32.totalorder %s213, %s214
      %p223 = scmp.eq.s32.totalorder %s35, 0
      %p224 = por %p222, %p223
      %p225 = scmp.ne.s32.totalorder %s213, %s214
      %p226 = scmp.eq.s32.totalorder %s36, 1
      %p227 = por %p225, %p226
      %p229 = scmp.ne.s32.totalorder %s214, %s228
      %p230 = scmp.eq.s32.totalorder %s36, 0
      %p231 = por %p229, %p230
      %s233 = sadd.s32 %s232, 1
      %p236 = scmp.eq.s32.totalorder %s30, 1
      %p237 = scmp.ne.s32.totalorder %s232, %s234
      %p238 = scmp.eq.s32.totalorder %s30, 0
      %p239 = por %p237, %p238
      %p240 = scmp.ne.s32.totalorder %s232, %s234
      %p241 = scmp.eq.s32.totalorder %s35, 1
      %p242 = por %p240, %p241
      %p243 = scmp.ne.s32.totalorder %s234, %s235
      %p244 = scmp.eq.s32.totalorder %s35, 0
      %p245 = por %p243, %p244
      %p246 = scmp.ne.s32.totalorder %s234, %s235
      %p247 = scmp.eq.s32.totalorder %s36, 1
      %p248 = por %p246, %p247
      %p250 = scmp.ne.s32.totalorder %s235, %s249
      %p251 = scmp.eq.s32.totalorder %s36, 0
      %p252 = por %p250, %p251
      %s254 = sadd.s32 %s253, 1
      %p257 = scmp.eq.s32.totalorder %s30, 1
      %p258 = scmp.ne.s32.totalorder %s253, %s255
      %p259 = scmp.eq.s32.totalorder %s30, 0
      %p260 = por %p258, %p259
      %p261 = scmp.ne.s32.totalorder %s253, %s255
      %p262 = scmp.eq.s32.totalorder %s35, 1
      %p263 = por %p261, %p262
      %p264 = scmp.ne.s32.totalorder %s255, %s256
      %p265 = scmp.eq.s32.totalorder %s35, 0
      %p266 = por %p264, %p265
      %p267 = scmp.ne.s32.totalorder %s255, %s256
      %p268 = scmp.eq.s32.totalorder %s36, 1
      %p269 = por %p267, %p268
      %p271 = scmp.ne.s32.totalorder %s256, %s270
      %p272 = scmp.eq.s32.totalorder %s36, 0
      %p273 = por %p271, %p272
      %s275 = sadd.s32 %s274, 1
      %p278 = scmp.eq.s32.totalorder %s30, 1
      %p279 = scmp.ne.s32.totalorder %s274, %s276
      %p280 = scmp.eq.s32.totalorder %s30, 0
      %p281 = por %p279, %p280
      %p282 = scmp.ne.s32.totalorder %s274, %s276
      %p283 = scmp.eq.s32.totalorder %s35, 1
      %p284 = por %p282, %p283
      %p285 = scmp.ne.s32.totalorder %s276, %s277
      %p286 = scmp.eq.s32.totalorder %s35, 0
      %p287 = por %p285, %p286
      %p288 = scmp.ne.s32.totalorder %s276, %s277
      %p289 = scmp.eq.s32.totalorder %s36, 1
      %p290 = por %p288, %p289
      %p292 = scmp.ne.s32.totalorder %s277, %s291
      %p293 = scmp.eq.s32.totalorder %s36, 0
      %p294 = por %p292, %p293
      %s296 = sadd.s32 %s295, 1
      %p299 = scmp.eq.s32.totalorder %s30, 1
      %p300 = scmp.ne.s32.totalorder %s295, %s297
      %p301 = scmp.eq.s32.totalorder %s30, 0
      %p302 = por %p300, %p301
      %p303 = scmp.ne.s32.totalorder %s295, %s297
      %p304 = scmp.eq.s32.totalorder %s35, 1
      %p305 = por %p303, %p304
      %p306 = scmp.ne.s32.totalorder %s297, %s298
      %p307 = scmp.eq.s32.totalorder %s35, 0
      %p308 = por %p306, %p307
      %p309 = scmp.ne.s32.totalorder %s297, %s298
      %p310 = scmp.eq.s32.totalorder %s36, 1
      %p311 = por %p309, %p310
      %p313 = scmp.ne.s32.totalorder %s298, %s312
      %p314 = scmp.eq.s32.totalorder %s36, 0
      %p315 = por %p313, %p314
      %s317 = sadd.s32 %s316, 1
      %p320 = scmp.eq.s32.totalorder %s30, 1
      %p321 = scmp.ne.s32.totalorder %s316, %s318
      %p322 = scmp.eq.s32.totalorder %s30, 0
      %p323 = por %p321, %p322
      %p324 = scmp.ne.s32.totalorder %s316, %s318
      %p325 = scmp.eq.s32.totalorder %s35, 1
      %p326 = por %p324, %p325
      %p327 = scmp.ne.s32.totalorder %s318, %s319
      %p328 = scmp.eq.s32.totalorder %s35, 0
      %p329 = por %p327, %p328
      %p330 = scmp.ne.s32.totalorder %s318, %s319
      %p331 = scmp.eq.s32.totalorder %s36, 1
      %p332 = por %p330, %p331
      %p334 = scmp.ne.s32.totalorder %s319, %s333
      %p335 = scmp.eq.s32.totalorder %s36, 0
      %p336 = por %p334, %p335
      %s338 = sadd.s32 %s337, 1
      %p341 = scmp.eq.s32.totalorder %s30, 1
      %p342 = scmp.ne.s32.totalorder %s337, %s339
      %p343 = scmp.eq.s32.totalorder %s30, 0
      %p344 = por %p342, %p343
      %p345 = scmp.ne.s32.totalorder %s337, %s339
      %p346 = scmp.eq.s32.totalorder %s35, 1
      %p347 = por %p345, %p346
      %p348 = scmp.ne.s32.totalorder %s339, %s340
      %p349 = scmp.eq.s32.totalorder %s35, 0
      %p350 = por %p348, %p349
      %p351 = scmp.ne.s32.totalorder %s339, %s340
      %p352 = scmp.eq.s32.totalorder %s36, 1
      %p353 = por %p351, %p352
      %p355 = scmp.ne.s32.totalorder %s340, %s354
      %p356 = scmp.eq.s32.totalorder %s36, 0
      %p357 = por %p355, %p356
      %s358 = ssub.s32 %s30, %s37
      %p359 = scmp.eq.s32.totalorder %s358, 0
      %s361 = sadd.s32 %s360, 1
      %s362 = scalar_select %p359, %s360, %s361
      %p365 = pneg %p359
      %p366 = scmp.eq.s32.totalorder %s30, 1
      %p367 = por %p365, %p366
      %p368 = scmp.ne.s32.totalorder %s360, %s363
      %p369 = scmp.eq.s32.totalorder %s30, 0
      %p370 = por %p368, %p369
      %p371 = scmp.ne.s32.totalorder %s360, %s363
      %p372 = scmp.eq.s32.totalorder %s35, 1
      %p373 = por %p371, %p372
      %p374 = scmp.ne.s32.totalorder %s363, %s364
      %p375 = scmp.eq.s32.totalorder %s35, 0
      %p376 = por %p374, %p375
      %p377 = scmp.ne.s32.totalorder %s363, %s364
      %p378 = scmp.eq.s32.totalorder %s36, 1
      %p379 = por %p377, %p378
      %p381 = scmp.ne.s32.totalorder %s364, %s380
      %p382 = scmp.eq.s32.totalorder %s36, 0
      %p383 = por %p381, %p382
      %p384 = scmp.le.s32.totalorder 1, %s30
      %p385 = scmp.lt.s32.totalorder %s30, 3
      %p386 = pnand %p384, %p385
      %p387 = pneg %p386
      // Predicated region
      $region9: #{tpu_custom_call.1} parent=5 // pred_check
        _
      $region10: #{tpu_custom_call.1} parent=5 // pred_check_branch
        %389 = sbr.rel (%p386) target = $region12
      $region11: #{tpu_custom_call.1} parent=5 // pred_region
        %s390 = ssub.s32 %s30, 1
        // Predicated region
        $region13: #{tpu_custom_call.1} parent=11 // pred_check
          %p391 = pneg %p77
        $region14: #{tpu_custom_call.1} parent=11 // pred_check_branch
          %393 = sbr.rel (%p391) target = $region16
        $region15: #{tpu_custom_call.1} parent=11 // pred_region
          _
        $region16: #{tpu_custom_call.1} parent=11 // pred_fallthru
          _
        // Predicated region
        $region17: #{tpu_custom_call.1} parent=11 // pred_check
          %p394 = pneg %p98
        $region18: #{tpu_custom_call.1} parent=11 // pred_check_branch
          %396 = sbr.rel (%p394) target = $region20
        $region19: #{tpu_custom_call.1} parent=11 // pred_region
          _
        $region20: #{tpu_custom_call.1} parent=11 // pred_fallthru
          _
        // Predicated region
        $region21: #{tpu_custom_call.1} parent=11 // pred_check
          %p397 = pneg %p119
        $region22: #{tpu_custom_call.1} parent=11 // pred_check_branch
          %399 = sbr.rel (%p397) target = $region24
        $region23: #{tpu_custom_call.1} parent=11 // pred_region
          _
        $region24: #{tpu_custom_call.1} parent=11 // pred_fallthru
          _
        // Predicated region
        $region25: #{tpu_custom_call.1} parent=11 // pred_check
          %p400 = pneg %p140
        $region26: #{tpu_custom_call.1} parent=11 // pred_check_branch
          %402 = sbr.rel (%p400) target = $region28
        $region27: #{tpu_custom_call.1} parent=11 // pred_region
          %s404 = ssub.s32 512, 512
          %405 = vsyncadd [#allocation6], %s404
          %s406 = sshll.u32 [#allocation5], 4
          %s407 = int_to_ptr.vmem [resolvable:$true] %s406
          %412 = dma.hbm_to_vmem [thread:$0]  %s4, 512, %s407, [#allocation6], 128, 128, 8
        $region28: #{tpu_custom_call.1} parent=11 // pred_fallthru
          _
        // Predicated region
        $region29: #{tpu_custom_call.1} parent=11 // pred_check
          %p413 = pneg %p161
        $region30: #{tpu_custom_call.1} parent=11 // pred_check_branch
          %415 = sbr.rel (%p413) target = $region32
        $region31: #{tpu_custom_call.1} parent=11 // pred_region
          %s417 = ssub.s32 512, 512
          %418 = vsyncadd [#allocation6], %s417
          %s419 = sshll.u32 [#allocation7], 4
          %s420 = int_to_ptr.vmem [resolvable:$true] %s419
          %425 = dma.hbm_to_vmem [thread:$0]  %s5, 512, %s420, [#allocation6], 128, 128, 8
        $region32: #{tpu_custom_call.1} parent=11 // pred_fallthru
          _
        // Predicated region
        $region33: #{tpu_custom_call.1} parent=11 // pred_check
          %p426 = pneg %p182
        $region34: #{tpu_custom_call.1} parent=11 // pred_check_branch
          %428 = sbr.rel (%p426) target = $region36
        $region35: #{tpu_custom_call.1} parent=11 // pred_region
          _
        $region36: #{tpu_custom_call.1} parent=11 // pred_fallthru
          _
        // Predicated region
        $region37: #{tpu_custom_call.1} parent=11 // pred_check
          %p429 = pneg %p203
        $region38: #{tpu_custom_call.1} parent=11 // pred_check_branch
          %431 = sbr.rel (%p429) target = $region40
        $region39: #{tpu_custom_call.1} parent=11 // pred_region
          %s433 = ssub.s32 512, 512
          %434 = vsyncadd [#allocation9], %s433
          %s435 = sshll.u32 [#allocation8], 4
          %s436 = int_to_ptr.vmem [resolvable:$true] %s435
          %441 = dma.hbm_to_vmem [thread:$0]  %s7, 512, %s436, [#allocation9], 128, 128, 8
        $region40: #{tpu_custom_call.1} parent=11 // pred_fallthru
          _
        // Predicated region
        $region41: #{tpu_custom_call.1} parent=11 // pred_check
          %p442 = pneg %p224
        $region42: #{tpu_custom_call.1} parent=11 // pred_check_branch
          %444 = sbr.rel (%p442) target = $region44
        $region43: #{tpu_custom_call.1} parent=11 // pred_region
          %s446 = ssub.s32 512, 512
          %447 = vsyncadd [#allocation9], %s446
          %s448 = sshll.u32 [#allocation10], 4
          %s449 = int_to_ptr.vmem [resolvable:$true] %s448
          %454 = dma.hbm_to_vmem [thread:$0]  %s8, 512, %s449, [#allocation9], 128, 128, 8
        $region44: #{tpu_custom_call.1} parent=11 // pred_fallthru
          _
        // Predicated region
        $region45: #{tpu_custom_call.1} parent=11 // pred_check
          %p455 = pneg %p245
        $region46: #{tpu_custom_call.1} parent=11 // pred_check_branch
          %457 = sbr.rel (%p455) target = $region48
        $region47: #{tpu_custom_call.1} parent=11 // pred_region
          _
        $region48: #{tpu_custom_call.1} parent=11 // pred_fallthru
          _
        // Predicated region
        $region49: #{tpu_custom_call.1} parent=11 // pred_check
          %p458 = pneg %p266
        $region50: #{tpu_custom_call.1} parent=11 // pred_check_branch
          %460 = sbr.rel (%p458) target = $region52
        $region51: #{tpu_custom_call.1} parent=11 // pred_region
          %s462 = ssub.s32 512, 512
          %463 = vsyncadd [#allocation12], %s462
          %s464 = sshll.u32 [#allocation11], 4
          %s465 = int_to_ptr.vmem [resolvable:$true] %s464
          %470 = dma.hbm_to_vmem [thread:$0]  %s10, 512, %s465, [#allocation12], 128, 128, 8
        $region52: #{tpu_custom_call.1} parent=11 // pred_fallthru
          _
        // Predicated region
        $region53: #{tpu_custom_call.1} parent=11 // pred_check
          %p471 = pneg %p287
        $region54: #{tpu_custom_call.1} parent=11 // pred_check_branch
          %473 = sbr.rel (%p471) target = $region56
        $region55: #{tpu_custom_call.1} parent=11 // pred_region
          %s475 = ssub.s32 512, 512
          %476 = vsyncadd [#allocation12], %s475
          %s477 = sshll.u32 [#allocation13], 4
          %s478 = int_to_ptr.vmem [resolvable:$true] %s477
          %483 = dma.hbm_to_vmem [thread:$0]  %s11, 512, %s478, [#allocation12], 128, 128, 8
        $region56: #{tpu_custom_call.1} parent=11 // pred_fallthru
          _
        // Predicated region
        $region57: #{tpu_custom_call.1} parent=11 // pred_check
          %p484 = pneg %p308
        $region58: #{tpu_custom_call.1} parent=11 // pred_check_branch
          %486 = sbr.rel (%p484) target = $region60
        $region59: #{tpu_custom_call.1} parent=11 // pred_region
          _
        $region60: #{tpu_custom_call.1} parent=11 // pred_fallthru
          _
        // Predicated region
        $region61: #{tpu_custom_call.1} parent=11 // pred_check
          %p487 = pneg %p329
        $region62: #{tpu_custom_call.1} parent=11 // pred_check_branch
          %489 = sbr.rel (%p487) target = $region64
        $region63: #{tpu_custom_call.1} parent=11 // pred_region
          _
        $region64: #{tpu_custom_call.1} parent=11 // pred_fallthru
          _
        // Predicated region
        $region65: #{tpu_custom_call.1} parent=11 // pred_check
          %p490 = pneg %p350
        $region66: #{tpu_custom_call.1} parent=11 // pred_check_branch
          %492 = sbr.rel (%p490) target = $region68
        $region67: #{tpu_custom_call.1} parent=11 // pred_region
          _
        $region68: #{tpu_custom_call.1} parent=11 // pred_fallthru
          _
      $region12: #{tpu_custom_call.1} parent=5 // pred_fallthru
        _
      %p493 = scmp.lt.s32.totalorder %s30, 2
      // Predicated region
      $region69: #{tpu_custom_call.1} parent=5 // pred_check
        %p494 = pneg %p493
      $region70: #{tpu_custom_call.1} parent=5 // pred_check_branch
        %496 = sbr.rel (%p494) target = $region72
      $region71: #{tpu_custom_call.1} parent=5 // pred_region
        // Predicated region
        $region73: #{tpu_custom_call.1} parent=71 // pred_check
          %p497 = pneg %p50
        $region74: #{tpu_custom_call.1} parent=71 // pred_check_branch
          %499 = sbr.rel (%p497) target = $region76
        $region75: #{tpu_custom_call.1} parent=71 // pred_region
          %s500 = sand.u32 %s40, 1
          %s501 = scalar_lea.sflag [#allocation3], %s500
          %s502 = sand.u32 %s40, 1
          %s503 = smul.addr %s502, 8
          %s504 = scalar_lea.vmem [#allocation2], %s503
          %s506 = ssub.s32 128, 128
          %507 = vsyncadd %s501, %s506
          %s508 = smul.addr %s30, 128
          %s509 = scalar_lea.hbm %s0, %s508
          %s511 = sshll.u32 %s504, 4
          %s512 = int_to_ptr.vmem [resolvable:$true] %s511
          %514 = dma.hbm_to_vmem [thread:$0]  %s509, 128, %s512, %s501
        $region76: #{tpu_custom_call.1} parent=71 // pred_fallthru
          _
      $region72: #{tpu_custom_call.1} parent=5 // pred_fallthru
        _
      %p515 = scmp.le.s32.totalorder 1, %s30
      %p516 = scmp.lt.s32.totalorder %s30, 3
      %p517 = pnand %p515, %p516
      %p518 = pneg %p517
      // Predicated region
      $region77: #{tpu_custom_call.1} parent=5 // pred_check
        _
      $region78: #{tpu_custom_call.1} parent=5 // pred_check_branch
        %520 = sbr.rel (%p517) target = $region80
      $region79: #{tpu_custom_call.1} parent=5 // pred_region
        %s521 = ssub.s32 %s30, 1
        %s522 = sand.u32 %s43, 1
        %s523 = scalar_lea.sflag [#allocation3], %s522
        %s524 = sand.u32 %s43, 1
        %s525 = smul.addr %s524, 8
        %s526 = scalar_lea.vmem [#allocation2], %s525
        // Predicated region
        $region81: #{tpu_custom_call.1} parent=79 // pred_check
          %p527 = pneg %p56
        $region82: #{tpu_custom_call.1} parent=79 // pred_check_branch
          %529 = sbr.rel (%p527) target = $region84
        $region83: #{tpu_custom_call.1} parent=79 // pred_region
          %530 = dma.done %s523, 128
        $region84: #{tpu_custom_call.1} parent=79 // pred_fallthru
          _
        // Predicated region
        $region85: #{tpu_custom_call.1} parent=79 // pred_check
          %p531 = pneg %p140
        $region86: #{tpu_custom_call.1} parent=79 // pred_check_branch
          %533 = sbr.rel (%p531) target = $region88
        $region87: #{tpu_custom_call.1} parent=79 // pred_region
          %534 = dma.done [#allocation6], 512
        $region88: #{tpu_custom_call.1} parent=79 // pred_fallthru
          _
        // Predicated region
        $region89: #{tpu_custom_call.1} parent=79 // pred_check
          %p535 = pneg %p161
        $region90: #{tpu_custom_call.1} parent=79 // pred_check_branch
          %537 = sbr.rel (%p535) target = $region92
        $region91: #{tpu_custom_call.1} parent=79 // pred_region
          %538 = dma.done [#allocation6], 512
        $region92: #{tpu_custom_call.1} parent=79 // pred_fallthru
          _
        // Predicated region
        $region93: #{tpu_custom_call.1} parent=79 // pred_check
          %p539 = pneg %p203
        $region94: #{tpu_custom_call.1} parent=79 // pred_check_branch
          %541 = sbr.rel (%p539) target = $region96
        $region95: #{tpu_custom_call.1} parent=79 // pred_region
          %542 = dma.done [#allocation9], 512
        $region96: #{tpu_custom_call.1} parent=79 // pred_fallthru
          _
        // Predicated region
        $region97: #{tpu_custom_call.1} parent=79 // pred_check
          %p543 = pneg %p224
        $region98: #{tpu_custom_call.1} parent=79 // pred_check_branch
          %545 = sbr.rel (%p543) target = $region100
        $region99: #{tpu_custom_call.1} parent=79 // pred_region
          %546 = dma.done [#allocation9], 512
        $region100: #{tpu_custom_call.1} parent=79 // pred_fallthru
          _
        // Predicated region
        $region101: #{tpu_custom_call.1} parent=79 // pred_check
          %p547 = pneg %p266
        $region102: #{tpu_custom_call.1} parent=79 // pred_check_branch
          %549 = sbr.rel (%p547) target = $region104
        $region103: #{tpu_custom_call.1} parent=79 // pred_region
          %550 = dma.done [#allocation12], 512
        $region104: #{tpu_custom_call.1} parent=79 // pred_fallthru
          _
        // Predicated region
        $region105: #{tpu_custom_call.1} parent=79 // pred_check
          %p551 = pneg %p287
        $region106: #{tpu_custom_call.1} parent=79 // pred_check_branch
          %553 = sbr.rel (%p551) target = $region108
        $region107: #{tpu_custom_call.1} parent=79 // pred_region
          %554 = dma.done [#allocation12], 512
        $region108: #{tpu_custom_call.1} parent=79 // pred_fallthru
          _
        %s555 = sand.u32 %s43, 1
        %s556 = scalar_lea.sflag [#allocation3], %s555
        %s557 = sand.u32 %s43, 1
        %s558 = smul.addr %s557, 8
        %s559 = scalar_lea.vmem [#allocation2], %s558
        %p560 = pneg %p56
        %p561 = pneg %p53
        %p562 = pneg %p77
        %p563 = pneg %p74
        %p564 = pneg %p98
        %p565 = pneg %p95
        %p566 = pneg %p119
        %p567 = pneg %p116
        %p568 = pneg %p140
        %p569 = pneg %p137
        %p570 = pneg %p161
        %p571 = pneg %p158
        %p572 = pneg %p182
        %p573 = pneg %p179
        %p574 = pneg %p203
        %p575 = pneg %p200
        %p576 = pneg %p224
        %p577 = pneg %p221
        %p578 = pneg %p245
        %p579 = pneg %p242
        %p580 = pneg %p266
        %p581 = pneg %p263
        %p582 = pneg %p287
        %p583 = pneg %p284
        %p584 = pneg %p308
        %p585 = pneg %p305
        %p586 = pneg %p329
        %p587 = pneg %p326
        %p588 = pneg %p350
        %p589 = pneg %p347
        %p590 = pneg %p376
        %p591 = pneg %p373
        %s592 = sand.u32 %s363, 1
        %s593 = scalar_lea.sflag [#allocation4], %s592
        %s594 = sand.u32 %s363, 1
        %s595 = smul.addr %s594, 8
        %s596 = scalar_lea.vmem [#allocation14], %s595
        %v597 = vld [vmem:[%s526] sm:$0xff]
        %v598 = vld [vmem:[%s1] sm:$0xff]
        %v599 = vld [vmem:[%s2] sm:$0xff]
        %v600 = vld [vmem:[%s2 + $0x8] sm:$0xff]
        %v601 = vld [vmem:[%s2 + $0x10] sm:$0xff]
        %v602 = vld [vmem:[%s2 + $0x18] sm:$0xff]
        %v603 = vld [vmem:[%s3] sm:$0x1]
        %v604 = vld [vmem:[#allocation5] sm:$0xff]
        %v605 = vld [vmem:[#allocation5 + $0x8] sm:$0xff]
        %v606 = vld [vmem:[#allocation5 + $0x10] sm:$0xff]
        %v607 = vld [vmem:[#allocation5 + $0x18] sm:$0xff]
        %v608 = vld [vmem:[#allocation7] sm:$0xff]
        %v609 = vld [vmem:[#allocation7 + $0x8] sm:$0xff]
        %v610 = vld [vmem:[#allocation7 + $0x10] sm:$0xff]
        %v611 = vld [vmem:[#allocation7 + $0x18] sm:$0xff]
        %v612 = vld [vmem:[%s6] sm:$0x1]
        %v613 = vld [vmem:[#allocation8] sm:$0xff]
        %v614 = vld [vmem:[#allocation8 + $0x8] sm:$0xff]
        %v615 = vld [vmem:[#allocation8 + $0x10] sm:$0xff]
        %v616 = vld [vmem:[#allocation8 + $0x18] sm:$0xff]
        %v617 = vld [vmem:[#allocation10] sm:$0xff]
        %v618 = vld [vmem:[#allocation10 + $0x8] sm:$0xff]
        %v619 = vld [vmem:[#allocation10 + $0x10] sm:$0xff]
        %v620 = vld [vmem:[#allocation10 + $0x18] sm:$0xff]
        %v621 = vld [vmem:[%s9] sm:$0x1]
        %v622 = vld [vmem:[#allocation11] sm:$0xff]
        %v623 = vld [vmem:[#allocation11 + $0x8] sm:$0xff]
        %v624 = vld [vmem:[#allocation11 + $0x10] sm:$0xff]
        %v625 = vld [vmem:[#allocation11 + $0x18] sm:$0xff]
        %v626 = vld [vmem:[#allocation13] sm:$0xff]
        %v627 = vld [vmem:[#allocation13 + $0x8] sm:$0xff]
        %v628 = vld [vmem:[#allocation13 + $0x10] sm:$0xff]
        %v629 = vld [vmem:[#allocation13 + $0x18] sm:$0xff]
        %v630 = vld [vmem:[%s12] sm:$0x1]
        %v631 = vld [vmem:[%s13] sm:$0xff]
        %v632 = vld [vmem:[%s13 + $0x8] sm:$0xff]
        %v633 = vld [vmem:[%s13 + $0x10] sm:$0xff]
        %v634 = vld [vmem:[%s13 + $0x18] sm:$0xff]
        %v635 = vld [vmem:[%s14] sm:$0x1]
        %v637 = vlaneseq
        %v638 = vshrl.u32 %v637, 7
        %v639 = vsub.s32 0, %v638
        %v640 = vrot.slane %v603, %v639
        %vm642 = vcmask 64512
        %v644 = vsel %vm642, %v597, 0
        %646 = vmatprep.subr.mxu0 0.0
        %647 = vmatpush1.msra.mxu0 0.0
        %648 = vmatprep.subr.mxu0 0.0
        %649 = vmatpush1.msra.mxu0 0.0
        %650 = vmatprep.subr.mxu0 0.0
        %651 = vmatpush1.msra.mxu0 0.0
        %652 = vmatprep.subr.mxu0 0.0
        %653 = vmatpush1.msra.mxu0 0.0
        %654 = vmatprep.subr.mxu0 0.0
        %655 = vmatpush1.msra.mxu0 0.0
        %656 = vmatprep.subr.mxu0 0.0
        %657 = vmatpush1.msra.mxu0 0.0
        %658 = vmatprep.subr.mxu0 0.0
        %659 = vmatpush1.msra.mxu0 0.0
        %660 = vmatprep.subr.mxu0 0.0
        %661 = vmatpush1.msra.mxu0 0.0
        %662 = vmatprep.subr.mxu0 0.0
        %663 = vmatpush1.msra.mxu0 0.0
        %664 = vmatprep.subr.mxu0 0.0
        %665 = vmatpush1.msra.mxu0 0.0
        %666 = vmatprep.subr.mxu0 0.0
        %667 = vmatpush1.msra.mxu0 0.0
        %668 = vmatprep.subr.mxu0 0.0
        %669 = vmatpush1.msra.mxu0 0.0
        %670 = vmatprep.subr.mxu0 0.0
        %671 = vmatpush1.msra.mxu0 0.0
        %672 = vmatprep.subr.mxu0 0.0
        %673 = vmatpush1.msra.mxu0 0.0
        %674 = vmatprep.subr.mxu0 0.0
        %675 = vmatpush1.msra.mxu0 0.0
        %676 = vmatprep.subr.mxu0 0.0
        %677 = vmatpush1.msra.mxu0 %v598
        %678 = vmatprep.subr.mxu0 0.0
        %679 = vmatpush2.msra.mxu0 0.0
        %680 = vmatprep.subr.mxu0 0.0
        %681 = vmatpush2.msra.mxu0 0.0
        %682 = vmatprep.subr.mxu0 0.0
        %683 = vmatpush2.msra.mxu0 0.0
        %684 = vmatprep.subr.mxu0 0.0
        %685 = vmatpush2.msra.mxu0 0.0
        %686 = vmatprep.subr.mxu0 0.0
        %687 = vmatpush2.msra.mxu0 0.0
        %688 = vmatprep.subr.mxu0 0.0
        %689 = vmatpush2.msra.mxu0 0.0
        %690 = vmatprep.subr.mxu0 0.0
        %691 = vmatpush2.msra.mxu0 0.0
        %692 = vmatprep.subr.mxu0 0.0
        %693 = vmatpush2.msra.mxu0 0.0
        %694 = vmatprep.subr.mxu0 0.0
        %695 = vmatpush2.msra.mxu0 0.0
        %696 = vmatprep.subr.mxu0 0.0
        %697 = vmatpush2.msra.mxu0 0.0
        %698 = vmatprep.subr.mxu0 0.0
        %699 = vmatpush2.msra.mxu0 0.0
        %700 = vmatprep.subr.mxu0 0.0
        %701 = vmatpush2.msra.mxu0 0.0
        %702 = vmatprep.subr.mxu0 0.0
        %703 = vmatpush2.msra.mxu0 0.0
        %704 = vmatprep.subr.mxu0 0.0
        %705 = vmatpush2.msra.mxu0 0.0
        %706 = vmatprep.subr.mxu0 0.0
        %707 = vmatpush2.msra.mxu0 0.0
        %708 = vmatprep.subr.mxu0 0.0
        %709 = vmatpush2.msra.mxu0 0.0
        %710 = vmatprep.mubr.f32.mxu0 0.0
        %711 = vmatmul.mubr.f32.gmra.mxu0 %v644
        %v712 = vpop.f32.mrf.mxu0
        %v713 = vadd.f32 %v640, %v712
        %v714 = vpop.f32.mrf.mxu0
        %715 = vdwg.mxu0
        %vm716 = vcmask 261120
        %v718 = vsel %vm716, 0.0, 0
        %720 = vmatprep.subr.mxu0 0.0
        %721 = vmatpush1.msra.mxu0 0.0
        %722 = vmatprep.subr.mxu0 0.0
        %723 = vmatpush1.msra.mxu0 0.0
        %724 = vmatprep.subr.mxu0 0.0
        %725 = vmatpush1.msra.mxu0 0.0
        %726 = vmatprep.subr.mxu0 0.0
        %727 = vmatpush1.msra.mxu0 0.0
        %728 = vmatprep.subr.mxu0 0.0
        %729 = vmatpush1.msra.mxu0 0.0
        %730 = vmatprep.subr.mxu0 0.0
        %731 = vmatpush1.msra.mxu0 0.0
        %732 = vmatprep.subr.mxu0 0.0
        %733 = vmatpush1.msra.mxu0 0.0
        %734 = vmatprep.subr.mxu0 0.0
        %735 = vmatpush1.msra.mxu0 0.0
        %736 = vmatprep.subr.mxu0 0.0
        %737 = vmatpush1.msra.mxu0 0.0
        %738 = vmatprep.subr.mxu0 0.0
        %739 = vmatpush1.msra.mxu0 0.0
        %740 = vmatprep.subr.mxu0 0.0
        %741 = vmatpush1.msra.mxu0 0.0
        %742 = vmatprep.subr.mxu0 0.0
        %743 = vmatpush1.msra.mxu0 0.0
        %744 = vmatprep.subr.mxu0 0.0
        %745 = vmatpush1.msra.mxu0 %v602
        %746 = vmatprep.subr.mxu0 0.0
        %747 = vmatpush1.msra.mxu0 %v601
        %748 = vmatprep.subr.mxu0 0.0
        %749 = vmatpush1.msra.mxu0 %v600
        %750 = vmatprep.subr.mxu0 0.0
        %751 = vmatpush1.msra.mxu0 %v599
        %752 = vmatprep.subr.mxu0 0.0
        %753 = vmatpush2.msra.mxu0 0.0
        %754 = vmatprep.subr.mxu0 0.0
        %755 = vmatpush2.msra.mxu0 0.0
        %756 = vmatprep.subr.mxu0 0.0
        %757 = vmatpush2.msra.mxu0 0.0
        %758 = vmatprep.subr.mxu0 0.0
        %759 = vmatpush2.msra.mxu0 0.0
        %760 = vmatprep.subr.mxu0 0.0
        %761 = vmatpush2.msra.mxu0 0.0
        %762 = vmatprep.subr.mxu0 0.0
        %763 = vmatpush2.msra.mxu0 0.0
        %764 = vmatprep.subr.mxu0 0.0
        %765 = vmatpush2.msra.mxu0 0.0
        %766 = vmatprep.subr.mxu0 0.0
        %767 = vmatpush2.msra.mxu0 0.0
        %768 = vmatprep.subr.mxu0 0.0
        %769 = vmatpush2.msra.mxu0 0.0
        %770 = vmatprep.subr.mxu0 0.0
        %771 = vmatpush2.msra.mxu0 0.0
        %772 = vmatprep.subr.mxu0 0.0
        %773 = vmatpush2.msra.mxu0 0.0
        %774 = vmatprep.subr.mxu0 0.0
        %775 = vmatpush2.msra.mxu0 0.0
        %776 = vmatprep.subr.mxu0 0.0
        %777 = vmatpush2.msra.mxu0 0.0
        %778 = vmatprep.subr.mxu0 0.0
        %779 = vmatpush2.msra.mxu0 0.0
        %780 = vmatprep.subr.mxu0 0.0
        %781 = vmatpush2.msra.mxu0 0.0
        %782 = vmatprep.subr.mxu0 0.0
        %783 = vmatpush2.msra.mxu0 0.0
        %784 = vmatprep.mubr.f32.mxu0 0.0
        %785 = vmatmul.mubr.f32.gmra.mxu0 %v718
        %v786 = vpop.f32.mrf.mxu0
        %v787 = vadd.f32 0.0, %v786
        %v788 = vpop.f32.mrf.mxu0
        %789 = vdwg.mxu0
        %v790 = vadd.f32 %v713, %v787
        %v791 = vxor.u32 %v790, 2147483648
        %v792 = vmul.f32 %v791, 1.442695
        %v793 = vpow.pop %v792
        %v794 = vadd.f32 %v793, 1.0
        %v795 = vrcp.pop %v794
        %v796 = vmul.f32 1.0, %v795
        %v797 = vtanh.pop %v790
        %v798 = vmul.f32 %v796, 0.0
        %800 = vrot.lane.b32.xlu0 %v797, 64
        %v801 = vpop.permute.xlu0 %800
        %v803 = vmul.f32 %v796, %v801
        %805 = vrot.lane.b32.xlu0 %v803, 32
        %v806 = vpop.permute.xlu0 %805
        %v808 = vadd.f32 %v798, %v806
        %v809 = vtanh.pop %v808
        %811 = vrot.lane.b32.xlu0 %v809, 64
        %v812 = vpop.permute.xlu0 %811
        %v814 = vmul.f32 %v796, %v812
        %816 = vrot.lane.b32.xlu0 %v814, 32
        %v817 = vpop.permute.xlu0 %816
        %v818 = vsel %vm716, %v817, 0
        %820 = vmatprep.subr.mxu0 0.0
        %821 = vmatpush1.msra.mxu0 0.0
        %822 = vmatprep.subr.mxu0 0.0
        %823 = vmatpush1.msra.mxu0 0.0
        %824 = vmatprep.subr.mxu0 0.0
        %825 = vmatpush1.msra.mxu0 0.0
        %826 = vmatprep.subr.mxu0 0.0
        %827 = vmatpush1.msra.mxu0 0.0
        %828 = vmatprep.subr.mxu0 0.0
        %829 = vmatpush1.msra.mxu0 0.0
        %830 = vmatprep.subr.mxu0 0.0
        %831 = vmatpush1.msra.mxu0 0.0
        %832 = vmatprep.subr.mxu0 0.0
        %833 = vmatpush1.msra.mxu0 0.0
        %834 = vmatprep.subr.mxu0 0.0
        %835 = vmatpush1.msra.mxu0 0.0
        %836 = vmatprep.subr.mxu0 0.0
        %837 = vmatpush1.msra.mxu0 0.0
        %838 = vmatprep.subr.mxu0 0.0
        %839 = vmatpush1.msra.mxu0 0.0
        %840 = vmatprep.subr.mxu0 0.0
        %841 = vmatpush1.msra.mxu0 0.0
        %842 = vmatprep.subr.mxu0 0.0
        %843 = vmatpush1.msra.mxu0 0.0
        %844 = vmatprep.subr.mxu0 0.0
        %845 = vmatpush1.msra.mxu0 %v602
        %846 = vmatprep.subr.mxu0 0.0
        %847 = vmatpush1.msra.mxu0 %v601
        %848 = vmatprep.subr.mxu0 0.0
        %849 = vmatpush1.msra.mxu0 %v600
        %850 = vmatprep.subr.mxu0 0.0
        %851 = vmatpush1.msra.mxu0 %v599
        %852 = vmatprep.subr.mxu0 0.0
        %853 = vmatpush2.msra.mxu0 0.0
        %854 = vmatprep.subr.mxu0 0.0
        %855 = vmatpush2.msra.mxu0 0.0
        %856 = vmatprep.subr.mxu0 0.0
        %857 = vmatpush2.msra.mxu0 0.0
        %858 = vmatprep.subr.mxu0 0.0
        %859 = vmatpush2.msra.mxu0 0.0
        %860 = vmatprep.subr.mxu0 0.0
        %861 = vmatpush2.msra.mxu0 0.0
        %862 = vmatprep.subr.mxu0 0.0
        %863 = vmatpush2.msra.mxu0 0.0
        %864 = vmatprep.subr.mxu0 0.0
        %865 = vmatpush2.msra.mxu0 0.0
        %866 = vmatprep.subr.mxu0 0.0
        %867 = vmatpush2.msra.mxu0 0.0
        %868 = vmatprep.subr.mxu0 0.0
        %869 = vmatpush2.msra.mxu0 0.0
        %870 = vmatprep.subr.mxu0 0.0
        %871 = vmatpush2.msra.mxu0 0.0
        %872 = vmatprep.subr.mxu0 0.0
        %873 = vmatpush2.msra.mxu0 0.0
        %874 = vmatprep.subr.mxu0 0.0
        %875 = vmatpush2.msra.mxu0 0.0
        %876 = vmatprep.subr.mxu0 0.0
        %877 = vmatpush2.msra.mxu0 0.0
        %878 = vmatprep.subr.mxu0 0.0
        %879 = vmatpush2.msra.mxu0 0.0
        %880 = vmatprep.subr.mxu0 0.0
        %881 = vmatpush2.msra.mxu0 0.0
        %882 = vmatprep.subr.mxu0 0.0
        %883 = vmatpush2.msra.mxu0 0.0
        %884 = vmatprep.mubr.f32.mxu0 0.0
        %885 = vmatmul.mubr.f32.gmra.mxu0 %v818
        %v886 = vpop.f32.mrf.mxu0
        %v887 = vadd.f32 0.0, %v886
        %v888 = vpop.f32.mrf.mxu0
        %889 = vdwg.mxu0
        %v891 = vrot.slane %v887, 7
        %v893 = vadd.f32 %v713, %v891
        %v894 = vxor.u32 %v893, 2147483648
        %v895 = vmul.f32 %v894, 1.442695
        %v896 = vpow.pop %v895
        %v897 = vadd.f32 %v896, 1.0
        %v898 = vrcp.pop %v897
        %v899 = vmul.f32 1.0, %v898
        %v900 = vtanh.pop %v893
        %v902 = vrot.slane %v808, 7
        %v904 = vmul.f32 %v899, %v902
        %906 = vrot.lane.b32.xlu0 %v900, 64
        %v907 = vpop.permute.xlu0 %906
        %v909 = vmul.f32 %v899, %v907
        %911 = vrot.lane.b32.xlu0 %v909, 32
        %v912 = vpop.permute.xlu0 %911
        %v914 = vadd.f32 %v904, %v912
        %v915 = vtanh.pop %v914
        %917 = vrot.lane.b32.xlu0 %v915, 64
        %v918 = vpop.permute.xlu0 %917
        %v920 = vmul.f32 %v899, %v918
        %v922 = vrot.slane %v920, 1
        %923 = vrot.lane.b32.xlu0 %v922, 32
        %v924 = vpop.permute.xlu0 %923
        %v925 = vsel %vm716, %v924, 0
        %927 = vmatprep.subr.mxu0 0.0
        %928 = vmatpush1.msra.mxu0 0.0
        %929 = vmatprep.subr.mxu0 0.0
        %930 = vmatpush1.msra.mxu0 0.0
        %931 = vmatprep.subr.mxu0 0.0
        %932 = vmatpush1.msra.mxu0 0.0
        %933 = vmatprep.subr.mxu0 0.0
        %934 = vmatpush1.msra.mxu0 0.0
        %935 = vmatprep.subr.mxu0 0.0
        %936 = vmatpush1.msra.mxu0 0.0
        %937 = vmatprep.subr.mxu0 0.0
        %938 = vmatpush1.msra.mxu0 0.0
        %939 = vmatprep.subr.mxu0 0.0
        %940 = vmatpush1.msra.mxu0 0.0
        %941 = vmatprep.subr.mxu0 0.0
        %942 = vmatpush1.msra.mxu0 0.0
        %943 = vmatprep.subr.mxu0 0.0
        %944 = vmatpush1.msra.mxu0 0.0
        %945 = vmatprep.subr.mxu0 0.0
        %946 = vmatpush1.msra.mxu0 0.0
        %947 = vmatprep.subr.mxu0 0.0
        %948 = vmatpush1.msra.mxu0 0.0
        %949 = vmatprep.subr.mxu0 0.0
        %950 = vmatpush1.msra.mxu0 0.0
        %951 = vmatprep.subr.mxu0 0.0
        %952 = vmatpush1.msra.mxu0 %v602
        %953 = vmatprep.subr.mxu0 0.0
        %954 = vmatpush1.msra.mxu0 %v601
        %955 = vmatprep.subr.mxu0 0.0
        %956 = vmatpush1.msra.mxu0 %v600
        %957 = vmatprep.subr.mxu0 0.0
        %958 = vmatpush1.msra.mxu0 %v599
        %959 = vmatprep.subr.mxu0 0.0
        %960 = vmatpush2.msra.mxu0 0.0
        %961 = vmatprep.subr.mxu0 0.0
        %962 = vmatpush2.msra.mxu0 0.0
        %963 = vmatprep.subr.mxu0 0.0
        %964 = vmatpush2.msra.mxu0 0.0
        %965 = vmatprep.subr.mxu0 0.0
        %966 = vmatpush2.msra.mxu0 0.0
        %967 = vmatprep.subr.mxu0 0.0
        %968 = vmatpush2.msra.mxu0 0.0
        %969 = vmatprep.subr.mxu0 0.0
        %970 = vmatpush2.msra.mxu0 0.0
        %971 = vmatprep.subr.mxu0 0.0
        %972 = vmatpush2.msra.mxu0 0.0
        %973 = vmatprep.subr.mxu0 0.0
        %974 = vmatpush2.msra.mxu0 0.0
        %975 = vmatprep.subr.mxu0 0.0
        %976 = vmatpush2.msra.mxu0 0.0
        %977 = vmatprep.subr.mxu0 0.0
        %978 = vmatpush2.msra.mxu0 0.0
        %979 = vmatprep.subr.mxu0 0.0
        %980 = vmatpush2.msra.mxu0 0.0
        %981 = vmatprep.subr.mxu0 0.0
        %982 = vmatpush2.msra.mxu0 0.0
        %983 = vmatprep.subr.mxu0 0.0
        %984 = vmatpush2.msra.mxu0 0.0
        %985 = vmatprep.subr.mxu0 0.0
        %986 = vmatpush2.msra.mxu0 0.0
        %987 = vmatprep.subr.mxu0 0.0
        %988 = vmatpush2.msra.mxu0 0.0
        %989 = vmatprep.subr.mxu0 0.0
        %990 = vmatpush2.msra.mxu0 0.0
        %991 = vmatprep.mubr.f32.mxu0 0.0
        %992 = vmatmul.mubr.f32.gmra.mxu0 %v925
        %v993 = vpop.f32.mrf.mxu0
        %v994 = vadd.f32 0.0, %v993
        %v995 = vpop.f32.mrf.mxu0
        %996 = vdwg.mxu0
        %v998 = vrot.slane %v994, 6
        %v1000 = vadd.f32 %v713, %v998
        %v1001 = vxor.u32 %v1000, 2147483648
        %v1002 = vmul.f32 %v1001, 1.442695
        %v1003 = vpow.pop %v1002
        %v1004 = vadd.f32 %v1003, 1.0
        %v1005 = vrcp.pop %v1004
        %v1006 = vmul.f32 1.0, %v1005
        %v1007 = vtanh.pop %v1000
        %v1009 = vrot.slane %v914, 7
        %v1011 = vmul.f32 %v1006, %v1009
        %1013 = vrot.lane.b32.xlu0 %v1007, 64
        %v1014 = vpop.permute.xlu0 %1013
        %v1016 = vmul.f32 %v1006, %v1014
        %1018 = vrot.lane.b32.xlu0 %v1016, 32
        %v1019 = vpop.permute.xlu0 %1018
        %v1021 = vadd.f32 %v1011, %v1019
        %v1022 = vtanh.pop %v1021
        %1024 = vrot.lane.b32.xlu0 %v1022, 64
        %v1025 = vpop.permute.xlu0 %1024
        %v1027 = vmul.f32 %v1006, %v1025
        %v1029 = vrot.slane %v1027, 2
        %1030 = vrot.lane.b32.xlu0 %v1029, 32
        %v1031 = vpop.permute.xlu0 %1030
        %v1032 = vsel %vm716, %v1031, 0
        %1034 = vmatprep.subr.mxu0 0.0
        %1035 = vmatpush1.msra.mxu0 0.0
        %1036 = vmatprep.subr.mxu0 0.0
        %1037 = vmatpush1.msra.mxu0 0.0
        %1038 = vmatprep.subr.mxu0 0.0
        %1039 = vmatpush1.msra.mxu0 0.0
        %1040 = vmatprep.subr.mxu0 0.0
        %1041 = vmatpush1.msra.mxu0 0.0
        %1042 = vmatprep.subr.mxu0 0.0
        %1043 = vmatpush1.msra.mxu0 0.0
        %1044 = vmatprep.subr.mxu0 0.0
        %1045 = vmatpush1.msra.mxu0 0.0
        %1046 = vmatprep.subr.mxu0 0.0
        %1047 = vmatpush1.msra.mxu0 0.0
        %1048 = vmatprep.subr.mxu0 0.0
        %1049 = vmatpush1.msra.mxu0 0.0
        %1050 = vmatprep.subr.mxu0 0.0
        %1051 = vmatpush1.msra.mxu0 0.0
        %1052 = vmatprep.subr.mxu0 0.0
        %1053 = vmatpush1.msra.mxu0 0.0
        %1054 = vmatprep.subr.mxu0 0.0
        %1055 = vmatpush1.msra.mxu0 0.0
        %1056 = vmatprep.subr.mxu0 0.0
        %1057 = vmatpush1.msra.mxu0 0.0
        %1058 = vmatprep.subr.mxu0 0.0
        %1059 = vmatpush1.msra.mxu0 %v602
        %1060 = vmatprep.subr.mxu0 0.0
        %1061 = vmatpush1.msra.mxu0 %v601
        %1062 = vmatprep.subr.mxu0 0.0
        %1063 = vmatpush1.msra.mxu0 %v600
        %1064 = vmatprep.subr.mxu0 0.0
        %1065 = vmatpush1.msra.mxu0 %v599
        %1066 = vmatprep.subr.mxu0 0.0
        %1067 = vmatpush2.msra.mxu0 0.0
        %1068 = vmatprep.subr.mxu0 0.0
        %1069 = vmatpush2.msra.mxu0 0.0
        %1070 = vmatprep.subr.mxu0 0.0
        %1071 = vmatpush2.msra.mxu0 0.0
        %1072 = vmatprep.subr.mxu0 0.0
        %1073 = vmatpush2.msra.mxu0 0.0
        %1074 = vmatprep.subr.mxu0 0.0
        %1075 = vmatpush2.msra.mxu0 0.0
        %1076 = vmatprep.subr.mxu0 0.0
        %1077 = vmatpush2.msra.mxu0 0.0
        %1078 = vmatprep.subr.mxu0 0.0
        %1079 = vmatpush2.msra.mxu0 0.0
        %1080 = vmatprep.subr.mxu0 0.0
        %1081 = vmatpush2.msra.mxu0 0.0
        %1082 = vmatprep.subr.mxu0 0.0
        %1083 = vmatpush2.msra.mxu0 0.0
        %1084 = vmatprep.subr.mxu0 0.0
        %1085 = vmatpush2.msra.mxu0 0.0
        %1086 = vmatprep.subr.mxu0 0.0
        %1087 = vmatpush2.msra.mxu0 0.0
        %1088 = vmatprep.subr.mxu0 0.0
        %1089 = vmatpush2.msra.mxu0 0.0
        %1090 = vmatprep.subr.mxu0 0.0
        %1091 = vmatpush2.msra.mxu0 0.0
        %1092 = vmatprep.subr.mxu0 0.0
        %1093 = vmatpush2.msra.mxu0 0.0
        %1094 = vmatprep.subr.mxu0 0.0
        %1095 = vmatpush2.msra.mxu0 0.0
        %1096 = vmatprep.subr.mxu0 0.0
        %1097 = vmatpush2.msra.mxu0 0.0
        %1098 = vmatprep.mubr.f32.mxu0 0.0
        %1099 = vmatmul.mubr.f32.gmra.mxu0 %v1032
        %v1100 = vpop.f32.mrf.mxu0
        %v1101 = vadd.f32 0.0, %v1100
        %v1102 = vpop.f32.mrf.mxu0
        %1103 = vdwg.mxu0
        %v1105 = vrot.slane %v1101, 5
        %v1107 = vadd.f32 %v713, %v1105
        %v1108 = vxor.u32 %v1107, 2147483648
        %v1109 = vmul.f32 %v1108, 1.442695
        %v1110 = vpow.pop %v1109
        %v1111 = vadd.f32 %v1110, 1.0
        %v1112 = vrcp.pop %v1111
        %v1113 = vmul.f32 1.0, %v1112
        %v1114 = vtanh.pop %v1107
        %v1116 = vrot.slane %v1021, 7
        %v1118 = vmul.f32 %v1113, %v1116
        %1120 = vrot.lane.b32.xlu0 %v1114, 64
        %v1121 = vpop.permute.xlu0 %1120
        %v1123 = vmul.f32 %v1113, %v1121
        %1125 = vrot.lane.b32.xlu0 %v1123, 32
        %v1126 = vpop.permute.xlu0 %1125
        %v1128 = vadd.f32 %v1118, %v1126
        %v1129 = vtanh.pop %v1128
        %1131 = vrot.lane.b32.xlu0 %v1129, 64
        %v1132 = vpop.permute.xlu0 %1131
        %v1134 = vmul.f32 %v1113, %v1132
        %v1136 = vrot.slane %v1134, 3
        %1137 = vrot.lane.b32.xlu0 %v1136, 32
        %v1138 = vpop.permute.xlu0 %1137
        %v1139 = vsel %vm716, %v1138, 0
        %1141 = vmatprep.subr.mxu0 0.0
        %1142 = vmatpush1.msra.mxu0 0.0
        %1143 = vmatprep.subr.mxu0 0.0
        %1144 = vmatpush1.msra.mxu0 0.0
        %1145 = vmatprep.subr.mxu0 0.0
        %1146 = vmatpush1.msra.mxu0 0.0
        %1147 = vmatprep.subr.mxu0 0.0
        %1148 = vmatpush1.msra.mxu0 0.0
        %1149 = vmatprep.subr.mxu0 0.0
        %1150 = vmatpush1.msra.mxu0 0.0
        %1151 = vmatprep.subr.mxu0 0.0
        %1152 = vmatpush1.msra.mxu0 0.0
        %1153 = vmatprep.subr.mxu0 0.0
        %1154 = vmatpush1.msra.mxu0 0.0
        %1155 = vmatprep.subr.mxu0 0.0
        %1156 = vmatpush1.msra.mxu0 0.0
        %1157 = vmatprep.subr.mxu0 0.0
        %1158 = vmatpush1.msra.mxu0 0.0
        %1159 = vmatprep.subr.mxu0 0.0
        %1160 = vmatpush1.msra.mxu0 0.0
        %1161 = vmatprep.subr.mxu0 0.0
        %1162 = vmatpush1.msra.mxu0 0.0
        %1163 = vmatprep.subr.mxu0 0.0
        %1164 = vmatpush1.msra.mxu0 0.0
        %1165 = vmatprep.subr.mxu0 0.0
        %1166 = vmatpush1.msra.mxu0 %v602
        %1167 = vmatprep.subr.mxu0 0.0
        %1168 = vmatpush1.msra.mxu0 %v601
        %1169 = vmatprep.subr.mxu0 0.0
        %1170 = vmatpush1.msra.mxu0 %v600
        %1171 = vmatprep.subr.mxu0 0.0
        %1172 = vmatpush1.msra.mxu0 %v599
        %1173 = vmatprep.subr.mxu0 0.0
        %1174 = vmatpush2.msra.mxu0 0.0
        %1175 = vmatprep.subr.mxu0 0.0
        %1176 = vmatpush2.msra.mxu0 0.0
        %1177 = vmatprep.subr.mxu0 0.0
        %1178 = vmatpush2.msra.mxu0 0.0
        %1179 = vmatprep.subr.mxu0 0.0
        %1180 = vmatpush2.msra.mxu0 0.0
        %1181 = vmatprep.subr.mxu0 0.0
        %1182 = vmatpush2.msra.mxu0 0.0
        %1183 = vmatprep.subr.mxu0 0.0
        %1184 = vmatpush2.msra.mxu0 0.0
        %1185 = vmatprep.subr.mxu0 0.0
        %1186 = vmatpush2.msra.mxu0 0.0
        %1187 = vmatprep.subr.mxu0 0.0
        %1188 = vmatpush2.msra.mxu0 0.0
        %1189 = vmatprep.subr.mxu0 0.0
        %1190 = vmatpush2.msra.mxu0 0.0
        %1191 = vmatprep.subr.mxu0 0.0
        %1192 = vmatpush2.msra.mxu0 0.0
        %1193 = vmatprep.subr.mxu0 0.0
        %1194 = vmatpush2.msra.mxu0 0.0
        %1195 = vmatprep.subr.mxu0 0.0
        %1196 = vmatpush2.msra.mxu0 0.0
        %1197 = vmatprep.subr.mxu0 0.0
        %1198 = vmatpush2.msra.mxu0 0.0
        %1199 = vmatprep.subr.mxu0 0.0
        %1200 = vmatpush2.msra.mxu0 0.0
        %1201 = vmatprep.subr.mxu0 0.0
        %1202 = vmatpush2.msra.mxu0 0.0
        %1203 = vmatprep.subr.mxu0 0.0
        %1204 = vmatpush2.msra.mxu0 0.0
        %1205 = vmatprep.mubr.f32.mxu0 0.0
        %1206 = vmatmul.mubr.f32.gmra.mxu0 %v1139
        %v1207 = vpop.f32.mrf.mxu0
        %v1208 = vadd.f32 0.0, %v1207
        %v1209 = vpop.f32.mrf.mxu0
        %1210 = vdwg.mxu0
        %v1212 = vrot.slane %v1208, 4
        %v1214 = vadd.f32 %v713, %v1212
        %v1215 = vxor.u32 %v1214, 2147483648
        %v1216 = vmul.f32 %v1215, 1.442695
        %v1217 = vpow.pop %v1216
        %v1218 = vadd.f32 %v1217, 1.0
        %v1219 = vrcp.pop %v1218
        %v1220 = vmul.f32 1.0, %v1219
        %v1221 = vtanh.pop %v1214
        %v1223 = vrot.slane %v1128, 7
        %v1225 = vmul.f32 %v1220, %v1223
        %1227 = vrot.lane.b32.xlu0 %v1221, 64
        %v1228 = vpop.permute.xlu0 %1227
        %v1230 = vmul.f32 %v1220, %v1228
        %1232 = vrot.lane.b32.xlu0 %v1230, 32
        %v1233 = vpop.permute.xlu0 %1232
        %v1235 = vadd.f32 %v1225, %v1233
        %v1236 = vtanh.pop %v1235
        %1238 = vrot.lane.b32.xlu0 %v1236, 64
        %v1239 = vpop.permute.xlu0 %1238
        %v1241 = vmul.f32 %v1220, %v1239
        %v1243 = vrot.slane %v1241, 4
        %1244 = vrot.lane.b32.xlu0 %v1243, 32
        %v1245 = vpop.permute.xlu0 %1244
        %v1246 = vsel %vm716, %v1245, 0
        %1248 = vmatprep.subr.mxu0 0.0
        %1249 = vmatpush1.msra.mxu0 0.0
        %1250 = vmatprep.subr.mxu0 0.0
        %1251 = vmatpush1.msra.mxu0 0.0
        %1252 = vmatprep.subr.mxu0 0.0
        %1253 = vmatpush1.msra.mxu0 0.0
        %1254 = vmatprep.subr.mxu0 0.0
        %1255 = vmatpush1.msra.mxu0 0.0
        %1256 = vmatprep.subr.mxu0 0.0
        %1257 = vmatpush1.msra.mxu0 0.0
        %1258 = vmatprep.subr.mxu0 0.0
        %1259 = vmatpush1.msra.mxu0 0.0
        %1260 = vmatprep.subr.mxu0 0.0
        %1261 = vmatpush1.msra.mxu0 0.0
        %1262 = vmatprep.subr.mxu0 0.0
        %1263 = vmatpush1.msra.mxu0 0.0
        %1264 = vmatprep.subr.mxu0 0.0
        %1265 = vmatpush1.msra.mxu0 0.0
        %1266 = vmatprep.subr.mxu0 0.0
        %1267 = vmatpush1.msra.mxu0 0.0
        %1268 = vmatprep.subr.mxu0 0.0
        %1269 = vmatpush1.msra.mxu0 0.0
        %1270 = vmatprep.subr.mxu0 0.0
        %1271 = vmatpush1.msra.mxu0 0.0
        %1272 = vmatprep.subr.mxu0 0.0
        %1273 = vmatpush1.msra.mxu0 %v602
        %1274 = vmatprep.subr.mxu0 0.0
        %1275 = vmatpush1.msra.mxu0 %v601
        %1276 = vmatprep.subr.mxu0 0.0
        %1277 = vmatpush1.msra.mxu0 %v600
        %1278 = vmatprep.subr.mxu0 0.0
        %1279 = vmatpush1.msra.mxu0 %v599
        %1280 = vmatprep.subr.mxu0 0.0
        %1281 = vmatpush2.msra.mxu0 0.0
        %1282 = vmatprep.subr.mxu0 0.0
        %1283 = vmatpush2.msra.mxu0 0.0
        %1284 = vmatprep.subr.mxu0 0.0
        %1285 = vmatpush2.msra.mxu0 0.0
        %1286 = vmatprep.subr.mxu0 0.0
        %1287 = vmatpush2.msra.mxu0 0.0
        %1288 = vmatprep.subr.mxu0 0.0
        %1289 = vmatpush2.msra.mxu0 0.0
        %1290 = vmatprep.subr.mxu0 0.0
        %1291 = vmatpush2.msra.mxu0 0.0
        %1292 = vmatprep.subr.mxu0 0.0
        %1293 = vmatpush2.msra.mxu0 0.0
        %1294 = vmatprep.subr.mxu0 0.0
        %1295 = vmatpush2.msra.mxu0 0.0
        %1296 = vmatprep.subr.mxu0 0.0
        %1297 = vmatpush2.msra.mxu0 0.0
        %1298 = vmatprep.subr.mxu0 0.0
        %1299 = vmatpush2.msra.mxu0 0.0
        %1300 = vmatprep.subr.mxu0 0.0
        %1301 = vmatpush2.msra.mxu0 0.0
        %1302 = vmatprep.subr.mxu0 0.0
        %1303 = vmatpush2.msra.mxu0 0.0
        %1304 = vmatprep.subr.mxu0 0.0
        %1305 = vmatpush2.msra.mxu0 0.0
        %1306 = vmatprep.subr.mxu0 0.0
        %1307 = vmatpush2.msra.mxu0 0.0
        %1308 = vmatprep.subr.mxu0 0.0
        %1309 = vmatpush2.msra.mxu0 0.0
        %1310 = vmatprep.subr.mxu0 0.0
        %1311 = vmatpush2.msra.mxu0 0.0
        %1312 = vmatprep.mubr.f32.mxu0 0.0
        %1313 = vmatmul.mubr.f32.gmra.mxu0 %v1246
        %v1314 = vpop.f32.mrf.mxu0
        %v1315 = vadd.f32 0.0, %v1314
        %v1316 = vpop.f32.mrf.mxu0
        %1317 = vdwg.mxu0
        %v1319 = vrot.slane %v1315, 3
        %v1321 = vadd.f32 %v713, %v1319
        %v1322 = vxor.u32 %v1321, 2147483648
        %v1323 = vmul.f32 %v1322, 1.442695
        %v1324 = vpow.pop %v1323
        %v1325 = vadd.f32 %v1324, 1.0
        %v1326 = vrcp.pop %v1325
        %v1327 = vmul.f32 1.0, %v1326
        %v1328 = vtanh.pop %v1321
        %v1330 = vrot.slane %v1235, 7
        %v1332 = vmul.f32 %v1327, %v1330
        %1334 = vrot.lane.b32.xlu0 %v1328, 64
        %v1335 = vpop.permute.xlu0 %1334
        %v1337 = vmul.f32 %v1327, %v1335
        %1339 = vrot.lane.b32.xlu0 %v1337, 32
        %v1340 = vpop.permute.xlu0 %1339
        %v1342 = vadd.f32 %v1332, %v1340
        %v1343 = vtanh.pop %v1342
        %1345 = vrot.lane.b32.xlu0 %v1343, 64
        %v1346 = vpop.permute.xlu0 %1345
        %v1348 = vmul.f32 %v1327, %v1346
        %v1350 = vrot.slane %v1348, 5
        %1351 = vrot.lane.b32.xlu0 %v1350, 32
        %v1352 = vpop.permute.xlu0 %1351
        %v1353 = vsel %vm716, %v1352, 0
        %1355 = vmatprep.subr.mxu0 0.0
        %1356 = vmatpush1.msra.mxu0 0.0
        %1357 = vmatprep.subr.mxu0 0.0
        %1358 = vmatpush1.msra.mxu0 0.0
        %1359 = vmatprep.subr.mxu0 0.0
        %1360 = vmatpush1.msra.mxu0 0.0
        %1361 = vmatprep.subr.mxu0 0.0
        %1362 = vmatpush1.msra.mxu0 0.0
        %1363 = vmatprep.subr.mxu0 0.0
        %1364 = vmatpush1.msra.mxu0 0.0
        %1365 = vmatprep.subr.mxu0 0.0
        %1366 = vmatpush1.msra.mxu0 0.0
        %1367 = vmatprep.subr.mxu0 0.0
        %1368 = vmatpush1.msra.mxu0 0.0
        %1369 = vmatprep.subr.mxu0 0.0
        %1370 = vmatpush1.msra.mxu0 0.0
        %1371 = vmatprep.subr.mxu0 0.0
        %1372 = vmatpush1.msra.mxu0 0.0
        %1373 = vmatprep.subr.mxu0 0.0
        %1374 = vmatpush1.msra.mxu0 0.0
        %1375 = vmatprep.subr.mxu0 0.0
        %1376 = vmatpush1.msra.mxu0 0.0
        %1377 = vmatprep.subr.mxu0 0.0
        %1378 = vmatpush1.msra.mxu0 0.0
        %1379 = vmatprep.subr.mxu0 0.0
        %1380 = vmatpush1.msra.mxu0 %v602
        %1381 = vmatprep.subr.mxu0 0.0
        %1382 = vmatpush1.msra.mxu0 %v601
        %1383 = vmatprep.subr.mxu0 0.0
        %1384 = vmatpush1.msra.mxu0 %v600
        %1385 = vmatprep.subr.mxu0 0.0
        %1386 = vmatpush1.msra.mxu0 %v599
        %1387 = vmatprep.subr.mxu0 0.0
        %1388 = vmatpush2.msra.mxu0 0.0
        %1389 = vmatprep.subr.mxu0 0.0
        %1390 = vmatpush2.msra.mxu0 0.0
        %1391 = vmatprep.subr.mxu0 0.0
        %1392 = vmatpush2.msra.mxu0 0.0
        %1393 = vmatprep.subr.mxu0 0.0
        %1394 = vmatpush2.msra.mxu0 0.0
        %1395 = vmatprep.subr.mxu0 0.0
        %1396 = vmatpush2.msra.mxu0 0.0
        %1397 = vmatprep.subr.mxu0 0.0
        %1398 = vmatpush2.msra.mxu0 0.0
        %1399 = vmatprep.subr.mxu0 0.0
        %1400 = vmatpush2.msra.mxu0 0.0
        %1401 = vmatprep.subr.mxu0 0.0
        %1402 = vmatpush2.msra.mxu0 0.0
        %1403 = vmatprep.subr.mxu0 0.0
        %1404 = vmatpush2.msra.mxu0 0.0
        %1405 = vmatprep.subr.mxu0 0.0
        %1406 = vmatpush2.msra.mxu0 0.0
        %1407 = vmatprep.subr.mxu0 0.0
        %1408 = vmatpush2.msra.mxu0 0.0
        %1409 = vmatprep.subr.mxu0 0.0
        %1410 = vmatpush2.msra.mxu0 0.0
        %1411 = vmatprep.subr.mxu0 0.0
        %1412 = vmatpush2.msra.mxu0 0.0
        %1413 = vmatprep.subr.mxu0 0.0
        %1414 = vmatpush2.msra.mxu0 0.0
        %1415 = vmatprep.subr.mxu0 0.0
        %1416 = vmatpush2.msra.mxu0 0.0
        %1417 = vmatprep.subr.mxu0 0.0
        %1418 = vmatpush2.msra.mxu0 0.0
        %1419 = vmatprep.mubr.f32.mxu0 0.0
        %1420 = vmatmul.mubr.f32.gmra.mxu0 %v1353
        %v1421 = vpop.f32.mrf.mxu0
        %v1422 = vadd.f32 0.0, %v1421
        %v1423 = vpop.f32.mrf.mxu0
        %1424 = vdwg.mxu0
        %v1426 = vrot.slane %v1422, 2
        %v1428 = vadd.f32 %v713, %v1426
        %v1429 = vxor.u32 %v1428, 2147483648
        %v1430 = vmul.f32 %v1429, 1.442695
        %v1431 = vpow.pop %v1430
        %v1432 = vadd.f32 %v1431, 1.0
        %v1433 = vrcp.pop %v1432
        %v1434 = vmul.f32 1.0, %v1433
        %v1435 = vtanh.pop %v1428
        %v1437 = vrot.slane %v1342, 7
        %v1439 = vmul.f32 %v1434, %v1437
        %1441 = vrot.lane.b32.xlu0 %v1435, 64
        %v1442 = vpop.permute.xlu0 %1441
        %v1444 = vmul.f32 %v1434, %v1442
        %1446 = vrot.lane.b32.xlu0 %v1444, 32
        %v1447 = vpop.permute.xlu0 %1446
        %v1449 = vadd.f32 %v1439, %v1447
        %v1450 = vtanh.pop %v1449
        %1452 = vrot.lane.b32.xlu0 %v1450, 64
        %v1453 = vpop.permute.xlu0 %1452
        %v1455 = vmul.f32 %v1434, %v1453
        %v1457 = vrot.slane %v1455, 6
        %1458 = vrot.lane.b32.xlu0 %v1457, 32
        %v1459 = vpop.permute.xlu0 %1458
        %v1460 = vsel %vm716, %v1459, 0
        %1462 = vmatprep.subr.mxu0 0.0
        %1463 = vmatpush1.msra.mxu0 0.0
        %1464 = vmatprep.subr.mxu0 0.0
        %1465 = vmatpush1.msra.mxu0 0.0
        %1466 = vmatprep.subr.mxu0 0.0
        %1467 = vmatpush1.msra.mxu0 0.0
        %1468 = vmatprep.subr.mxu0 0.0
        %1469 = vmatpush1.msra.mxu0 0.0
        %1470 = vmatprep.subr.mxu0 0.0
        %1471 = vmatpush1.msra.mxu0 0.0
        %1472 = vmatprep.subr.mxu0 0.0
        %1473 = vmatpush1.msra.mxu0 0.0
        %1474 = vmatprep.subr.mxu0 0.0
        %1475 = vmatpush1.msra.mxu0 0.0
        %1476 = vmatprep.subr.mxu0 0.0
        %1477 = vmatpush1.msra.mxu0 0.0
        %1478 = vmatprep.subr.mxu0 0.0
        %1479 = vmatpush1.msra.mxu0 0.0
        %1480 = vmatprep.subr.mxu0 0.0
        %1481 = vmatpush1.msra.mxu0 0.0
        %1482 = vmatprep.subr.mxu0 0.0
        %1483 = vmatpush1.msra.mxu0 0.0
        %1484 = vmatprep.subr.mxu0 0.0
        %1485 = vmatpush1.msra.mxu0 0.0
        %1486 = vmatprep.subr.mxu0 0.0
        %1487 = vmatpush1.msra.mxu0 %v602
        %1488 = vmatprep.subr.mxu0 0.0
        %1489 = vmatpush1.msra.mxu0 %v601
        %1490 = vmatprep.subr.mxu0 0.0
        %1491 = vmatpush1.msra.mxu0 %v600
        %1492 = vmatprep.subr.mxu0 0.0
        %1493 = vmatpush1.msra.mxu0 %v599
        %1494 = vmatprep.subr.mxu0 0.0
        %1495 = vmatpush2.msra.mxu0 0.0
        %1496 = vmatprep.subr.mxu0 0.0
        %1497 = vmatpush2.msra.mxu0 0.0
        %1498 = vmatprep.subr.mxu0 0.0
        %1499 = vmatpush2.msra.mxu0 0.0
        %1500 = vmatprep.subr.mxu0 0.0
        %1501 = vmatpush2.msra.mxu0 0.0
        %1502 = vmatprep.subr.mxu0 0.0
        %1503 = vmatpush2.msra.mxu0 0.0
        %1504 = vmatprep.subr.mxu0 0.0
        %1505 = vmatpush2.msra.mxu0 0.0
        %1506 = vmatprep.subr.mxu0 0.0
        %1507 = vmatpush2.msra.mxu0 0.0
        %1508 = vmatprep.subr.mxu0 0.0
        %1509 = vmatpush2.msra.mxu0 0.0
        %1510 = vmatprep.subr.mxu0 0.0
        %1511 = vmatpush2.msra.mxu0 0.0
        %1512 = vmatprep.subr.mxu0 0.0
        %1513 = vmatpush2.msra.mxu0 0.0
        %1514 = vmatprep.subr.mxu0 0.0
        %1515 = vmatpush2.msra.mxu0 0.0
        %1516 = vmatprep.subr.mxu0 0.0
        %1517 = vmatpush2.msra.mxu0 0.0
        %1518 = vmatprep.subr.mxu0 0.0
        %1519 = vmatpush2.msra.mxu0 0.0
        %1520 = vmatprep.subr.mxu0 0.0
        %1521 = vmatpush2.msra.mxu0 0.0
        %1522 = vmatprep.subr.mxu0 0.0
        %1523 = vmatpush2.msra.mxu0 0.0
        %1524 = vmatprep.subr.mxu0 0.0
        %1525 = vmatpush2.msra.mxu0 0.0
        %1526 = vmatprep.mubr.f32.mxu0 0.0
        %1527 = vmatmul.mubr.f32.gmra.mxu0 %v1460
        %v1528 = vpop.f32.mrf.mxu0
        %v1529 = vadd.f32 0.0, %v1528
        %v1530 = vpop.f32.mrf.mxu0
        %1531 = vdwg.mxu0
        %v1533 = vrot.slane %v1529, 1
        %v1535 = vadd.f32 %v713, %v1533
        %v1536 = vxor.u32 %v1535, 2147483648
        %v1537 = vmul.f32 %v1536, 1.442695
        %v1538 = vpow.pop %v1537
        %v1539 = vadd.f32 %v1538, 1.0
        %v1540 = vrcp.pop %v1539
        %v1541 = vmul.f32 1.0, %v1540
        %v1542 = vtanh.pop %v1535
        %v1544 = vrot.slane %v1449, 7
        %v1546 = vmul.f32 %v1541, %v1544
        %1548 = vrot.lane.b32.xlu0 %v1542, 64
        %v1549 = vpop.permute.xlu0 %1548
        %v1551 = vmul.f32 %v1541, %v1549
        %1553 = vrot.lane.b32.xlu0 %v1551, 32
        %v1554 = vpop.permute.xlu0 %1553
        %v1556 = vadd.f32 %v1546, %v1554
        %v1557 = vtanh.pop %v1556
        %1559 = vrot.lane.b32.xlu0 %v1557, 64
        %v1560 = vpop.permute.xlu0 %1559
        %v1562 = vmul.f32 %v1541, %v1560
        %v1564 = vrot.slane %v1562, 7
        %v1566 = vlaneseq
        %v1567 = vshrl.u32 %v1566, 7
        %v1568 = vsub.s32 0, %v1567
        %v1569 = vrot.slane %v612, %v1568
        %v1571 = vrot.slane %v922, 7
        %vm1572 = vcmask 1041409
        %v1573 = vsel %vm1572, %v1571, %v814
        %v1574 = vrot.slane %v1029, 6
        %vm1575 = vcmask 1042434
        %v1576 = vsel %vm1575, %v1574, %v1573
        %v1577 = vrot.slane %v1136, 5
        %vm1578 = vcmask 1043459
        %v1579 = vsel %vm1578, %v1577, %v1576
        %v1580 = vrot.slane %v1243, 4
        %vm1581 = vcmask 1044484
        %v1582 = vsel %vm1581, %v1580, %v1579
        %v1583 = vrot.slane %v1350, 3
        %vm1584 = vcmask 1045509
        %v1585 = vsel %vm1584, %v1583, %v1582
        %v1586 = vrot.slane %v1457, 2
        %vm1587 = vcmask 1046534
        %v1588 = vsel %vm1587, %v1586, %v1585
        %v1589 = vrot.slane %v1564, 1
        %vm1590 = vcmask 1047559
        %v1591 = vsel %vm1590, %v1589, %v1588
        %1592 = vrot.lane.b32.xlu0 %v1591, 32
        %v1593 = vpop.permute.xlu0 %1592
        %v1594 = vsel %vm716, %v1593, 0
        %1596 = vmatprep.subr.mxu0 0.0
        %1597 = vmatpush1.msra.mxu0 0.0
        %1598 = vmatprep.subr.mxu0 0.0
        %1599 = vmatpush1.msra.mxu0 0.0
        %1600 = vmatprep.subr.mxu0 0.0
        %1601 = vmatpush1.msra.mxu0 0.0
        %1602 = vmatprep.subr.mxu0 0.0
        %1603 = vmatpush1.msra.mxu0 0.0
        %1604 = vmatprep.subr.mxu0 0.0
        %1605 = vmatpush1.msra.mxu0 0.0
        %1606 = vmatprep.subr.mxu0 0.0
        %1607 = vmatpush1.msra.mxu0 0.0
        %1608 = vmatprep.subr.mxu0 0.0
        %1609 = vmatpush1.msra.mxu0 0.0
        %1610 = vmatprep.subr.mxu0 0.0
        %1611 = vmatpush1.msra.mxu0 0.0
        %1612 = vmatprep.subr.mxu0 0.0
        %1613 = vmatpush1.msra.mxu0 0.0
        %1614 = vmatprep.subr.mxu0 0.0
        %1615 = vmatpush1.msra.mxu0 0.0
        %1616 = vmatprep.subr.mxu0 0.0
        %1617 = vmatpush1.msra.mxu0 0.0
        %1618 = vmatprep.subr.mxu0 0.0
        %1619 = vmatpush1.msra.mxu0 0.0
        %1620 = vmatprep.subr.mxu0 0.0
        %1621 = vmatpush1.msra.mxu0 %v607
        %1622 = vmatprep.subr.mxu0 0.0
        %1623 = vmatpush1.msra.mxu0 %v606
        %1624 = vmatprep.subr.mxu0 0.0
        %1625 = vmatpush1.msra.mxu0 %v605
        %1626 = vmatprep.subr.mxu0 0.0
        %1627 = vmatpush1.msra.mxu0 %v604
        %1628 = vmatprep.subr.mxu0 0.0
        %1629 = vmatpush2.msra.mxu0 0.0
        %1630 = vmatprep.subr.mxu0 0.0
        %1631 = vmatpush2.msra.mxu0 0.0
        %1632 = vmatprep.subr.mxu0 0.0
        %1633 = vmatpush2.msra.mxu0 0.0
        %1634 = vmatprep.subr.mxu0 0.0
        %1635 = vmatpush2.msra.mxu0 0.0
        %1636 = vmatprep.subr.mxu0 0.0
        %1637 = vmatpush2.msra.mxu0 0.0
        %1638 = vmatprep.subr.mxu0 0.0
        %1639 = vmatpush2.msra.mxu0 0.0
        %1640 = vmatprep.subr.mxu0 0.0
        %1641 = vmatpush2.msra.mxu0 0.0
        %1642 = vmatprep.subr.mxu0 0.0
        %1643 = vmatpush2.msra.mxu0 0.0
        %1644 = vmatprep.subr.mxu0 0.0
        %1645 = vmatpush2.msra.mxu0 0.0
        %1646 = vmatprep.subr.mxu0 0.0
        %1647 = vmatpush2.msra.mxu0 0.0
        %1648 = vmatprep.subr.mxu0 0.0
        %1649 = vmatpush2.msra.mxu0 0.0
        %1650 = vmatprep.subr.mxu0 0.0
        %1651 = vmatpush2.msra.mxu0 0.0
        %1652 = vmatprep.subr.mxu0 0.0
        %1653 = vmatpush2.msra.mxu0 0.0
        %1654 = vmatprep.subr.mxu0 0.0
        %1655 = vmatpush2.msra.mxu0 0.0
        %1656 = vmatprep.subr.mxu0 0.0
        %1657 = vmatpush2.msra.mxu0 0.0
        %1658 = vmatprep.subr.mxu0 0.0
        %1659 = vmatpush2.msra.mxu0 0.0
        %1660 = vmatprep.mubr.f32.mxu0 0.0
        %1661 = vmatmul.mubr.f32.gmra.mxu0 %v1594
        %v1662 = vpop.f32.mrf.mxu0
        %v1663 = vadd.f32 %v1569, %v1662
        %v1664 = vpop.f32.mrf.mxu0
        %1665 = vdwg.mxu0
        %1666 = vmatprep.subr.mxu0 0.0
        %1667 = vmatpush1.msra.mxu0 0.0
        %1668 = vmatprep.subr.mxu0 0.0
        %1669 = vmatpush1.msra.mxu0 0.0
        %1670 = vmatprep.subr.mxu0 0.0
        %1671 = vmatpush1.msra.mxu0 0.0
        %1672 = vmatprep.subr.mxu0 0.0
        %1673 = vmatpush1.msra.mxu0 0.0
        %1674 = vmatprep.subr.mxu0 0.0
        %1675 = vmatpush1.msra.mxu0 0.0
        %1676 = vmatprep.subr.mxu0 0.0
        %1677 = vmatpush1.msra.mxu0 0.0
        %1678 = vmatprep.subr.mxu0 0.0
        %1679 = vmatpush1.msra.mxu0 0.0
        %1680 = vmatprep.subr.mxu0 0.0
        %1681 = vmatpush1.msra.mxu0 0.0
        %1682 = vmatprep.subr.mxu0 0.0
        %1683 = vmatpush1.msra.mxu0 0.0
        %1684 = vmatprep.subr.mxu0 0.0
        %1685 = vmatpush1.msra.mxu0 0.0
        %1686 = vmatprep.subr.mxu0 0.0
        %1687 = vmatpush1.msra.mxu0 0.0
        %1688 = vmatprep.subr.mxu0 0.0
        %1689 = vmatpush1.msra.mxu0 0.0
        %1690 = vmatprep.subr.mxu0 0.0
        %1691 = vmatpush1.msra.mxu0 %v611
        %1692 = vmatprep.subr.mxu0 0.0
        %1693 = vmatpush1.msra.mxu0 %v610
        %1694 = vmatprep.subr.mxu0 0.0
        %1695 = vmatpush1.msra.mxu0 %v609
        %1696 = vmatprep.subr.mxu0 0.0
        %1697 = vmatpush1.msra.mxu0 %v608
        %1698 = vmatprep.subr.mxu0 0.0
        %1699 = vmatpush2.msra.mxu0 0.0
        %1700 = vmatprep.subr.mxu0 0.0
        %1701 = vmatpush2.msra.mxu0 0.0
        %1702 = vmatprep.subr.mxu0 0.0
        %1703 = vmatpush2.msra.mxu0 0.0
        %1704 = vmatprep.subr.mxu0 0.0
        %1705 = vmatpush2.msra.mxu0 0.0
        %1706 = vmatprep.subr.mxu0 0.0
        %1707 = vmatpush2.msra.mxu0 0.0
        %1708 = vmatprep.subr.mxu0 0.0
        %1709 = vmatpush2.msra.mxu0 0.0
        %1710 = vmatprep.subr.mxu0 0.0
        %1711 = vmatpush2.msra.mxu0 0.0
        %1712 = vmatprep.subr.mxu0 0.0
        %1713 = vmatpush2.msra.mxu0 0.0
        %1714 = vmatprep.subr.mxu0 0.0
        %1715 = vmatpush2.msra.mxu0 0.0
        %1716 = vmatprep.subr.mxu0 0.0
        %1717 = vmatpush2.msra.mxu0 0.0
        %1718 = vmatprep.subr.mxu0 0.0
        %1719 = vmatpush2.msra.mxu0 0.0
        %1720 = vmatprep.subr.mxu0 0.0
        %1721 = vmatpush2.msra.mxu0 0.0
        %1722 = vmatprep.subr.mxu0 0.0
        %1723 = vmatpush2.msra.mxu0 0.0
        %1724 = vmatprep.subr.mxu0 0.0
        %1725 = vmatpush2.msra.mxu0 0.0
        %1726 = vmatprep.subr.mxu0 0.0
        %1727 = vmatpush2.msra.mxu0 0.0
        %1728 = vmatprep.subr.mxu0 0.0
        %1729 = vmatpush2.msra.mxu0 0.0
        %1730 = vmatprep.mubr.f32.mxu0 0.0
        %1731 = vmatmul.mubr.f32.gmra.mxu0 %v718
        %v1732 = vpop.f32.mrf.mxu0
        %v1733 = vadd.f32 0.0, %v1732
        %v1734 = vpop.f32.mrf.mxu0
        %1735 = vdwg.mxu0
        %v1736 = vadd.f32 %v1663, %v1733
        %v1737 = vxor.u32 %v1736, 2147483648
        %v1738 = vmul.f32 %v1737, 1.442695
        %v1739 = vpow.pop %v1738
        %v1740 = vadd.f32 %v1739, 1.0
        %v1741 = vrcp.pop %v1740
        %v1742 = vmul.f32 1.0, %v1741
        %v1743 = vtanh.pop %v1736
        %v1744 = vmul.f32 %v1742, 0.0
        %1746 = vrot.lane.b32.xlu0 %v1743, 64
        %v1747 = vpop.permute.xlu0 %1746
        %v1749 = vmul.f32 %v1742, %v1747
        %1751 = vrot.lane.b32.xlu0 %v1749, 32
        %v1752 = vpop.permute.xlu0 %1751
        %v1754 = vadd.f32 %v1744, %v1752
        %v1755 = vtanh.pop %v1754
        %1757 = vrot.lane.b32.xlu0 %v1755, 64
        %v1758 = vpop.permute.xlu0 %1757
        %v1760 = vmul.f32 %v1742, %v1758
        %1762 = vrot.lane.b32.xlu0 %v1760, 32
        %v1763 = vpop.permute.xlu0 %1762
        %v1764 = vsel %vm716, %v1763, 0
        %1766 = vmatprep.subr.mxu0 0.0
        %1767 = vmatpush1.msra.mxu0 0.0
        %1768 = vmatprep.subr.mxu0 0.0
        %1769 = vmatpush1.msra.mxu0 0.0
        %1770 = vmatprep.subr.mxu0 0.0
        %1771 = vmatpush1.msra.mxu0 0.0
        %1772 = vmatprep.subr.mxu0 0.0
        %1773 = vmatpush1.msra.mxu0 0.0
        %1774 = vmatprep.subr.mxu0 0.0
        %1775 = vmatpush1.msra.mxu0 0.0
        %1776 = vmatprep.subr.mxu0 0.0
        %1777 = vmatpush1.msra.mxu0 0.0
        %1778 = vmatprep.subr.mxu0 0.0
        %1779 = vmatpush1.msra.mxu0 0.0
        %1780 = vmatprep.subr.mxu0 0.0
        %1781 = vmatpush1.msra.mxu0 0.0
        %1782 = vmatprep.subr.mxu0 0.0
        %1783 = vmatpush1.msra.mxu0 0.0
        %1784 = vmatprep.subr.mxu0 0.0
        %1785 = vmatpush1.msra.mxu0 0.0
        %1786 = vmatprep.subr.mxu0 0.0
        %1787 = vmatpush1.msra.mxu0 0.0
        %1788 = vmatprep.subr.mxu0 0.0
        %1789 = vmatpush1.msra.mxu0 0.0
        %1790 = vmatprep.subr.mxu0 0.0
        %1791 = vmatpush1.msra.mxu0 %v611
        %1792 = vmatprep.subr.mxu0 0.0
        %1793 = vmatpush1.msra.mxu0 %v610
        %1794 = vmatprep.subr.mxu0 0.0
        %1795 = vmatpush1.msra.mxu0 %v609
        %1796 = vmatprep.subr.mxu0 0.0
        %1797 = vmatpush1.msra.mxu0 %v608
        %1798 = vmatprep.subr.mxu0 0.0
        %1799 = vmatpush2.msra.mxu0 0.0
        %1800 = vmatprep.subr.mxu0 0.0
        %1801 = vmatpush2.msra.mxu0 0.0
        %1802 = vmatprep.subr.mxu0 0.0
        %1803 = vmatpush2.msra.mxu0 0.0
        %1804 = vmatprep.subr.mxu0 0.0
        %1805 = vmatpush2.msra.mxu0 0.0
        %1806 = vmatprep.subr.mxu0 0.0
        %1807 = vmatpush2.msra.mxu0 0.0
        %1808 = vmatprep.subr.mxu0 0.0
        %1809 = vmatpush2.msra.mxu0 0.0
        %1810 = vmatprep.subr.mxu0 0.0
        %1811 = vmatpush2.msra.mxu0 0.0
        %1812 = vmatprep.subr.mxu0 0.0
        %1813 = vmatpush2.msra.mxu0 0.0
        %1814 = vmatprep.subr.mxu0 0.0
        %1815 = vmatpush2.msra.mxu0 0.0
        %1816 = vmatprep.subr.mxu0 0.0
        %1817 = vmatpush2.msra.mxu0 0.0
        %1818 = vmatprep.subr.mxu0 0.0
        %1819 = vmatpush2.msra.mxu0 0.0
        %1820 = vmatprep.subr.mxu0 0.0
        %1821 = vmatpush2.msra.mxu0 0.0
        %1822 = vmatprep.subr.mxu0 0.0
        %1823 = vmatpush2.msra.mxu0 0.0
        %1824 = vmatprep.subr.mxu0 0.0
        %1825 = vmatpush2.msra.mxu0 0.0
        %1826 = vmatprep.subr.mxu0 0.0
        %1827 = vmatpush2.msra.mxu0 0.0
        %1828 = vmatprep.subr.mxu0 0.0
        %1829 = vmatpush2.msra.mxu0 0.0
        %1830 = vmatprep.mubr.f32.mxu0 0.0
        %1831 = vmatmul.mubr.f32.gmra.mxu0 %v1764
        %v1832 = vpop.f32.mrf.mxu0
        %v1833 = vadd.f32 0.0, %v1832
        %v1834 = vpop.f32.mrf.mxu0
        %1835 = vdwg.mxu0
        %v1837 = vrot.slane %v1833, 7
        %v1839 = vadd.f32 %v1663, %v1837
        %v1840 = vxor.u32 %v1839, 2147483648
        %v1841 = vmul.f32 %v1840, 1.442695
        %v1842 = vpow.pop %v1841
        %v1843 = vadd.f32 %v1842, 1.0
        %v1844 = vrcp.pop %v1843
        %v1845 = vmul.f32 1.0, %v1844
        %v1846 = vtanh.pop %v1839
        %v1848 = vrot.slane %v1754, 7
        %v1850 = vmul.f32 %v1845, %v1848
        %1852 = vrot.lane.b32.xlu0 %v1846, 64
        %v1853 = vpop.permute.xlu0 %1852
        %v1855 = vmul.f32 %v1845, %v1853
        %1857 = vrot.lane.b32.xlu0 %v1855, 32
        %v1858 = vpop.permute.xlu0 %1857
        %v1860 = vadd.f32 %v1850, %v1858
        %v1861 = vtanh.pop %v1860
        %1863 = vrot.lane.b32.xlu0 %v1861, 64
        %v1864 = vpop.permute.xlu0 %1863
        %v1866 = vmul.f32 %v1845, %v1864
        %v1868 = vrot.slane %v1866, 1
        %1869 = vrot.lane.b32.xlu0 %v1868, 32
        %v1870 = vpop.permute.xlu0 %1869
        %v1871 = vsel %vm716, %v1870, 0
        %1873 = vmatprep.subr.mxu0 0.0
        %1874 = vmatpush1.msra.mxu0 0.0
        %1875 = vmatprep.subr.mxu0 0.0
        %1876 = vmatpush1.msra.mxu0 0.0
        %1877 = vmatprep.subr.mxu0 0.0
        %1878 = vmatpush1.msra.mxu0 0.0
        %1879 = vmatprep.subr.mxu0 0.0
        %1880 = vmatpush1.msra.mxu0 0.0
        %1881 = vmatprep.subr.mxu0 0.0
        %1882 = vmatpush1.msra.mxu0 0.0
        %1883 = vmatprep.subr.mxu0 0.0
        %1884 = vmatpush1.msra.mxu0 0.0
        %1885 = vmatprep.subr.mxu0 0.0
        %1886 = vmatpush1.msra.mxu0 0.0
        %1887 = vmatprep.subr.mxu0 0.0
        %1888 = vmatpush1.msra.mxu0 0.0
        %1889 = vmatprep.subr.mxu0 0.0
        %1890 = vmatpush1.msra.mxu0 0.0
        %1891 = vmatprep.subr.mxu0 0.0
        %1892 = vmatpush1.msra.mxu0 0.0
        %1893 = vmatprep.subr.mxu0 0.0
        %1894 = vmatpush1.msra.mxu0 0.0
        %1895 = vmatprep.subr.mxu0 0.0
        %1896 = vmatpush1.msra.mxu0 0.0
        %1897 = vmatprep.subr.mxu0 0.0
        %1898 = vmatpush1.msra.mxu0 %v611
        %1899 = vmatprep.subr.mxu0 0.0
        %1900 = vmatpush1.msra.mxu0 %v610
        %1901 = vmatprep.subr.mxu0 0.0
        %1902 = vmatpush1.msra.mxu0 %v609
        %1903 = vmatprep.subr.mxu0 0.0
        %1904 = vmatpush1.msra.mxu0 %v608
        %1905 = vmatprep.subr.mxu0 0.0
        %1906 = vmatpush2.msra.mxu0 0.0
        %1907 = vmatprep.subr.mxu0 0.0
        %1908 = vmatpush2.msra.mxu0 0.0
        %1909 = vmatprep.subr.mxu0 0.0
        %1910 = vmatpush2.msra.mxu0 0.0
        %1911 = vmatprep.subr.mxu0 0.0
        %1912 = vmatpush2.msra.mxu0 0.0
        %1913 = vmatprep.subr.mxu0 0.0
        %1914 = vmatpush2.msra.mxu0 0.0
        %1915 = vmatprep.subr.mxu0 0.0
        %1916 = vmatpush2.msra.mxu0 0.0
        %1917 = vmatprep.subr.mxu0 0.0
        %1918 = vmatpush2.msra.mxu0 0.0
        %1919 = vmatprep.subr.mxu0 0.0
        %1920 = vmatpush2.msra.mxu0 0.0
        %1921 = vmatprep.subr.mxu0 0.0
        %1922 = vmatpush2.msra.mxu0 0.0
        %1923 = vmatprep.subr.mxu0 0.0
        %1924 = vmatpush2.msra.mxu0 0.0
        %1925 = vmatprep.subr.mxu0 0.0
        %1926 = vmatpush2.msra.mxu0 0.0
        %1927 = vmatprep.subr.mxu0 0.0
        %1928 = vmatpush2.msra.mxu0 0.0
        %1929 = vmatprep.subr.mxu0 0.0
        %1930 = vmatpush2.msra.mxu0 0.0
        %1931 = vmatprep.subr.mxu0 0.0
        %1932 = vmatpush2.msra.mxu0 0.0
        %1933 = vmatprep.subr.mxu0 0.0
        %1934 = vmatpush2.msra.mxu0 0.0
        %1935 = vmatprep.subr.mxu0 0.0
        %1936 = vmatpush2.msra.mxu0 0.0
        %1937 = vmatprep.mubr.f32.mxu0 0.0
        %1938 = vmatmul.mubr.f32.gmra.mxu0 %v1871
        %v1939 = vpop.f32.mrf.mxu0
        %v1940 = vadd.f32 0.0, %v1939
        %v1941 = vpop.f32.mrf.mxu0
        %1942 = vdwg.mxu0
        %v1944 = vrot.slane %v1940, 6
        %v1946 = vadd.f32 %v1663, %v1944
        %v1947 = vxor.u32 %v1946, 2147483648
        %v1948 = vmul.f32 %v1947, 1.442695
        %v1949 = vpow.pop %v1948
        %v1950 = vadd.f32 %v1949, 1.0
        %v1951 = vrcp.pop %v1950
        %v1952 = vmul.f32 1.0, %v1951
        %v1953 = vtanh.pop %v1946
        %v1955 = vrot.slane %v1860, 7
        %v1957 = vmul.f32 %v1952, %v1955
        %1959 = vrot.lane.b32.xlu0 %v1953, 64
        %v1960 = vpop.permute.xlu0 %1959
        %v1962 = vmul.f32 %v1952, %v1960
        %1964 = vrot.lane.b32.xlu0 %v1962, 32
        %v1965 = vpop.permute.xlu0 %1964
        %v1967 = vadd.f32 %v1957, %v1965
        %v1968 = vtanh.pop %v1967
        %1970 = vrot.lane.b32.xlu0 %v1968, 64
        %v1971 = vpop.permute.xlu0 %1970
        %v1973 = vmul.f32 %v1952, %v1971
        %v1975 = vrot.slane %v1973, 2
        %1976 = vrot.lane.b32.xlu0 %v1975, 32
        %v1977 = vpop.permute.xlu0 %1976
        %v1978 = vsel %vm716, %v1977, 0
        %1980 = vmatprep.subr.mxu0 0.0
        %1981 = vmatpush1.msra.mxu0 0.0
        %1982 = vmatprep.subr.mxu0 0.0
        %1983 = vmatpush1.msra.mxu0 0.0
        %1984 = vmatprep.subr.mxu0 0.0
        %1985 = vmatpush1.msra.mxu0 0.0
        %1986 = vmatprep.subr.mxu0 0.0
        %1987 = vmatpush1.msra.mxu0 0.0
        %1988 = vmatprep.subr.mxu0 0.0
        %1989 = vmatpush1.msra.mxu0 0.0
        %1990 = vmatprep.subr.mxu0 0.0
        %1991 = vmatpush1.msra.mxu0 0.0
        %1992 = vmatprep.subr.mxu0 0.0
        %1993 = vmatpush1.msra.mxu0 0.0
        %1994 = vmatprep.subr.mxu0 0.0
        %1995 = vmatpush1.msra.mxu0 0.0
        %1996 = vmatprep.subr.mxu0 0.0
        %1997 = vmatpush1.msra.mxu0 0.0
        %1998 = vmatprep.subr.mxu0 0.0
        %1999 = vmatpush1.msra.mxu0 0.0
        %2000 = vmatprep.subr.mxu0 0.0
        %2001 = vmatpush1.msra.mxu0 0.0
        %2002 = vmatprep.subr.mxu0 0.0
        %2003 = vmatpush1.msra.mxu0 0.0
        %2004 = vmatprep.subr.mxu0 0.0
        %2005 = vmatpush1.msra.mxu0 %v611
        %2006 = vmatprep.subr.mxu0 0.0
        %2007 = vmatpush1.msra.mxu0 %v610
        %2008 = vmatprep.subr.mxu0 0.0
        %2009 = vmatpush1.msra.mxu0 %v609
        %2010 = vmatprep.subr.mxu0 0.0
        %2011 = vmatpush1.msra.mxu0 %v608
        %2012 = vmatprep.subr.mxu0 0.0
        %2013 = vmatpush2.msra.mxu0 0.0
        %2014 = vmatprep.subr.mxu0 0.0
        %2015 = vmatpush2.msra.mxu0 0.0
        %2016 = vmatprep.subr.mxu0 0.0
        %2017 = vmatpush2.msra.mxu0 0.0
        %2018 = vmatprep.subr.mxu0 0.0
        %2019 = vmatpush2.msra.mxu0 0.0
        %2020 = vmatprep.subr.mxu0 0.0
        %2021 = vmatpush2.msra.mxu0 0.0
        %2022 = vmatprep.subr.mxu0 0.0
        %2023 = vmatpush2.msra.mxu0 0.0
        %2024 = vmatprep.subr.mxu0 0.0
        %2025 = vmatpush2.msra.mxu0 0.0
        %2026 = vmatprep.subr.mxu0 0.0
        %2027 = vmatpush2.msra.mxu0 0.0
        %2028 = vmatprep.subr.mxu0 0.0
        %2029 = vmatpush2.msra.mxu0 0.0
        %2030 = vmatprep.subr.mxu0 0.0
        %2031 = vmatpush2.msra.mxu0 0.0
        %2032 = vmatprep.subr.mxu0 0.0
        %2033 = vmatpush2.msra.mxu0 0.0
        %2034 = vmatprep.subr.mxu0 0.0
        %2035 = vmatpush2.msra.mxu0 0.0
        %2036 = vmatprep.subr.mxu0 0.0
        %2037 = vmatpush2.msra.mxu0 0.0
        %2038 = vmatprep.subr.mxu0 0.0
        %2039 = vmatpush2.msra.mxu0 0.0
        %2040 = vmatprep.subr.mxu0 0.0
        %2041 = vmatpush2.msra.mxu0 0.0
        %2042 = vmatprep.subr.mxu0 0.0
        %2043 = vmatpush2.msra.mxu0 0.0
        %2044 = vmatprep.mubr.f32.mxu0 0.0
        %2045 = vmatmul.mubr.f32.gmra.mxu0 %v1978
        %v2046 = vpop.f32.mrf.mxu0
        %v2047 = vadd.f32 0.0, %v2046
        %v2048 = vpop.f32.mrf.mxu0
        %2049 = vdwg.mxu0
        %v2051 = vrot.slane %v2047, 5
        %v2053 = vadd.f32 %v1663, %v2051
        %v2054 = vxor.u32 %v2053, 2147483648
        %v2055 = vmul.f32 %v2054, 1.442695
        %v2056 = vpow.pop %v2055
        %v2057 = vadd.f32 %v2056, 1.0
        %v2058 = vrcp.pop %v2057
        %v2059 = vmul.f32 1.0, %v2058
        %v2060 = vtanh.pop %v2053
        %v2062 = vrot.slane %v1967, 7
        %v2064 = vmul.f32 %v2059, %v2062
        %2066 = vrot.lane.b32.xlu0 %v2060, 64
        %v2067 = vpop.permute.xlu0 %2066
        %v2069 = vmul.f32 %v2059, %v2067
        %2071 = vrot.lane.b32.xlu0 %v2069, 32
        %v2072 = vpop.permute.xlu0 %2071
        %v2074 = vadd.f32 %v2064, %v2072
        %v2075 = vtanh.pop %v2074
        %2077 = vrot.lane.b32.xlu0 %v2075, 64
        %v2078 = vpop.permute.xlu0 %2077
        %v2080 = vmul.f32 %v2059, %v2078
        %v2082 = vrot.slane %v2080, 3
        %2083 = vrot.lane.b32.xlu0 %v2082, 32
        %v2084 = vpop.permute.xlu0 %2083
        %v2085 = vsel %vm716, %v2084, 0
        %2087 = vmatprep.subr.mxu0 0.0
        %2088 = vmatpush1.msra.mxu0 0.0
        %2089 = vmatprep.subr.mxu0 0.0
        %2090 = vmatpush1.msra.mxu0 0.0
        %2091 = vmatprep.subr.mxu0 0.0
        %2092 = vmatpush1.msra.mxu0 0.0
        %2093 = vmatprep.subr.mxu0 0.0
        %2094 = vmatpush1.msra.mxu0 0.0
        %2095 = vmatprep.subr.mxu0 0.0
        %2096 = vmatpush1.msra.mxu0 0.0
        %2097 = vmatprep.subr.mxu0 0.0
        %2098 = vmatpush1.msra.mxu0 0.0
        %2099 = vmatprep.subr.mxu0 0.0
        %2100 = vmatpush1.msra.mxu0 0.0
        %2101 = vmatprep.subr.mxu0 0.0
        %2102 = vmatpush1.msra.mxu0 0.0
        %2103 = vmatprep.subr.mxu0 0.0
        %2104 = vmatpush1.msra.mxu0 0.0
        %2105 = vmatprep.subr.mxu0 0.0
        %2106 = vmatpush1.msra.mxu0 0.0
        %2107 = vmatprep.subr.mxu0 0.0
        %2108 = vmatpush1.msra.mxu0 0.0
        %2109 = vmatprep.subr.mxu0 0.0
        %2110 = vmatpush1.msra.mxu0 0.0
        %2111 = vmatprep.subr.mxu0 0.0
        %2112 = vmatpush1.msra.mxu0 %v611
        %2113 = vmatprep.subr.mxu0 0.0
        %2114 = vmatpush1.msra.mxu0 %v610
        %2115 = vmatprep.subr.mxu0 0.0
        %2116 = vmatpush1.msra.mxu0 %v609
        %2117 = vmatprep.subr.mxu0 0.0
        %2118 = vmatpush1.msra.mxu0 %v608
        %2119 = vmatprep.subr.mxu0 0.0
        %2120 = vmatpush2.msra.mxu0 0.0
        %2121 = vmatprep.subr.mxu0 0.0
        %2122 = vmatpush2.msra.mxu0 0.0
        %2123 = vmatprep.subr.mxu0 0.0
        %2124 = vmatpush2.msra.mxu0 0.0
        %2125 = vmatprep.subr.mxu0 0.0
        %2126 = vmatpush2.msra.mxu0 0.0
        %2127 = vmatprep.subr.mxu0 0.0
        %2128 = vmatpush2.msra.mxu0 0.0
        %2129 = vmatprep.subr.mxu0 0.0
        %2130 = vmatpush2.msra.mxu0 0.0
        %2131 = vmatprep.subr.mxu0 0.0
        %2132 = vmatpush2.msra.mxu0 0.0
        %2133 = vmatprep.subr.mxu0 0.0
        %2134 = vmatpush2.msra.mxu0 0.0
        %2135 = vmatprep.subr.mxu0 0.0
        %2136 = vmatpush2.msra.mxu0 0.0
        %2137 = vmatprep.subr.mxu0 0.0
        %2138 = vmatpush2.msra.mxu0 0.0
        %2139 = vmatprep.subr.mxu0 0.0
        %2140 = vmatpush2.msra.mxu0 0.0
        %2141 = vmatprep.subr.mxu0 0.0
        %2142 = vmatpush2.msra.mxu0 0.0
        %2143 = vmatprep.subr.mxu0 0.0
        %2144 = vmatpush2.msra.mxu0 0.0
        %2145 = vmatprep.subr.mxu0 0.0
        %2146 = vmatpush2.msra.mxu0 0.0
        %2147 = vmatprep.subr.mxu0 0.0
        %2148 = vmatpush2.msra.mxu0 0.0
        %2149 = vmatprep.subr.mxu0 0.0
        %2150 = vmatpush2.msra.mxu0 0.0
        %2151 = vmatprep.mubr.f32.mxu0 0.0
        %2152 = vmatmul.mubr.f32.gmra.mxu0 %v2085
        %v2153 = vpop.f32.mrf.mxu0
        %v2154 = vadd.f32 0.0, %v2153
        %v2155 = vpop.f32.mrf.mxu0
        %2156 = vdwg.mxu0
        %v2158 = vrot.slane %v2154, 4
        %v2160 = vadd.f32 %v1663, %v2158
        %v2161 = vxor.u32 %v2160, 2147483648
        %v2162 = vmul.f32 %v2161, 1.442695
        %v2163 = vpow.pop %v2162
        %v2164 = vadd.f32 %v2163, 1.0
        %v2165 = vrcp.pop %v2164
        %v2166 = vmul.f32 1.0, %v2165
        %v2167 = vtanh.pop %v2160
        %v2169 = vrot.slane %v2074, 7
        %v2171 = vmul.f32 %v2166, %v2169
        %2173 = vrot.lane.b32.xlu0 %v2167, 64
        %v2174 = vpop.permute.xlu0 %2173
        %v2176 = vmul.f32 %v2166, %v2174
        %2178 = vrot.lane.b32.xlu0 %v2176, 32
        %v2179 = vpop.permute.xlu0 %2178
        %v2181 = vadd.f32 %v2171, %v2179
        %v2182 = vtanh.pop %v2181
        %2184 = vrot.lane.b32.xlu0 %v2182, 64
        %v2185 = vpop.permute.xlu0 %2184
        %v2187 = vmul.f32 %v2166, %v2185
        %v2189 = vrot.slane %v2187, 4
        %2190 = vrot.lane.b32.xlu0 %v2189, 32
        %v2191 = vpop.permute.xlu0 %2190
        %v2192 = vsel %vm716, %v2191, 0
        %2194 = vmatprep.subr.mxu0 0.0
        %2195 = vmatpush1.msra.mxu0 0.0
        %2196 = vmatprep.subr.mxu0 0.0
        %2197 = vmatpush1.msra.mxu0 0.0
        %2198 = vmatprep.subr.mxu0 0.0
        %2199 = vmatpush1.msra.mxu0 0.0
        %2200 = vmatprep.subr.mxu0 0.0
        %2201 = vmatpush1.msra.mxu0 0.0
        %2202 = vmatprep.subr.mxu0 0.0
        %2203 = vmatpush1.msra.mxu0 0.0
        %2204 = vmatprep.subr.mxu0 0.0
        %2205 = vmatpush1.msra.mxu0 0.0
        %2206 = vmatprep.subr.mxu0 0.0
        %2207 = vmatpush1.msra.mxu0 0.0
        %2208 = vmatprep.subr.mxu0 0.0
        %2209 = vmatpush1.msra.mxu0 0.0
        %2210 = vmatprep.subr.mxu0 0.0
        %2211 = vmatpush1.msra.mxu0 0.0
        %2212 = vmatprep.subr.mxu0 0.0
        %2213 = vmatpush1.msra.mxu0 0.0
        %2214 = vmatprep.subr.mxu0 0.0
        %2215 = vmatpush1.msra.mxu0 0.0
        %2216 = vmatprep.subr.mxu0 0.0
        %2217 = vmatpush1.msra.mxu0 0.0
        %2218 = vmatprep.subr.mxu0 0.0
        %2219 = vmatpush1.msra.mxu0 %v611
        %2220 = vmatprep.subr.mxu0 0.0
        %2221 = vmatpush1.msra.mxu0 %v610
        %2222 = vmatprep.subr.mxu0 0.0
        %2223 = vmatpush1.msra.mxu0 %v609
        %2224 = vmatprep.subr.mxu0 0.0
        %2225 = vmatpush1.msra.mxu0 %v608
        %2226 = vmatprep.subr.mxu0 0.0
        %2227 = vmatpush2.msra.mxu0 0.0
        %2228 = vmatprep.subr.mxu0 0.0
        %2229 = vmatpush2.msra.mxu0 0.0
        %2230 = vmatprep.subr.mxu0 0.0
        %2231 = vmatpush2.msra.mxu0 0.0
        %2232 = vmatprep.subr.mxu0 0.0
        %2233 = vmatpush2.msra.mxu0 0.0
        %2234 = vmatprep.subr.mxu0 0.0
        %2235 = vmatpush2.msra.mxu0 0.0
        %2236 = vmatprep.subr.mxu0 0.0
        %2237 = vmatpush2.msra.mxu0 0.0
        %2238 = vmatprep.subr.mxu0 0.0
        %2239 = vmatpush2.msra.mxu0 0.0
        %2240 = vmatprep.subr.mxu0 0.0
        %2241 = vmatpush2.msra.mxu0 0.0
        %2242 = vmatprep.subr.mxu0 0.0
        %2243 = vmatpush2.msra.mxu0 0.0
        %2244 = vmatprep.subr.mxu0 0.0
        %2245 = vmatpush2.msra.mxu0 0.0
        %2246 = vmatprep.subr.mxu0 0.0
        %2247 = vmatpush2.msra.mxu0 0.0
        %2248 = vmatprep.subr.mxu0 0.0
        %2249 = vmatpush2.msra.mxu0 0.0
        %2250 = vmatprep.subr.mxu0 0.0
        %2251 = vmatpush2.msra.mxu0 0.0
        %2252 = vmatprep.subr.mxu0 0.0
        %2253 = vmatpush2.msra.mxu0 0.0
        %2254 = vmatprep.subr.mxu0 0.0
        %2255 = vmatpush2.msra.mxu0 0.0
        %2256 = vmatprep.subr.mxu0 0.0
        %2257 = vmatpush2.msra.mxu0 0.0
        %2258 = vmatprep.mubr.f32.mxu0 0.0
        %2259 = vmatmul.mubr.f32.gmra.mxu0 %v2192
        %v2260 = vpop.f32.mrf.mxu0
        %v2261 = vadd.f32 0.0, %v2260
        %v2262 = vpop.f32.mrf.mxu0
        %2263 = vdwg.mxu0
        %v2265 = vrot.slane %v2261, 3
        %v2267 = vadd.f32 %v1663, %v2265
        %v2268 = vxor.u32 %v2267, 2147483648
        %v2269 = vmul.f32 %v2268, 1.442695
        %v2270 = vpow.pop %v2269
        %v2271 = vadd.f32 %v2270, 1.0
        %v2272 = vrcp.pop %v2271
        %v2273 = vmul.f32 1.0, %v2272
        %v2274 = vtanh.pop %v2267
        %v2276 = vrot.slane %v2181, 7
        %v2278 = vmul.f32 %v2273, %v2276
        %2280 = vrot.lane.b32.xlu0 %v2274, 64
        %v2281 = vpop.permute.xlu0 %2280
        %v2283 = vmul.f32 %v2273, %v2281
        %2285 = vrot.lane.b32.xlu0 %v2283, 32
        %v2286 = vpop.permute.xlu0 %2285
        %v2288 = vadd.f32 %v2278, %v2286
        %v2289 = vtanh.pop %v2288
        %2291 = vrot.lane.b32.xlu0 %v2289, 64
        %v2292 = vpop.permute.xlu0 %2291
        %v2294 = vmul.f32 %v2273, %v2292
        %v2296 = vrot.slane %v2294, 5
        %2297 = vrot.lane.b32.xlu0 %v2296, 32
        %v2298 = vpop.permute.xlu0 %2297
        %v2299 = vsel %vm716, %v2298, 0
        %2301 = vmatprep.subr.mxu0 0.0
        %2302 = vmatpush1.msra.mxu0 0.0
        %2303 = vmatprep.subr.mxu0 0.0
        %2304 = vmatpush1.msra.mxu0 0.0
        %2305 = vmatprep.subr.mxu0 0.0
        %2306 = vmatpush1.msra.mxu0 0.0
        %2307 = vmatprep.subr.mxu0 0.0
        %2308 = vmatpush1.msra.mxu0 0.0
        %2309 = vmatprep.subr.mxu0 0.0
        %2310 = vmatpush1.msra.mxu0 0.0
        %2311 = vmatprep.subr.mxu0 0.0
        %2312 = vmatpush1.msra.mxu0 0.0
        %2313 = vmatprep.subr.mxu0 0.0
        %2314 = vmatpush1.msra.mxu0 0.0
        %2315 = vmatprep.subr.mxu0 0.0
        %2316 = vmatpush1.msra.mxu0 0.0
        %2317 = vmatprep.subr.mxu0 0.0
        %2318 = vmatpush1.msra.mxu0 0.0
        %2319 = vmatprep.subr.mxu0 0.0
        %2320 = vmatpush1.msra.mxu0 0.0
        %2321 = vmatprep.subr.mxu0 0.0
        %2322 = vmatpush1.msra.mxu0 0.0
        %2323 = vmatprep.subr.mxu0 0.0
        %2324 = vmatpush1.msra.mxu0 0.0
        %2325 = vmatprep.subr.mxu0 0.0
        %2326 = vmatpush1.msra.mxu0 %v611
        %2327 = vmatprep.subr.mxu0 0.0
        %2328 = vmatpush1.msra.mxu0 %v610
        %2329 = vmatprep.subr.mxu0 0.0
        %2330 = vmatpush1.msra.mxu0 %v609
        %2331 = vmatprep.subr.mxu0 0.0
        %2332 = vmatpush1.msra.mxu0 %v608
        %2333 = vmatprep.subr.mxu0 0.0
        %2334 = vmatpush2.msra.mxu0 0.0
        %2335 = vmatprep.subr.mxu0 0.0
        %2336 = vmatpush2.msra.mxu0 0.0
        %2337 = vmatprep.subr.mxu0 0.0
        %2338 = vmatpush2.msra.mxu0 0.0
        %2339 = vmatprep.subr.mxu0 0.0
        %2340 = vmatpush2.msra.mxu0 0.0
        %2341 = vmatprep.subr.mxu0 0.0
        %2342 = vmatpush2.msra.mxu0 0.0
        %2343 = vmatprep.subr.mxu0 0.0
        %2344 = vmatpush2.msra.mxu0 0.0
        %2345 = vmatprep.subr.mxu0 0.0
        %2346 = vmatpush2.msra.mxu0 0.0
        %2347 = vmatprep.subr.mxu0 0.0
        %2348 = vmatpush2.msra.mxu0 0.0
        %2349 = vmatprep.subr.mxu0 0.0
        %2350 = vmatpush2.msra.mxu0 0.0
        %2351 = vmatprep.subr.mxu0 0.0
        %2352 = vmatpush2.msra.mxu0 0.0
        %2353 = vmatprep.subr.mxu0 0.0
        %2354 = vmatpush2.msra.mxu0 0.0
        %2355 = vmatprep.subr.mxu0 0.0
        %2356 = vmatpush2.msra.mxu0 0.0
        %2357 = vmatprep.subr.mxu0 0.0
        %2358 = vmatpush2.msra.mxu0 0.0
        %2359 = vmatprep.subr.mxu0 0.0
        %2360 = vmatpush2.msra.mxu0 0.0
        %2361 = vmatprep.subr.mxu0 0.0
        %2362 = vmatpush2.msra.mxu0 0.0
        %2363 = vmatprep.subr.mxu0 0.0
        %2364 = vmatpush2.msra.mxu0 0.0
        %2365 = vmatprep.mubr.f32.mxu0 0.0
        %2366 = vmatmul.mubr.f32.gmra.mxu0 %v2299
        %v2367 = vpop.f32.mrf.mxu0
        %v2368 = vadd.f32 0.0, %v2367
        %v2369 = vpop.f32.mrf.mxu0
        %2370 = vdwg.mxu0
        %v2372 = vrot.slane %v2368, 2
        %v2374 = vadd.f32 %v1663, %v2372
        %v2375 = vxor.u32 %v2374, 2147483648
        %v2376 = vmul.f32 %v2375, 1.442695
        %v2377 = vpow.pop %v2376
        %v2378 = vadd.f32 %v2377, 1.0
        %v2379 = vrcp.pop %v2378
        %v2380 = vmul.f32 1.0, %v2379
        %v2381 = vtanh.pop %v2374
        %v2383 = vrot.slane %v2288, 7
        %v2385 = vmul.f32 %v2380, %v2383
        %2387 = vrot.lane.b32.xlu0 %v2381, 64
        %v2388 = vpop.permute.xlu0 %2387
        %v2390 = vmul.f32 %v2380, %v2388
        %2392 = vrot.lane.b32.xlu0 %v2390, 32
        %v2393 = vpop.permute.xlu0 %2392
        %v2395 = vadd.f32 %v2385, %v2393
        %v2396 = vtanh.pop %v2395
        %2398 = vrot.lane.b32.xlu0 %v2396, 64
        %v2399 = vpop.permute.xlu0 %2398
        %v2401 = vmul.f32 %v2380, %v2399
        %v2403 = vrot.slane %v2401, 6
        %2404 = vrot.lane.b32.xlu0 %v2403, 32
        %v2405 = vpop.permute.xlu0 %2404
        %v2406 = vsel %vm716, %v2405, 0
        %2408 = vmatprep.subr.mxu0 0.0
        %2409 = vmatpush1.msra.mxu0 0.0
        %2410 = vmatprep.subr.mxu0 0.0
        %2411 = vmatpush1.msra.mxu0 0.0
        %2412 = vmatprep.subr.mxu0 0.0
        %2413 = vmatpush1.msra.mxu0 0.0
        %2414 = vmatprep.subr.mxu0 0.0
        %2415 = vmatpush1.msra.mxu0 0.0
        %2416 = vmatprep.subr.mxu0 0.0
        %2417 = vmatpush1.msra.mxu0 0.0
        %2418 = vmatprep.subr.mxu0 0.0
        %2419 = vmatpush1.msra.mxu0 0.0
        %2420 = vmatprep.subr.mxu0 0.0
        %2421 = vmatpush1.msra.mxu0 0.0
        %2422 = vmatprep.subr.mxu0 0.0
        %2423 = vmatpush1.msra.mxu0 0.0
        %2424 = vmatprep.subr.mxu0 0.0
        %2425 = vmatpush1.msra.mxu0 0.0
        %2426 = vmatprep.subr.mxu0 0.0
        %2427 = vmatpush1.msra.mxu0 0.0
        %2428 = vmatprep.subr.mxu0 0.0
        %2429 = vmatpush1.msra.mxu0 0.0
        %2430 = vmatprep.subr.mxu0 0.0
        %2431 = vmatpush1.msra.mxu0 0.0
        %2432 = vmatprep.subr.mxu0 0.0
        %2433 = vmatpush1.msra.mxu0 %v611
        %2434 = vmatprep.subr.mxu0 0.0
        %2435 = vmatpush1.msra.mxu0 %v610
        %2436 = vmatprep.subr.mxu0 0.0
        %2437 = vmatpush1.msra.mxu0 %v609
        %2438 = vmatprep.subr.mxu0 0.0
        %2439 = vmatpush1.msra.mxu0 %v608
        %2440 = vmatprep.subr.mxu0 0.0
        %2441 = vmatpush2.msra.mxu0 0.0
        %2442 = vmatprep.subr.mxu0 0.0
        %2443 = vmatpush2.msra.mxu0 0.0
        %2444 = vmatprep.subr.mxu0 0.0
        %2445 = vmatpush2.msra.mxu0 0.0
        %2446 = vmatprep.subr.mxu0 0.0
        %2447 = vmatpush2.msra.mxu0 0.0
        %2448 = vmatprep.subr.mxu0 0.0
        %2449 = vmatpush2.msra.mxu0 0.0
        %2450 = vmatprep.subr.mxu0 0.0
        %2451 = vmatpush2.msra.mxu0 0.0
        %2452 = vmatprep.subr.mxu0 0.0
        %2453 = vmatpush2.msra.mxu0 0.0
        %2454 = vmatprep.subr.mxu0 0.0
        %2455 = vmatpush2.msra.mxu0 0.0
        %2456 = vmatprep.subr.mxu0 0.0
        %2457 = vmatpush2.msra.mxu0 0.0
        %2458 = vmatprep.subr.mxu0 0.0
        %2459 = vmatpush2.msra.mxu0 0.0
        %2460 = vmatprep.subr.mxu0 0.0
        %2461 = vmatpush2.msra.mxu0 0.0
        %2462 = vmatprep.subr.mxu0 0.0
        %2463 = vmatpush2.msra.mxu0 0.0
        %2464 = vmatprep.subr.mxu0 0.0
        %2465 = vmatpush2.msra.mxu0 0.0
        %2466 = vmatprep.subr.mxu0 0.0
        %2467 = vmatpush2.msra.mxu0 0.0
        %2468 = vmatprep.subr.mxu0 0.0
        %2469 = vmatpush2.msra.mxu0 0.0
        %2470 = vmatprep.subr.mxu0 0.0
        %2471 = vmatpush2.msra.mxu0 0.0
        %2472 = vmatprep.mubr.f32.mxu0 0.0
        %2473 = vmatmul.mubr.f32.gmra.mxu0 %v2406
        %v2474 = vpop.f32.mrf.mxu0
        %v2475 = vadd.f32 0.0, %v2474
        %v2476 = vpop.f32.mrf.mxu0
        %2477 = vdwg.mxu0
        %v2479 = vrot.slane %v2475, 1
        %v2481 = vadd.f32 %v1663, %v2479
        %v2482 = vxor.u32 %v2481, 2147483648
        %v2483 = vmul.f32 %v2482, 1.442695
        %v2484 = vpow.pop %v2483
        %v2485 = vadd.f32 %v2484, 1.0
        %v2486 = vrcp.pop %v2485
        %v2487 = vmul.f32 1.0, %v2486
        %v2488 = vtanh.pop %v2481
        %v2490 = vrot.slane %v2395, 7
        %v2492 = vmul.f32 %v2487, %v2490
        %2494 = vrot.lane.b32.xlu0 %v2488, 64
        %v2495 = vpop.permute.xlu0 %2494
        %v2497 = vmul.f32 %v2487, %v2495
        %2499 = vrot.lane.b32.xlu0 %v2497, 32
        %v2500 = vpop.permute.xlu0 %2499
        %v2502 = vadd.f32 %v2492, %v2500
        %v2503 = vtanh.pop %v2502
        %2505 = vrot.lane.b32.xlu0 %v2503, 64
        %v2506 = vpop.permute.xlu0 %2505
        %v2508 = vmul.f32 %v2487, %v2506
        %v2510 = vrot.slane %v2508, 7
        %2511 = vrot.lane.b32.xlu0 %v2510, 32
        %v2512 = vpop.permute.xlu0 %2511
        %v2513 = vsel %vm716, %v2512, 0
        %2515 = vmatprep.subr.mxu0 0.0
        %2516 = vmatpush1.msra.mxu0 0.0
        %2517 = vmatprep.subr.mxu0 0.0
        %2518 = vmatpush1.msra.mxu0 0.0
        %2519 = vmatprep.subr.mxu0 0.0
        %2520 = vmatpush1.msra.mxu0 0.0
        %2521 = vmatprep.subr.mxu0 0.0
        %2522 = vmatpush1.msra.mxu0 0.0
        %2523 = vmatprep.subr.mxu0 0.0
        %2524 = vmatpush1.msra.mxu0 0.0
        %2525 = vmatprep.subr.mxu0 0.0
        %2526 = vmatpush1.msra.mxu0 0.0
        %2527 = vmatprep.subr.mxu0 0.0
        %2528 = vmatpush1.msra.mxu0 0.0
        %2529 = vmatprep.subr.mxu0 0.0
        %2530 = vmatpush1.msra.mxu0 0.0
        %2531 = vmatprep.subr.mxu0 0.0
        %2532 = vmatpush1.msra.mxu0 0.0
        %2533 = vmatprep.subr.mxu0 0.0
        %2534 = vmatpush1.msra.mxu0 0.0
        %2535 = vmatprep.subr.mxu0 0.0
        %2536 = vmatpush1.msra.mxu0 0.0
        %2537 = vmatprep.subr.mxu0 0.0
        %2538 = vmatpush1.msra.mxu0 0.0
        %2539 = vmatprep.subr.mxu0 0.0
        %2540 = vmatpush1.msra.mxu0 %v616
        %2541 = vmatprep.subr.mxu0 0.0
        %2542 = vmatpush1.msra.mxu0 %v615
        %2543 = vmatprep.subr.mxu0 0.0
        %2544 = vmatpush1.msra.mxu0 %v614
        %2545 = vmatprep.subr.mxu0 0.0
        %2546 = vmatpush1.msra.mxu0 %v613
        %2547 = vmatprep.subr.mxu0 0.0
        %2548 = vmatpush2.msra.mxu0 0.0
        %2549 = vmatprep.subr.mxu0 0.0
        %2550 = vmatpush2.msra.mxu0 0.0
        %2551 = vmatprep.subr.mxu0 0.0
        %2552 = vmatpush2.msra.mxu0 0.0
        %2553 = vmatprep.subr.mxu0 0.0
        %2554 = vmatpush2.msra.mxu0 0.0
        %2555 = vmatprep.subr.mxu0 0.0
        %2556 = vmatpush2.msra.mxu0 0.0
        %2557 = vmatprep.subr.mxu0 0.0
        %2558 = vmatpush2.msra.mxu0 0.0
        %2559 = vmatprep.subr.mxu0 0.0
        %2560 = vmatpush2.msra.mxu0 0.0
        %2561 = vmatprep.subr.mxu0 0.0
        %2562 = vmatpush2.msra.mxu0 0.0
        %2563 = vmatprep.subr.mxu0 0.0
        %2564 = vmatpush2.msra.mxu0 0.0
        %2565 = vmatprep.subr.mxu0 0.0
        %2566 = vmatpush2.msra.mxu0 0.0
        %2567 = vmatprep.subr.mxu0 0.0
        %2568 = vmatpush2.msra.mxu0 0.0
        %2569 = vmatprep.subr.mxu0 0.0
        %2570 = vmatpush2.msra.mxu0 0.0
        %2571 = vmatprep.subr.mxu0 0.0
        %2572 = vmatpush2.msra.mxu0 0.0
        %2573 = vmatprep.subr.mxu0 0.0
        %2574 = vmatpush2.msra.mxu0 0.0
        %2575 = vmatprep.subr.mxu0 0.0
        %2576 = vmatpush2.msra.mxu0 0.0
        %2577 = vmatprep.subr.mxu0 0.0
        %2578 = vmatpush2.msra.mxu0 0.0
        %2579 = vmatprep.mubr.f32.mxu0 0.0
        %2580 = vmatmul.mubr.f32.gmra.mxu0 %v2513
        %v2581 = vpop.f32.mrf.mxu0
        %v2582 = vadd.f32 %v621, %v2581
        %v2583 = vpop.f32.mrf.mxu0
        %2584 = vdwg.mxu0
        %2585 = vmatprep.subr.mxu0 0.0
        %2586 = vmatpush1.msra.mxu0 0.0
        %2587 = vmatprep.subr.mxu0 0.0
        %2588 = vmatpush1.msra.mxu0 0.0
        %2589 = vmatprep.subr.mxu0 0.0
        %2590 = vmatpush1.msra.mxu0 0.0
        %2591 = vmatprep.subr.mxu0 0.0
        %2592 = vmatpush1.msra.mxu0 0.0
        %2593 = vmatprep.subr.mxu0 0.0
        %2594 = vmatpush1.msra.mxu0 0.0
        %2595 = vmatprep.subr.mxu0 0.0
        %2596 = vmatpush1.msra.mxu0 0.0
        %2597 = vmatprep.subr.mxu0 0.0
        %2598 = vmatpush1.msra.mxu0 0.0
        %2599 = vmatprep.subr.mxu0 0.0
        %2600 = vmatpush1.msra.mxu0 0.0
        %2601 = vmatprep.subr.mxu0 0.0
        %2602 = vmatpush1.msra.mxu0 0.0
        %2603 = vmatprep.subr.mxu0 0.0
        %2604 = vmatpush1.msra.mxu0 0.0
        %2605 = vmatprep.subr.mxu0 0.0
        %2606 = vmatpush1.msra.mxu0 0.0
        %2607 = vmatprep.subr.mxu0 0.0
        %2608 = vmatpush1.msra.mxu0 0.0
        %2609 = vmatprep.subr.mxu0 0.0
        %2610 = vmatpush1.msra.mxu0 %v620
        %2611 = vmatprep.subr.mxu0 0.0
        %2612 = vmatpush1.msra.mxu0 %v619
        %2613 = vmatprep.subr.mxu0 0.0
        %2614 = vmatpush1.msra.mxu0 %v618
        %2615 = vmatprep.subr.mxu0 0.0
        %2616 = vmatpush1.msra.mxu0 %v617
        %2617 = vmatprep.subr.mxu0 0.0
        %2618 = vmatpush2.msra.mxu0 0.0
        %2619 = vmatprep.subr.mxu0 0.0
        %2620 = vmatpush2.msra.mxu0 0.0
        %2621 = vmatprep.subr.mxu0 0.0
        %2622 = vmatpush2.msra.mxu0 0.0
        %2623 = vmatprep.subr.mxu0 0.0
        %2624 = vmatpush2.msra.mxu0 0.0
        %2625 = vmatprep.subr.mxu0 0.0
        %2626 = vmatpush2.msra.mxu0 0.0
        %2627 = vmatprep.subr.mxu0 0.0
        %2628 = vmatpush2.msra.mxu0 0.0
        %2629 = vmatprep.subr.mxu0 0.0
        %2630 = vmatpush2.msra.mxu0 0.0
        %2631 = vmatprep.subr.mxu0 0.0
        %2632 = vmatpush2.msra.mxu0 0.0
        %2633 = vmatprep.subr.mxu0 0.0
        %2634 = vmatpush2.msra.mxu0 0.0
        %2635 = vmatprep.subr.mxu0 0.0
        %2636 = vmatpush2.msra.mxu0 0.0
        %2637 = vmatprep.subr.mxu0 0.0
        %2638 = vmatpush2.msra.mxu0 0.0
        %2639 = vmatprep.subr.mxu0 0.0
        %2640 = vmatpush2.msra.mxu0 0.0
        %2641 = vmatprep.subr.mxu0 0.0
        %2642 = vmatpush2.msra.mxu0 0.0
        %2643 = vmatprep.subr.mxu0 0.0
        %2644 = vmatpush2.msra.mxu0 0.0
        %2645 = vmatprep.subr.mxu0 0.0
        %2646 = vmatpush2.msra.mxu0 0.0
        %2647 = vmatprep.subr.mxu0 0.0
        %2648 = vmatpush2.msra.mxu0 0.0
        %2649 = vmatprep.mubr.f32.mxu0 0.0
        %2650 = vmatmul.mubr.f32.gmra.mxu0 %v718
        %v2651 = vpop.f32.mrf.mxu0
        %v2652 = vadd.f32 0.0, %v2651
        %v2653 = vpop.f32.mrf.mxu0
        %2654 = vdwg.mxu0
        %v2655 = vadd.f32 %v2582, %v2652
        %v2656 = vxor.u32 %v2655, 2147483648
        %v2657 = vmul.f32 %v2656, 1.442695
        %v2658 = vpow.pop %v2657
        %v2659 = vadd.f32 %v2658, 1.0
        %v2660 = vrcp.pop %v2659
        %v2661 = vmul.f32 1.0, %v2660
        %v2662 = vtanh.pop %v2655
        %v2663 = vmul.f32 %v2661, 0.0
        %2665 = vrot.lane.b32.xlu0 %v2662, 64
        %v2666 = vpop.permute.xlu0 %2665
        %v2668 = vmul.f32 %v2661, %v2666
        %2670 = vrot.lane.b32.xlu0 %v2668, 32
        %v2671 = vpop.permute.xlu0 %2670
        %v2673 = vadd.f32 %v2663, %v2671
        %v2674 = vtanh.pop %v2673
        %2676 = vrot.lane.b32.xlu0 %v2674, 64
        %v2677 = vpop.permute.xlu0 %2676
        %v2679 = vmul.f32 %v2661, %v2677
        %2681 = vrot.lane.b32.xlu0 %v2679, 32
        %v2682 = vpop.permute.xlu0 %2681
        %v2683 = vsel %vm716, %v2682, 0
        %2685 = vmatprep.subr.mxu0 0.0
        %2686 = vmatpush1.msra.mxu0 0.0
        %2687 = vmatprep.subr.mxu0 0.0
        %2688 = vmatpush1.msra.mxu0 0.0
        %2689 = vmatprep.subr.mxu0 0.0
        %2690 = vmatpush1.msra.mxu0 0.0
        %2691 = vmatprep.subr.mxu0 0.0
        %2692 = vmatpush1.msra.mxu0 0.0
        %2693 = vmatprep.subr.mxu0 0.0
        %2694 = vmatpush1.msra.mxu0 0.0
        %2695 = vmatprep.subr.mxu0 0.0
        %2696 = vmatpush1.msra.mxu0 0.0
        %2697 = vmatprep.subr.mxu0 0.0
        %2698 = vmatpush1.msra.mxu0 0.0
        %2699 = vmatprep.subr.mxu0 0.0
        %2700 = vmatpush1.msra.mxu0 0.0
        %2701 = vmatprep.subr.mxu0 0.0
        %2702 = vmatpush1.msra.mxu0 0.0
        %2703 = vmatprep.subr.mxu0 0.0
        %2704 = vmatpush1.msra.mxu0 0.0
        %2705 = vmatprep.subr.mxu0 0.0
        %2706 = vmatpush1.msra.mxu0 0.0
        %2707 = vmatprep.subr.mxu0 0.0
        %2708 = vmatpush1.msra.mxu0 0.0
        %2709 = vmatprep.subr.mxu0 0.0
        %2710 = vmatpush1.msra.mxu0 %v620
        %2711 = vmatprep.subr.mxu0 0.0
        %2712 = vmatpush1.msra.mxu0 %v619
        %2713 = vmatprep.subr.mxu0 0.0
        %2714 = vmatpush1.msra.mxu0 %v618
        %2715 = vmatprep.subr.mxu0 0.0
        %2716 = vmatpush1.msra.mxu0 %v617
        %2717 = vmatprep.subr.mxu0 0.0
        %2718 = vmatpush2.msra.mxu0 0.0
        %2719 = vmatprep.subr.mxu0 0.0
        %2720 = vmatpush2.msra.mxu0 0.0
        %2721 = vmatprep.subr.mxu0 0.0
        %2722 = vmatpush2.msra.mxu0 0.0
        %2723 = vmatprep.subr.mxu0 0.0
        %2724 = vmatpush2.msra.mxu0 0.0
        %2725 = vmatprep.subr.mxu0 0.0
        %2726 = vmatpush2.msra.mxu0 0.0
        %2727 = vmatprep.subr.mxu0 0.0
        %2728 = vmatpush2.msra.mxu0 0.0
        %2729 = vmatprep.subr.mxu0 0.0
        %2730 = vmatpush2.msra.mxu0 0.0
        %2731 = vmatprep.subr.mxu0 0.0
        %2732 = vmatpush2.msra.mxu0 0.0
        %2733 = vmatprep.subr.mxu0 0.0
        %2734 = vmatpush2.msra.mxu0 0.0
        %2735 = vmatprep.subr.mxu0 0.0
        %2736 = vmatpush2.msra.mxu0 0.0
        %2737 = vmatprep.subr.mxu0 0.0
        %2738 = vmatpush2.msra.mxu0 0.0
        %2739 = vmatprep.subr.mxu0 0.0
        %2740 = vmatpush2.msra.mxu0 0.0
        %2741 = vmatprep.subr.mxu0 0.0
        %2742 = vmatpush2.msra.mxu0 0.0
        %2743 = vmatprep.subr.mxu0 0.0
        %2744 = vmatpush2.msra.mxu0 0.0
        %2745 = vmatprep.subr.mxu0 0.0
        %2746 = vmatpush2.msra.mxu0 0.0
        %2747 = vmatprep.subr.mxu0 0.0
        %2748 = vmatpush2.msra.mxu0 0.0
        %2749 = vmatprep.mubr.f32.mxu0 0.0
        %2750 = vmatmul.mubr.f32.gmra.mxu0 %v2683
        %v2751 = vpop.f32.mrf.mxu0
        %v2752 = vadd.f32 0.0, %v2751
        %v2753 = vpop.f32.mrf.mxu0
        %2754 = vdwg.mxu0
        %v2755 = vadd.f32 %v2582, %v2752
        %v2756 = vxor.u32 %v2755, 2147483648
        %v2757 = vmul.f32 %v2756, 1.442695
        %v2758 = vpow.pop %v2757
        %v2759 = vadd.f32 %v2758, 1.0
        %v2760 = vrcp.pop %v2759
        %v2761 = vmul.f32 1.0, %v2760
        %v2762 = vtanh.pop %v2755
        %v2763 = vmul.f32 %v2761, %v2673
        %2765 = vrot.lane.b32.xlu0 %v2762, 64
        %v2766 = vpop.permute.xlu0 %2765
        %v2768 = vmul.f32 %v2761, %v2766
        %2770 = vrot.lane.b32.xlu0 %v2768, 32
        %v2771 = vpop.permute.xlu0 %2770
        %v2773 = vadd.f32 %v2763, %v2771
        %v2774 = vtanh.pop %v2773
        %2776 = vrot.lane.b32.xlu0 %v2774, 64
        %v2777 = vpop.permute.xlu0 %2776
        %v2779 = vmul.f32 %v2761, %v2777
        %2781 = vrot.lane.b32.xlu0 %v2779, 32
        %v2782 = vpop.permute.xlu0 %2781
        %v2783 = vsel %vm716, %v2782, 0
        %2785 = vmatprep.subr.mxu0 0.0
        %2786 = vmatpush1.msra.mxu0 0.0
        %2787 = vmatprep.subr.mxu0 0.0
        %2788 = vmatpush1.msra.mxu0 0.0
        %2789 = vmatprep.subr.mxu0 0.0
        %2790 = vmatpush1.msra.mxu0 0.0
        %2791 = vmatprep.subr.mxu0 0.0
        %2792 = vmatpush1.msra.mxu0 0.0
        %2793 = vmatprep.subr.mxu0 0.0
        %2794 = vmatpush1.msra.mxu0 0.0
        %2795 = vmatprep.subr.mxu0 0.0
        %2796 = vmatpush1.msra.mxu0 0.0
        %2797 = vmatprep.subr.mxu0 0.0
        %2798 = vmatpush1.msra.mxu0 0.0
        %2799 = vmatprep.subr.mxu0 0.0
        %2800 = vmatpush1.msra.mxu0 0.0
        %2801 = vmatprep.subr.mxu0 0.0
        %2802 = vmatpush1.msra.mxu0 0.0
        %2803 = vmatprep.subr.mxu0 0.0
        %2804 = vmatpush1.msra.mxu0 0.0
        %2805 = vmatprep.subr.mxu0 0.0
        %2806 = vmatpush1.msra.mxu0 0.0
        %2807 = vmatprep.subr.mxu0 0.0
        %2808 = vmatpush1.msra.mxu0 0.0
        %2809 = vmatprep.subr.mxu0 0.0
        %2810 = vmatpush1.msra.mxu0 %v620
        %2811 = vmatprep.subr.mxu0 0.0
        %2812 = vmatpush1.msra.mxu0 %v619
        %2813 = vmatprep.subr.mxu0 0.0
        %2814 = vmatpush1.msra.mxu0 %v618
        %2815 = vmatprep.subr.mxu0 0.0
        %2816 = vmatpush1.msra.mxu0 %v617
        %2817 = vmatprep.subr.mxu0 0.0
        %2818 = vmatpush2.msra.mxu0 0.0
        %2819 = vmatprep.subr.mxu0 0.0
        %2820 = vmatpush2.msra.mxu0 0.0
        %2821 = vmatprep.subr.mxu0 0.0
        %2822 = vmatpush2.msra.mxu0 0.0
        %2823 = vmatprep.subr.mxu0 0.0
        %2824 = vmatpush2.msra.mxu0 0.0
        %2825 = vmatprep.subr.mxu0 0.0
        %2826 = vmatpush2.msra.mxu0 0.0
        %2827 = vmatprep.subr.mxu0 0.0
        %2828 = vmatpush2.msra.mxu0 0.0
        %2829 = vmatprep.subr.mxu0 0.0
        %2830 = vmatpush2.msra.mxu0 0.0
        %2831 = vmatprep.subr.mxu0 0.0
        %2832 = vmatpush2.msra.mxu0 0.0
        %2833 = vmatprep.subr.mxu0 0.0
        %2834 = vmatpush2.msra.mxu0 0.0
        %2835 = vmatprep.subr.mxu0 0.0
        %2836 = vmatpush2.msra.mxu0 0.0
        %2837 = vmatprep.subr.mxu0 0.0
        %2838 = vmatpush2.msra.mxu0 0.0
        %2839 = vmatprep.subr.mxu0 0.0
        %2840 = vmatpush2.msra.mxu0 0.0
        %2841 = vmatprep.subr.mxu0 0.0
        %2842 = vmatpush2.msra.mxu0 0.0
        %2843 = vmatprep.subr.mxu0 0.0
        %2844 = vmatpush2.msra.mxu0 0.0
        %2845 = vmatprep.subr.mxu0 0.0
        %2846 = vmatpush2.msra.mxu0 0.0
        %2847 = vmatprep.subr.mxu0 0.0
        %2848 = vmatpush2.msra.mxu0 0.0
        %2849 = vmatprep.mubr.f32.mxu0 0.0
        %2850 = vmatmul.mubr.f32.gmra.mxu0 %v2783
        %v2851 = vpop.f32.mrf.mxu0
        %v2852 = vadd.f32 0.0, %v2851
        %v2853 = vpop.f32.mrf.mxu0
        %2854 = vdwg.mxu0
        %v2855 = vadd.f32 %v2582, %v2852
        %v2856 = vxor.u32 %v2855, 2147483648
        %v2857 = vmul.f32 %v2856, 1.442695
        %v2858 = vpow.pop %v2857
        %v2859 = vadd.f32 %v2858, 1.0
        %v2860 = vrcp.pop %v2859
        %v2861 = vmul.f32 1.0, %v2860
        %v2862 = vtanh.pop %v2855
        %v2863 = vmul.f32 %v2861, %v2773
        %2865 = vrot.lane.b32.xlu0 %v2862, 64
        %v2866 = vpop.permute.xlu0 %2865
        %v2868 = vmul.f32 %v2861, %v2866
        %2870 = vrot.lane.b32.xlu0 %v2868, 32
        %v2871 = vpop.permute.xlu0 %2870
        %v2873 = vadd.f32 %v2863, %v2871
        %v2874 = vtanh.pop %v2873
        %2876 = vrot.lane.b32.xlu0 %v2874, 64
        %v2877 = vpop.permute.xlu0 %2876
        %v2879 = vmul.f32 %v2861, %v2877
        %2881 = vrot.lane.b32.xlu0 %v2879, 32
        %v2882 = vpop.permute.xlu0 %2881
        %v2883 = vsel %vm716, %v2882, 0
        %2885 = vmatprep.subr.mxu0 0.0
        %2886 = vmatpush1.msra.mxu0 0.0
        %2887 = vmatprep.subr.mxu0 0.0
        %2888 = vmatpush1.msra.mxu0 0.0
        %2889 = vmatprep.subr.mxu0 0.0
        %2890 = vmatpush1.msra.mxu0 0.0
        %2891 = vmatprep.subr.mxu0 0.0
        %2892 = vmatpush1.msra.mxu0 0.0
        %2893 = vmatprep.subr.mxu0 0.0
        %2894 = vmatpush1.msra.mxu0 0.0
        %2895 = vmatprep.subr.mxu0 0.0
        %2896 = vmatpush1.msra.mxu0 0.0
        %2897 = vmatprep.subr.mxu0 0.0
        %2898 = vmatpush1.msra.mxu0 0.0
        %2899 = vmatprep.subr.mxu0 0.0
        %2900 = vmatpush1.msra.mxu0 0.0
        %2901 = vmatprep.subr.mxu0 0.0
        %2902 = vmatpush1.msra.mxu0 0.0
        %2903 = vmatprep.subr.mxu0 0.0
        %2904 = vmatpush1.msra.mxu0 0.0
        %2905 = vmatprep.subr.mxu0 0.0
        %2906 = vmatpush1.msra.mxu0 0.0
        %2907 = vmatprep.subr.mxu0 0.0
        %2908 = vmatpush1.msra.mxu0 0.0
        %2909 = vmatprep.subr.mxu0 0.0
        %2910 = vmatpush1.msra.mxu0 %v620
        %2911 = vmatprep.subr.mxu0 0.0
        %2912 = vmatpush1.msra.mxu0 %v619
        %2913 = vmatprep.subr.mxu0 0.0
        %2914 = vmatpush1.msra.mxu0 %v618
        %2915 = vmatprep.subr.mxu0 0.0
        %2916 = vmatpush1.msra.mxu0 %v617
        %2917 = vmatprep.subr.mxu0 0.0
        %2918 = vmatpush2.msra.mxu0 0.0
        %2919 = vmatprep.subr.mxu0 0.0
        %2920 = vmatpush2.msra.mxu0 0.0
        %2921 = vmatprep.subr.mxu0 0.0
        %2922 = vmatpush2.msra.mxu0 0.0
        %2923 = vmatprep.subr.mxu0 0.0
        %2924 = vmatpush2.msra.mxu0 0.0
        %2925 = vmatprep.subr.mxu0 0.0
        %2926 = vmatpush2.msra.mxu0 0.0
        %2927 = vmatprep.subr.mxu0 0.0
        %2928 = vmatpush2.msra.mxu0 0.0
        %2929 = vmatprep.subr.mxu0 0.0
        %2930 = vmatpush2.msra.mxu0 0.0
        %2931 = vmatprep.subr.mxu0 0.0
        %2932 = vmatpush2.msra.mxu0 0.0
        %2933 = vmatprep.subr.mxu0 0.0
        %2934 = vmatpush2.msra.mxu0 0.0
        %2935 = vmatprep.subr.mxu0 0.0
        %2936 = vmatpush2.msra.mxu0 0.0
        %2937 = vmatprep.subr.mxu0 0.0
        %2938 = vmatpush2.msra.mxu0 0.0
        %2939 = vmatprep.subr.mxu0 0.0
        %2940 = vmatpush2.msra.mxu0 0.0
        %2941 = vmatprep.subr.mxu0 0.0
        %2942 = vmatpush2.msra.mxu0 0.0
        %2943 = vmatprep.subr.mxu0 0.0
        %2944 = vmatpush2.msra.mxu0 0.0
        %2945 = vmatprep.subr.mxu0 0.0
        %2946 = vmatpush2.msra.mxu0 0.0
        %2947 = vmatprep.subr.mxu0 0.0
        %2948 = vmatpush2.msra.mxu0 0.0
        %2949 = vmatprep.mubr.f32.mxu0 0.0
        %2950 = vmatmul.mubr.f32.gmra.mxu0 %v2883
        %v2951 = vpop.f32.mrf.mxu0
        %v2952 = vadd.f32 0.0, %v2951
        %v2953 = vpop.f32.mrf.mxu0
        %2954 = vdwg.mxu0
        %v2955 = vadd.f32 %v2582, %v2952
        %v2956 = vxor.u32 %v2955, 2147483648
        %v2957 = vmul.f32 %v2956, 1.442695
        %v2958 = vpow.pop %v2957
        %v2959 = vadd.f32 %v2958, 1.0
        %v2960 = vrcp.pop %v2959
        %v2961 = vmul.f32 1.0, %v2960
        %v2962 = vtanh.pop %v2955
        %v2963 = vmul.f32 %v2961, %v2873
        %2965 = vrot.lane.b32.xlu0 %v2962, 64
        %v2966 = vpop.permute.xlu0 %2965
        %v2968 = vmul.f32 %v2961, %v2966
        %2970 = vrot.lane.b32.xlu0 %v2968, 32
        %v2971 = vpop.permute.xlu0 %2970
        %v2973 = vadd.f32 %v2963, %v2971
        %v2974 = vtanh.pop %v2973
        %2976 = vrot.lane.b32.xlu0 %v2974, 64
        %v2977 = vpop.permute.xlu0 %2976
        %v2979 = vmul.f32 %v2961, %v2977
        %2981 = vrot.lane.b32.xlu0 %v2979, 32
        %v2982 = vpop.permute.xlu0 %2981
        %v2983 = vsel %vm716, %v2982, 0
        %2985 = vmatprep.subr.mxu0 0.0
        %2986 = vmatpush1.msra.mxu0 0.0
        %2987 = vmatprep.subr.mxu0 0.0
        %2988 = vmatpush1.msra.mxu0 0.0
        %2989 = vmatprep.subr.mxu0 0.0
        %2990 = vmatpush1.msra.mxu0 0.0
        %2991 = vmatprep.subr.mxu0 0.0
        %2992 = vmatpush1.msra.mxu0 0.0
        %2993 = vmatprep.subr.mxu0 0.0
        %2994 = vmatpush1.msra.mxu0 0.0
        %2995 = vmatprep.subr.mxu0 0.0
        %2996 = vmatpush1.msra.mxu0 0.0
        %2997 = vmatprep.subr.mxu0 0.0
        %2998 = vmatpush1.msra.mxu0 0.0
        %2999 = vmatprep.subr.mxu0 0.0
        %3000 = vmatpush1.msra.mxu0 0.0
        %3001 = vmatprep.subr.mxu0 0.0
        %3002 = vmatpush1.msra.mxu0 0.0
        %3003 = vmatprep.subr.mxu0 0.0
        %3004 = vmatpush1.msra.mxu0 0.0
        %3005 = vmatprep.subr.mxu0 0.0
        %3006 = vmatpush1.msra.mxu0 0.0
        %3007 = vmatprep.subr.mxu0 0.0
        %3008 = vmatpush1.msra.mxu0 0.0
        %3009 = vmatprep.subr.mxu0 0.0
        %3010 = vmatpush1.msra.mxu0 %v620
        %3011 = vmatprep.subr.mxu0 0.0
        %3012 = vmatpush1.msra.mxu0 %v619
        %3013 = vmatprep.subr.mxu0 0.0
        %3014 = vmatpush1.msra.mxu0 %v618
        %3015 = vmatprep.subr.mxu0 0.0
        %3016 = vmatpush1.msra.mxu0 %v617
        %3017 = vmatprep.subr.mxu0 0.0
        %3018 = vmatpush2.msra.mxu0 0.0
        %3019 = vmatprep.subr.mxu0 0.0
        %3020 = vmatpush2.msra.mxu0 0.0
        %3021 = vmatprep.subr.mxu0 0.0
        %3022 = vmatpush2.msra.mxu0 0.0
        %3023 = vmatprep.subr.mxu0 0.0
        %3024 = vmatpush2.msra.mxu0 0.0
        %3025 = vmatprep.subr.mxu0 0.0
        %3026 = vmatpush2.msra.mxu0 0.0
        %3027 = vmatprep.subr.mxu0 0.0
        %3028 = vmatpush2.msra.mxu0 0.0
        %3029 = vmatprep.subr.mxu0 0.0
        %3030 = vmatpush2.msra.mxu0 0.0
        %3031 = vmatprep.subr.mxu0 0.0
        %3032 = vmatpush2.msra.mxu0 0.0
        %3033 = vmatprep.subr.mxu0 0.0
        %3034 = vmatpush2.msra.mxu0 0.0
        %3035 = vmatprep.subr.mxu0 0.0
        %3036 = vmatpush2.msra.mxu0 0.0
        %3037 = vmatprep.subr.mxu0 0.0
        %3038 = vmatpush2.msra.mxu0 0.0
        %3039 = vmatprep.subr.mxu0 0.0
        %3040 = vmatpush2.msra.mxu0 0.0
        %3041 = vmatprep.subr.mxu0 0.0
        %3042 = vmatpush2.msra.mxu0 0.0
        %3043 = vmatprep.subr.mxu0 0.0
        %3044 = vmatpush2.msra.mxu0 0.0
        %3045 = vmatprep.subr.mxu0 0.0
        %3046 = vmatpush2.msra.mxu0 0.0
        %3047 = vmatprep.subr.mxu0 0.0
        %3048 = vmatpush2.msra.mxu0 0.0
        %3049 = vmatprep.mubr.f32.mxu0 0.0
        %3050 = vmatmul.mubr.f32.gmra.mxu0 %v2983
        %v3051 = vpop.f32.mrf.mxu0
        %v3052 = vadd.f32 0.0, %v3051
        %v3053 = vpop.f32.mrf.mxu0
        %3054 = vdwg.mxu0
        %v3055 = vadd.f32 %v2582, %v3052
        %v3056 = vxor.u32 %v3055, 2147483648
        %v3057 = vmul.f32 %v3056, 1.442695
        %v3058 = vpow.pop %v3057
        %v3059 = vadd.f32 %v3058, 1.0
        %v3060 = vrcp.pop %v3059
        %v3061 = vmul.f32 1.0, %v3060
        %v3062 = vtanh.pop %v3055
        %v3063 = vmul.f32 %v3061, %v2973
        %3065 = vrot.lane.b32.xlu0 %v3062, 64
        %v3066 = vpop.permute.xlu0 %3065
        %v3068 = vmul.f32 %v3061, %v3066
        %3070 = vrot.lane.b32.xlu0 %v3068, 32
        %v3071 = vpop.permute.xlu0 %3070
        %v3073 = vadd.f32 %v3063, %v3071
        %v3074 = vtanh.pop %v3073
        %3076 = vrot.lane.b32.xlu0 %v3074, 64
        %v3077 = vpop.permute.xlu0 %3076
        %v3079 = vmul.f32 %v3061, %v3077
        %3081 = vrot.lane.b32.xlu0 %v3079, 32
        %v3082 = vpop.permute.xlu0 %3081
        %v3083 = vsel %vm716, %v3082, 0
        %3085 = vmatprep.subr.mxu0 0.0
        %3086 = vmatpush1.msra.mxu0 0.0
        %3087 = vmatprep.subr.mxu0 0.0
        %3088 = vmatpush1.msra.mxu0 0.0
        %3089 = vmatprep.subr.mxu0 0.0
        %3090 = vmatpush1.msra.mxu0 0.0
        %3091 = vmatprep.subr.mxu0 0.0
        %3092 = vmatpush1.msra.mxu0 0.0
        %3093 = vmatprep.subr.mxu0 0.0
        %3094 = vmatpush1.msra.mxu0 0.0
        %3095 = vmatprep.subr.mxu0 0.0
        %3096 = vmatpush1.msra.mxu0 0.0
        %3097 = vmatprep.subr.mxu0 0.0
        %3098 = vmatpush1.msra.mxu0 0.0
        %3099 = vmatprep.subr.mxu0 0.0
        %3100 = vmatpush1.msra.mxu0 0.0
        %3101 = vmatprep.subr.mxu0 0.0
        %3102 = vmatpush1.msra.mxu0 0.0
        %3103 = vmatprep.subr.mxu0 0.0
        %3104 = vmatpush1.msra.mxu0 0.0
        %3105 = vmatprep.subr.mxu0 0.0
        %3106 = vmatpush1.msra.mxu0 0.0
        %3107 = vmatprep.subr.mxu0 0.0
        %3108 = vmatpush1.msra.mxu0 0.0
        %3109 = vmatprep.subr.mxu0 0.0
        %3110 = vmatpush1.msra.mxu0 %v620
        %3111 = vmatprep.subr.mxu0 0.0
        %3112 = vmatpush1.msra.mxu0 %v619
        %3113 = vmatprep.subr.mxu0 0.0
        %3114 = vmatpush1.msra.mxu0 %v618
        %3115 = vmatprep.subr.mxu0 0.0
        %3116 = vmatpush1.msra.mxu0 %v617
        %3117 = vmatprep.subr.mxu0 0.0
        %3118 = vmatpush2.msra.mxu0 0.0
        %3119 = vmatprep.subr.mxu0 0.0
        %3120 = vmatpush2.msra.mxu0 0.0
        %3121 = vmatprep.subr.mxu0 0.0
        %3122 = vmatpush2.msra.mxu0 0.0
        %3123 = vmatprep.subr.mxu0 0.0
        %3124 = vmatpush2.msra.mxu0 0.0
        %3125 = vmatprep.subr.mxu0 0.0
        %3126 = vmatpush2.msra.mxu0 0.0
        %3127 = vmatprep.subr.mxu0 0.0
        %3128 = vmatpush2.msra.mxu0 0.0
        %3129 = vmatprep.subr.mxu0 0.0
        %3130 = vmatpush2.msra.mxu0 0.0
        %3131 = vmatprep.subr.mxu0 0.0
        %3132 = vmatpush2.msra.mxu0 0.0
        %3133 = vmatprep.subr.mxu0 0.0
        %3134 = vmatpush2.msra.mxu0 0.0
        %3135 = vmatprep.subr.mxu0 0.0
        %3136 = vmatpush2.msra.mxu0 0.0
        %3137 = vmatprep.subr.mxu0 0.0
        %3138 = vmatpush2.msra.mxu0 0.0
        %3139 = vmatprep.subr.mxu0 0.0
        %3140 = vmatpush2.msra.mxu0 0.0
        %3141 = vmatprep.subr.mxu0 0.0
        %3142 = vmatpush2.msra.mxu0 0.0
        %3143 = vmatprep.subr.mxu0 0.0
        %3144 = vmatpush2.msra.mxu0 0.0
        %3145 = vmatprep.subr.mxu0 0.0
        %3146 = vmatpush2.msra.mxu0 0.0
        %3147 = vmatprep.subr.mxu0 0.0
        %3148 = vmatpush2.msra.mxu0 0.0
        %3149 = vmatprep.mubr.f32.mxu0 0.0
        %3150 = vmatmul.mubr.f32.gmra.mxu0 %v3083
        %v3151 = vpop.f32.mrf.mxu0
        %v3152 = vadd.f32 0.0, %v3151
        %v3153 = vpop.f32.mrf.mxu0
        %3154 = vdwg.mxu0
        %v3155 = vadd.f32 %v2582, %v3152
        %v3156 = vxor.u32 %v3155, 2147483648
        %v3157 = vmul.f32 %v3156, 1.442695
        %v3158 = vpow.pop %v3157
        %v3159 = vadd.f32 %v3158, 1.0
        %v3160 = vrcp.pop %v3159
        %v3161 = vmul.f32 1.0, %v3160
        %v3162 = vtanh.pop %v3155
        %v3163 = vmul.f32 %v3161, %v3073
        %3165 = vrot.lane.b32.xlu0 %v3162, 64
        %v3166 = vpop.permute.xlu0 %3165
        %v3168 = vmul.f32 %v3161, %v3166
        %3170 = vrot.lane.b32.xlu0 %v3168, 32
        %v3171 = vpop.permute.xlu0 %3170
        %v3173 = vadd.f32 %v3163, %v3171
        %v3174 = vtanh.pop %v3173
        %3176 = vrot.lane.b32.xlu0 %v3174, 64
        %v3177 = vpop.permute.xlu0 %3176
        %v3179 = vmul.f32 %v3161, %v3177
        %3181 = vrot.lane.b32.xlu0 %v3179, 32
        %v3182 = vpop.permute.xlu0 %3181
        %v3183 = vsel %vm716, %v3182, 0
        %3185 = vmatprep.subr.mxu0 0.0
        %3186 = vmatpush1.msra.mxu0 0.0
        %3187 = vmatprep.subr.mxu0 0.0
        %3188 = vmatpush1.msra.mxu0 0.0
        %3189 = vmatprep.subr.mxu0 0.0
        %3190 = vmatpush1.msra.mxu0 0.0
        %3191 = vmatprep.subr.mxu0 0.0
        %3192 = vmatpush1.msra.mxu0 0.0
        %3193 = vmatprep.subr.mxu0 0.0
        %3194 = vmatpush1.msra.mxu0 0.0
        %3195 = vmatprep.subr.mxu0 0.0
        %3196 = vmatpush1.msra.mxu0 0.0
        %3197 = vmatprep.subr.mxu0 0.0
        %3198 = vmatpush1.msra.mxu0 0.0
        %3199 = vmatprep.subr.mxu0 0.0
        %3200 = vmatpush1.msra.mxu0 0.0
        %3201 = vmatprep.subr.mxu0 0.0
        %3202 = vmatpush1.msra.mxu0 0.0
        %3203 = vmatprep.subr.mxu0 0.0
        %3204 = vmatpush1.msra.mxu0 0.0
        %3205 = vmatprep.subr.mxu0 0.0
        %3206 = vmatpush1.msra.mxu0 0.0
        %3207 = vmatprep.subr.mxu0 0.0
        %3208 = vmatpush1.msra.mxu0 0.0
        %3209 = vmatprep.subr.mxu0 0.0
        %3210 = vmatpush1.msra.mxu0 %v620
        %3211 = vmatprep.subr.mxu0 0.0
        %3212 = vmatpush1.msra.mxu0 %v619
        %3213 = vmatprep.subr.mxu0 0.0
        %3214 = vmatpush1.msra.mxu0 %v618
        %3215 = vmatprep.subr.mxu0 0.0
        %3216 = vmatpush1.msra.mxu0 %v617
        %3217 = vmatprep.subr.mxu0 0.0
        %3218 = vmatpush2.msra.mxu0 0.0
        %3219 = vmatprep.subr.mxu0 0.0
        %3220 = vmatpush2.msra.mxu0 0.0
        %3221 = vmatprep.subr.mxu0 0.0
        %3222 = vmatpush2.msra.mxu0 0.0
        %3223 = vmatprep.subr.mxu0 0.0
        %3224 = vmatpush2.msra.mxu0 0.0
        %3225 = vmatprep.subr.mxu0 0.0
        %3226 = vmatpush2.msra.mxu0 0.0
        %3227 = vmatprep.subr.mxu0 0.0
        %3228 = vmatpush2.msra.mxu0 0.0
        %3229 = vmatprep.subr.mxu0 0.0
        %3230 = vmatpush2.msra.mxu0 0.0
        %3231 = vmatprep.subr.mxu0 0.0
        %3232 = vmatpush2.msra.mxu0 0.0
        %3233 = vmatprep.subr.mxu0 0.0
        %3234 = vmatpush2.msra.mxu0 0.0
        %3235 = vmatprep.subr.mxu0 0.0
        %3236 = vmatpush2.msra.mxu0 0.0
        %3237 = vmatprep.subr.mxu0 0.0
        %3238 = vmatpush2.msra.mxu0 0.0
        %3239 = vmatprep.subr.mxu0 0.0
        %3240 = vmatpush2.msra.mxu0 0.0
        %3241 = vmatprep.subr.mxu0 0.0
        %3242 = vmatpush2.msra.mxu0 0.0
        %3243 = vmatprep.subr.mxu0 0.0
        %3244 = vmatpush2.msra.mxu0 0.0
        %3245 = vmatprep.subr.mxu0 0.0
        %3246 = vmatpush2.msra.mxu0 0.0
        %3247 = vmatprep.subr.mxu0 0.0
        %3248 = vmatpush2.msra.mxu0 0.0
        %3249 = vmatprep.mubr.f32.mxu0 0.0
        %3250 = vmatmul.mubr.f32.gmra.mxu0 %v3183
        %v3251 = vpop.f32.mrf.mxu0
        %v3252 = vadd.f32 0.0, %v3251
        %v3253 = vpop.f32.mrf.mxu0
        %3254 = vdwg.mxu0
        %v3255 = vadd.f32 %v2582, %v3252
        %v3256 = vxor.u32 %v3255, 2147483648
        %v3257 = vmul.f32 %v3256, 1.442695
        %v3258 = vpow.pop %v3257
        %v3259 = vadd.f32 %v3258, 1.0
        %v3260 = vrcp.pop %v3259
        %v3261 = vmul.f32 1.0, %v3260
        %v3262 = vtanh.pop %v3255
        %v3263 = vmul.f32 %v3261, %v3173
        %3265 = vrot.lane.b32.xlu0 %v3262, 64
        %v3266 = vpop.permute.xlu0 %3265
        %v3268 = vmul.f32 %v3261, %v3266
        %3270 = vrot.lane.b32.xlu0 %v3268, 32
        %v3271 = vpop.permute.xlu0 %3270
        %v3273 = vadd.f32 %v3263, %v3271
        %v3274 = vtanh.pop %v3273
        %3276 = vrot.lane.b32.xlu0 %v3274, 64
        %v3277 = vpop.permute.xlu0 %3276
        %v3279 = vmul.f32 %v3261, %v3277
        %3281 = vrot.lane.b32.xlu0 %v3279, 32
        %v3282 = vpop.permute.xlu0 %3281
        %v3283 = vsel %vm716, %v3282, 0
        %3285 = vmatprep.subr.mxu0 0.0
        %3286 = vmatpush1.msra.mxu0 0.0
        %3287 = vmatprep.subr.mxu0 0.0
        %3288 = vmatpush1.msra.mxu0 0.0
        %3289 = vmatprep.subr.mxu0 0.0
        %3290 = vmatpush1.msra.mxu0 0.0
        %3291 = vmatprep.subr.mxu0 0.0
        %3292 = vmatpush1.msra.mxu0 0.0
        %3293 = vmatprep.subr.mxu0 0.0
        %3294 = vmatpush1.msra.mxu0 0.0
        %3295 = vmatprep.subr.mxu0 0.0
        %3296 = vmatpush1.msra.mxu0 0.0
        %3297 = vmatprep.subr.mxu0 0.0
        %3298 = vmatpush1.msra.mxu0 0.0
        %3299 = vmatprep.subr.mxu0 0.0
        %3300 = vmatpush1.msra.mxu0 0.0
        %3301 = vmatprep.subr.mxu0 0.0
        %3302 = vmatpush1.msra.mxu0 0.0
        %3303 = vmatprep.subr.mxu0 0.0
        %3304 = vmatpush1.msra.mxu0 0.0
        %3305 = vmatprep.subr.mxu0 0.0
        %3306 = vmatpush1.msra.mxu0 0.0
        %3307 = vmatprep.subr.mxu0 0.0
        %3308 = vmatpush1.msra.mxu0 0.0
        %3309 = vmatprep.subr.mxu0 0.0
        %3310 = vmatpush1.msra.mxu0 %v620
        %3311 = vmatprep.subr.mxu0 0.0
        %3312 = vmatpush1.msra.mxu0 %v619
        %3313 = vmatprep.subr.mxu0 0.0
        %3314 = vmatpush1.msra.mxu0 %v618
        %3315 = vmatprep.subr.mxu0 0.0
        %3316 = vmatpush1.msra.mxu0 %v617
        %3317 = vmatprep.subr.mxu0 0.0
        %3318 = vmatpush2.msra.mxu0 0.0
        %3319 = vmatprep.subr.mxu0 0.0
        %3320 = vmatpush2.msra.mxu0 0.0
        %3321 = vmatprep.subr.mxu0 0.0
        %3322 = vmatpush2.msra.mxu0 0.0
        %3323 = vmatprep.subr.mxu0 0.0
        %3324 = vmatpush2.msra.mxu0 0.0
        %3325 = vmatprep.subr.mxu0 0.0
        %3326 = vmatpush2.msra.mxu0 0.0
        %3327 = vmatprep.subr.mxu0 0.0
        %3328 = vmatpush2.msra.mxu0 0.0
        %3329 = vmatprep.subr.mxu0 0.0
        %3330 = vmatpush2.msra.mxu0 0.0
        %3331 = vmatprep.subr.mxu0 0.0
        %3332 = vmatpush2.msra.mxu0 0.0
        %3333 = vmatprep.subr.mxu0 0.0
        %3334 = vmatpush2.msra.mxu0 0.0
        %3335 = vmatprep.subr.mxu0 0.0
        %3336 = vmatpush2.msra.mxu0 0.0
        %3337 = vmatprep.subr.mxu0 0.0
        %3338 = vmatpush2.msra.mxu0 0.0
        %3339 = vmatprep.subr.mxu0 0.0
        %3340 = vmatpush2.msra.mxu0 0.0
        %3341 = vmatprep.subr.mxu0 0.0
        %3342 = vmatpush2.msra.mxu0 0.0
        %3343 = vmatprep.subr.mxu0 0.0
        %3344 = vmatpush2.msra.mxu0 0.0
        %3345 = vmatprep.subr.mxu0 0.0
        %3346 = vmatpush2.msra.mxu0 0.0
        %3347 = vmatprep.subr.mxu0 0.0
        %3348 = vmatpush2.msra.mxu0 0.0
        %3349 = vmatprep.mubr.f32.mxu0 0.0
        %3350 = vmatmul.mubr.f32.gmra.mxu0 %v3283
        %v3351 = vpop.f32.mrf.mxu0
        %v3352 = vadd.f32 0.0, %v3351
        %v3353 = vpop.f32.mrf.mxu0
        %3354 = vdwg.mxu0
        %v3355 = vadd.f32 %v2582, %v3352
        %v3356 = vxor.u32 %v3355, 2147483648
        %v3357 = vmul.f32 %v3356, 1.442695
        %v3358 = vpow.pop %v3357
        %v3359 = vadd.f32 %v3358, 1.0
        %v3360 = vrcp.pop %v3359
        %v3361 = vmul.f32 1.0, %v3360
        %v3362 = vtanh.pop %v3355
        %v3363 = vmul.f32 %v3361, %v3273
        %3365 = vrot.lane.b32.xlu0 %v3362, 64
        %v3366 = vpop.permute.xlu0 %3365
        %v3368 = vmul.f32 %v3361, %v3366
        %3370 = vrot.lane.b32.xlu0 %v3368, 32
        %v3371 = vpop.permute.xlu0 %3370
        %v3373 = vadd.f32 %v3363, %v3371
        %v3374 = vtanh.pop %v3373
        %3376 = vrot.lane.b32.xlu0 %v3374, 64
        %v3377 = vpop.permute.xlu0 %3376
        %v3379 = vmul.f32 %v3361, %v3377
        %v3381 = vlaneseq
        %v3382 = vshrl.u32 %v3381, 7
        %v3383 = vsub.s32 0, %v3382
        %v3384 = vrot.slane %v630, %v3383
        %v3387 = vrot.slane %v2779, 7
        %v3388 = vsel %vm1572, %v3387, %v2679
        %v3389 = vrot.slane %v2879, 6
        %v3390 = vsel %vm1575, %v3389, %v3388
        %v3391 = vrot.slane %v2979, 5
        %v3392 = vsel %vm1578, %v3391, %v3390
        %v3393 = vrot.slane %v3079, 4
        %v3394 = vsel %vm1581, %v3393, %v3392
        %v3395 = vrot.slane %v3179, 3
        %v3396 = vsel %vm1584, %v3395, %v3394
        %v3397 = vrot.slane %v3279, 2
        %v3398 = vsel %vm1587, %v3397, %v3396
        %v3399 = vrot.slane %v3379, 1
        %v3400 = vsel %vm1590, %v3399, %v3398
        %3401 = vrot.lane.b32.xlu0 %v3400, 32
        %v3402 = vpop.permute.xlu0 %3401
        %v3403 = vsel %vm716, %v3402, 0
        %3405 = vmatprep.subr.mxu0 0.0
        %3406 = vmatpush1.msra.mxu0 0.0
        %3407 = vmatprep.subr.mxu0 0.0
        %3408 = vmatpush1.msra.mxu0 0.0
        %3409 = vmatprep.subr.mxu0 0.0
        %3410 = vmatpush1.msra.mxu0 0.0
        %3411 = vmatprep.subr.mxu0 0.0
        %3412 = vmatpush1.msra.mxu0 0.0
        %3413 = vmatprep.subr.mxu0 0.0
        %3414 = vmatpush1.msra.mxu0 0.0
        %3415 = vmatprep.subr.mxu0 0.0
        %3416 = vmatpush1.msra.mxu0 0.0
        %3417 = vmatprep.subr.mxu0 0.0
        %3418 = vmatpush1.msra.mxu0 0.0
        %3419 = vmatprep.subr.mxu0 0.0
        %3420 = vmatpush1.msra.mxu0 0.0
        %3421 = vmatprep.subr.mxu0 0.0
        %3422 = vmatpush1.msra.mxu0 0.0
        %3423 = vmatprep.subr.mxu0 0.0
        %3424 = vmatpush1.msra.mxu0 0.0
        %3425 = vmatprep.subr.mxu0 0.0
        %3426 = vmatpush1.msra.mxu0 0.0
        %3427 = vmatprep.subr.mxu0 0.0
        %3428 = vmatpush1.msra.mxu0 0.0
        %3429 = vmatprep.subr.mxu0 0.0
        %3430 = vmatpush1.msra.mxu0 %v625
        %3431 = vmatprep.subr.mxu0 0.0
        %3432 = vmatpush1.msra.mxu0 %v624
        %3433 = vmatprep.subr.mxu0 0.0
        %3434 = vmatpush1.msra.mxu0 %v623
        %3435 = vmatprep.subr.mxu0 0.0
        %3436 = vmatpush1.msra.mxu0 %v622
        %3437 = vmatprep.subr.mxu0 0.0
        %3438 = vmatpush2.msra.mxu0 0.0
        %3439 = vmatprep.subr.mxu0 0.0
        %3440 = vmatpush2.msra.mxu0 0.0
        %3441 = vmatprep.subr.mxu0 0.0
        %3442 = vmatpush2.msra.mxu0 0.0
        %3443 = vmatprep.subr.mxu0 0.0
        %3444 = vmatpush2.msra.mxu0 0.0
        %3445 = vmatprep.subr.mxu0 0.0
        %3446 = vmatpush2.msra.mxu0 0.0
        %3447 = vmatprep.subr.mxu0 0.0
        %3448 = vmatpush2.msra.mxu0 0.0
        %3449 = vmatprep.subr.mxu0 0.0
        %3450 = vmatpush2.msra.mxu0 0.0
        %3451 = vmatprep.subr.mxu0 0.0
        %3452 = vmatpush2.msra.mxu0 0.0
        %3453 = vmatprep.subr.mxu0 0.0
        %3454 = vmatpush2.msra.mxu0 0.0
        %3455 = vmatprep.subr.mxu0 0.0
        %3456 = vmatpush2.msra.mxu0 0.0
        %3457 = vmatprep.subr.mxu0 0.0
        %3458 = vmatpush2.msra.mxu0 0.0
        %3459 = vmatprep.subr.mxu0 0.0
        %3460 = vmatpush2.msra.mxu0 0.0
        %3461 = vmatprep.subr.mxu0 0.0
        %3462 = vmatpush2.msra.mxu0 0.0
        %3463 = vmatprep.subr.mxu0 0.0
        %3464 = vmatpush2.msra.mxu0 0.0
        %3465 = vmatprep.subr.mxu0 0.0
        %3466 = vmatpush2.msra.mxu0 0.0
        %3467 = vmatprep.subr.mxu0 0.0
        %3468 = vmatpush2.msra.mxu0 0.0
        %3469 = vmatprep.mubr.f32.mxu0 0.0
        %3470 = vmatmul.mubr.f32.gmra.mxu0 %v3403
        %v3471 = vpop.f32.mrf.mxu0
        %v3472 = vadd.f32 %v3384, %v3471
        %v3473 = vpop.f32.mrf.mxu0
        %3474 = vdwg.mxu0
        %3475 = vmatprep.subr.mxu0 0.0
        %3476 = vmatpush1.msra.mxu0 0.0
        %3477 = vmatprep.subr.mxu0 0.0
        %3478 = vmatpush1.msra.mxu0 0.0
        %3479 = vmatprep.subr.mxu0 0.0
        %3480 = vmatpush1.msra.mxu0 0.0
        %3481 = vmatprep.subr.mxu0 0.0
        %3482 = vmatpush1.msra.mxu0 0.0
        %3483 = vmatprep.subr.mxu0 0.0
        %3484 = vmatpush1.msra.mxu0 0.0
        %3485 = vmatprep.subr.mxu0 0.0
        %3486 = vmatpush1.msra.mxu0 0.0
        %3487 = vmatprep.subr.mxu0 0.0
        %3488 = vmatpush1.msra.mxu0 0.0
        %3489 = vmatprep.subr.mxu0 0.0
        %3490 = vmatpush1.msra.mxu0 0.0
        %3491 = vmatprep.subr.mxu0 0.0
        %3492 = vmatpush1.msra.mxu0 0.0
        %3493 = vmatprep.subr.mxu0 0.0
        %3494 = vmatpush1.msra.mxu0 0.0
        %3495 = vmatprep.subr.mxu0 0.0
        %3496 = vmatpush1.msra.mxu0 0.0
        %3497 = vmatprep.subr.mxu0 0.0
        %3498 = vmatpush1.msra.mxu0 0.0
        %3499 = vmatprep.subr.mxu0 0.0
        %3500 = vmatpush1.msra.mxu0 %v629
        %3501 = vmatprep.subr.mxu0 0.0
        %3502 = vmatpush1.msra.mxu0 %v628
        %3503 = vmatprep.subr.mxu0 0.0
        %3504 = vmatpush1.msra.mxu0 %v627
        %3505 = vmatprep.subr.mxu0 0.0
        %3506 = vmatpush1.msra.mxu0 %v626
        %3507 = vmatprep.subr.mxu0 0.0
        %3508 = vmatpush2.msra.mxu0 0.0
        %3509 = vmatprep.subr.mxu0 0.0
        %3510 = vmatpush2.msra.mxu0 0.0
        %3511 = vmatprep.subr.mxu0 0.0
        %3512 = vmatpush2.msra.mxu0 0.0
        %3513 = vmatprep.subr.mxu0 0.0
        %3514 = vmatpush2.msra.mxu0 0.0
        %3515 = vmatprep.subr.mxu0 0.0
        %3516 = vmatpush2.msra.mxu0 0.0
        %3517 = vmatprep.subr.mxu0 0.0
        %3518 = vmatpush2.msra.mxu0 0.0
        %3519 = vmatprep.subr.mxu0 0.0
        %3520 = vmatpush2.msra.mxu0 0.0
        %3521 = vmatprep.subr.mxu0 0.0
        %3522 = vmatpush2.msra.mxu0 0.0
        %3523 = vmatprep.subr.mxu0 0.0
        %3524 = vmatpush2.msra.mxu0 0.0
        %3525 = vmatprep.subr.mxu0 0.0
        %3526 = vmatpush2.msra.mxu0 0.0
        %3527 = vmatprep.subr.mxu0 0.0
        %3528 = vmatpush2.msra.mxu0 0.0
        %3529 = vmatprep.subr.mxu0 0.0
        %3530 = vmatpush2.msra.mxu0 0.0
        %3531 = vmatprep.subr.mxu0 0.0
        %3532 = vmatpush2.msra.mxu0 0.0
        %3533 = vmatprep.subr.mxu0 0.0
        %3534 = vmatpush2.msra.mxu0 0.0
        %3535 = vmatprep.subr.mxu0 0.0
        %3536 = vmatpush2.msra.mxu0 0.0
        %3537 = vmatprep.subr.mxu0 0.0
        %3538 = vmatpush2.msra.mxu0 0.0
        %3539 = vmatprep.mubr.f32.mxu0 0.0
        %3540 = vmatmul.mubr.f32.gmra.mxu0 %v718
        %v3541 = vpop.f32.mrf.mxu0
        %v3542 = vadd.f32 0.0, %v3541
        %v3543 = vpop.f32.mrf.mxu0
        %3544 = vdwg.mxu0
        %v3545 = vadd.f32 %v3472, %v3542
        %v3546 = vxor.u32 %v3545, 2147483648
        %v3547 = vmul.f32 %v3546, 1.442695
        %v3548 = vpow.pop %v3547
        %v3549 = vadd.f32 %v3548, 1.0
        %v3550 = vrcp.pop %v3549
        %v3551 = vmul.f32 1.0, %v3550
        %v3552 = vtanh.pop %v3545
        %v3553 = vmul.f32 %v3551, 0.0
        %3555 = vrot.lane.b32.xlu0 %v3552, 64
        %v3556 = vpop.permute.xlu0 %3555
        %v3558 = vmul.f32 %v3551, %v3556
        %3560 = vrot.lane.b32.xlu0 %v3558, 32
        %v3561 = vpop.permute.xlu0 %3560
        %v3563 = vadd.f32 %v3553, %v3561
        %v3564 = vtanh.pop %v3563
        %3566 = vrot.lane.b32.xlu0 %v3564, 64
        %v3567 = vpop.permute.xlu0 %3566
        %v3569 = vmul.f32 %v3551, %v3567
        %3571 = vrot.lane.b32.xlu0 %v3569, 32
        %v3572 = vpop.permute.xlu0 %3571
        %v3573 = vsel %vm716, %v3572, 0
        %3575 = vmatprep.subr.mxu0 0.0
        %3576 = vmatpush1.msra.mxu0 0.0
        %3577 = vmatprep.subr.mxu0 0.0
        %3578 = vmatpush1.msra.mxu0 0.0
        %3579 = vmatprep.subr.mxu0 0.0
        %3580 = vmatpush1.msra.mxu0 0.0
        %3581 = vmatprep.subr.mxu0 0.0
        %3582 = vmatpush1.msra.mxu0 0.0
        %3583 = vmatprep.subr.mxu0 0.0
        %3584 = vmatpush1.msra.mxu0 0.0
        %3585 = vmatprep.subr.mxu0 0.0
        %3586 = vmatpush1.msra.mxu0 0.0
        %3587 = vmatprep.subr.mxu0 0.0
        %3588 = vmatpush1.msra.mxu0 0.0
        %3589 = vmatprep.subr.mxu0 0.0
        %3590 = vmatpush1.msra.mxu0 0.0
        %3591 = vmatprep.subr.mxu0 0.0
        %3592 = vmatpush1.msra.mxu0 0.0
        %3593 = vmatprep.subr.mxu0 0.0
        %3594 = vmatpush1.msra.mxu0 0.0
        %3595 = vmatprep.subr.mxu0 0.0
        %3596 = vmatpush1.msra.mxu0 0.0
        %3597 = vmatprep.subr.mxu0 0.0
        %3598 = vmatpush1.msra.mxu0 0.0
        %3599 = vmatprep.subr.mxu0 0.0
        %3600 = vmatpush1.msra.mxu0 %v629
        %3601 = vmatprep.subr.mxu0 0.0
        %3602 = vmatpush1.msra.mxu0 %v628
        %3603 = vmatprep.subr.mxu0 0.0
        %3604 = vmatpush1.msra.mxu0 %v627
        %3605 = vmatprep.subr.mxu0 0.0
        %3606 = vmatpush1.msra.mxu0 %v626
        %3607 = vmatprep.subr.mxu0 0.0
        %3608 = vmatpush2.msra.mxu0 0.0
        %3609 = vmatprep.subr.mxu0 0.0
        %3610 = vmatpush2.msra.mxu0 0.0
        %3611 = vmatprep.subr.mxu0 0.0
        %3612 = vmatpush2.msra.mxu0 0.0
        %3613 = vmatprep.subr.mxu0 0.0
        %3614 = vmatpush2.msra.mxu0 0.0
        %3615 = vmatprep.subr.mxu0 0.0
        %3616 = vmatpush2.msra.mxu0 0.0
        %3617 = vmatprep.subr.mxu0 0.0
        %3618 = vmatpush2.msra.mxu0 0.0
        %3619 = vmatprep.subr.mxu0 0.0
        %3620 = vmatpush2.msra.mxu0 0.0
        %3621 = vmatprep.subr.mxu0 0.0
        %3622 = vmatpush2.msra.mxu0 0.0
        %3623 = vmatprep.subr.mxu0 0.0
        %3624 = vmatpush2.msra.mxu0 0.0
        %3625 = vmatprep.subr.mxu0 0.0
        %3626 = vmatpush2.msra.mxu0 0.0
        %3627 = vmatprep.subr.mxu0 0.0
        %3628 = vmatpush2.msra.mxu0 0.0
        %3629 = vmatprep.subr.mxu0 0.0
        %3630 = vmatpush2.msra.mxu0 0.0
        %3631 = vmatprep.subr.mxu0 0.0
        %3632 = vmatpush2.msra.mxu0 0.0
        %3633 = vmatprep.subr.mxu0 0.0
        %3634 = vmatpush2.msra.mxu0 0.0
        %3635 = vmatprep.subr.mxu0 0.0
        %3636 = vmatpush2.msra.mxu0 0.0
        %3637 = vmatprep.subr.mxu0 0.0
        %3638 = vmatpush2.msra.mxu0 0.0
        %3639 = vmatprep.mubr.f32.mxu0 0.0
        %3640 = vmatmul.mubr.f32.gmra.mxu0 %v3573
        %v3641 = vpop.f32.mrf.mxu0
        %v3642 = vadd.f32 0.0, %v3641
        %v3643 = vpop.f32.mrf.mxu0
        %3644 = vdwg.mxu0
        %v3646 = vrot.slane %v3642, 7
        %v3648 = vadd.f32 %v3472, %v3646
        %v3649 = vxor.u32 %v3648, 2147483648
        %v3650 = vmul.f32 %v3649, 1.442695
        %v3651 = vpow.pop %v3650
        %v3652 = vadd.f32 %v3651, 1.0
        %v3653 = vrcp.pop %v3652
        %v3654 = vmul.f32 1.0, %v3653
        %v3655 = vtanh.pop %v3648
        %v3657 = vrot.slane %v3563, 7
        %v3659 = vmul.f32 %v3654, %v3657
        %3661 = vrot.lane.b32.xlu0 %v3655, 64
        %v3662 = vpop.permute.xlu0 %3661
        %v3664 = vmul.f32 %v3654, %v3662
        %3666 = vrot.lane.b32.xlu0 %v3664, 32
        %v3667 = vpop.permute.xlu0 %3666
        %v3669 = vadd.f32 %v3659, %v3667
        %v3670 = vtanh.pop %v3669
        %3672 = vrot.lane.b32.xlu0 %v3670, 64
        %v3673 = vpop.permute.xlu0 %3672
        %v3675 = vmul.f32 %v3654, %v3673
        %v3677 = vrot.slane %v3675, 1
        %3678 = vrot.lane.b32.xlu0 %v3677, 32
        %v3679 = vpop.permute.xlu0 %3678
        %v3680 = vsel %vm716, %v3679, 0
        %3682 = vmatprep.subr.mxu0 0.0
        %3683 = vmatpush1.msra.mxu0 0.0
        %3684 = vmatprep.subr.mxu0 0.0
        %3685 = vmatpush1.msra.mxu0 0.0
        %3686 = vmatprep.subr.mxu0 0.0
        %3687 = vmatpush1.msra.mxu0 0.0
        %3688 = vmatprep.subr.mxu0 0.0
        %3689 = vmatpush1.msra.mxu0 0.0
        %3690 = vmatprep.subr.mxu0 0.0
        %3691 = vmatpush1.msra.mxu0 0.0
        %3692 = vmatprep.subr.mxu0 0.0
        %3693 = vmatpush1.msra.mxu0 0.0
        %3694 = vmatprep.subr.mxu0 0.0
        %3695 = vmatpush1.msra.mxu0 0.0
        %3696 = vmatprep.subr.mxu0 0.0
        %3697 = vmatpush1.msra.mxu0 0.0
        %3698 = vmatprep.subr.mxu0 0.0
        %3699 = vmatpush1.msra.mxu0 0.0
        %3700 = vmatprep.subr.mxu0 0.0
        %3701 = vmatpush1.msra.mxu0 0.0
        %3702 = vmatprep.subr.mxu0 0.0
        %3703 = vmatpush1.msra.mxu0 0.0
        %3704 = vmatprep.subr.mxu0 0.0
        %3705 = vmatpush1.msra.mxu0 0.0
        %3706 = vmatprep.subr.mxu0 0.0
        %3707 = vmatpush1.msra.mxu0 %v629
        %3708 = vmatprep.subr.mxu0 0.0
        %3709 = vmatpush1.msra.mxu0 %v628
        %3710 = vmatprep.subr.mxu0 0.0
        %3711 = vmatpush1.msra.mxu0 %v627
        %3712 = vmatprep.subr.mxu0 0.0
        %3713 = vmatpush1.msra.mxu0 %v626
        %3714 = vmatprep.subr.mxu0 0.0
        %3715 = vmatpush2.msra.mxu0 0.0
        %3716 = vmatprep.subr.mxu0 0.0
        %3717 = vmatpush2.msra.mxu0 0.0
        %3718 = vmatprep.subr.mxu0 0.0
        %3719 = vmatpush2.msra.mxu0 0.0
        %3720 = vmatprep.subr.mxu0 0.0
        %3721 = vmatpush2.msra.mxu0 0.0
        %3722 = vmatprep.subr.mxu0 0.0
        %3723 = vmatpush2.msra.mxu0 0.0
        %3724 = vmatprep.subr.mxu0 0.0
        %3725 = vmatpush2.msra.mxu0 0.0
        %3726 = vmatprep.subr.mxu0 0.0
        %3727 = vmatpush2.msra.mxu0 0.0
        %3728 = vmatprep.subr.mxu0 0.0
        %3729 = vmatpush2.msra.mxu0 0.0
        %3730 = vmatprep.subr.mxu0 0.0
        %3731 = vmatpush2.msra.mxu0 0.0
        %3732 = vmatprep.subr.mxu0 0.0
        %3733 = vmatpush2.msra.mxu0 0.0
        %3734 = vmatprep.subr.mxu0 0.0
        %3735 = vmatpush2.msra.mxu0 0.0
        %3736 = vmatprep.subr.mxu0 0.0
        %3737 = vmatpush2.msra.mxu0 0.0
        %3738 = vmatprep.subr.mxu0 0.0
        %3739 = vmatpush2.msra.mxu0 0.0
        %3740 = vmatprep.subr.mxu0 0.0
        %3741 = vmatpush2.msra.mxu0 0.0
        %3742 = vmatprep.subr.mxu0 0.0
        %3743 = vmatpush2.msra.mxu0 0.0
        %3744 = vmatprep.subr.mxu0 0.0
        %3745 = vmatpush2.msra.mxu0 0.0
        %3746 = vmatprep.mubr.f32.mxu0 0.0
        %3747 = vmatmul.mubr.f32.gmra.mxu0 %v3680
        %v3748 = vpop.f32.mrf.mxu0
        %v3749 = vadd.f32 0.0, %v3748
        %v3750 = vpop.f32.mrf.mxu0
        %3751 = vdwg.mxu0
        %v3753 = vrot.slane %v3749, 6
        %v3755 = vadd.f32 %v3472, %v3753
        %v3756 = vxor.u32 %v3755, 2147483648
        %v3757 = vmul.f32 %v3756, 1.442695
        %v3758 = vpow.pop %v3757
        %v3759 = vadd.f32 %v3758, 1.0
        %v3760 = vrcp.pop %v3759
        %v3761 = vmul.f32 1.0, %v3760
        %v3762 = vtanh.pop %v3755
        %v3764 = vrot.slane %v3669, 7
        %v3766 = vmul.f32 %v3761, %v3764
        %3768 = vrot.lane.b32.xlu0 %v3762, 64
        %v3769 = vpop.permute.xlu0 %3768
        %v3771 = vmul.f32 %v3761, %v3769
        %3773 = vrot.lane.b32.xlu0 %v3771, 32
        %v3774 = vpop.permute.xlu0 %3773
        %v3776 = vadd.f32 %v3766, %v3774
        %v3777 = vtanh.pop %v3776
        %3779 = vrot.lane.b32.xlu0 %v3777, 64
        %v3780 = vpop.permute.xlu0 %3779
        %v3782 = vmul.f32 %v3761, %v3780
        %v3784 = vrot.slane %v3782, 2
        %3785 = vrot.lane.b32.xlu0 %v3784, 32
        %v3786 = vpop.permute.xlu0 %3785
        %v3787 = vsel %vm716, %v3786, 0
        %3789 = vmatprep.subr.mxu0 0.0
        %3790 = vmatpush1.msra.mxu0 0.0
        %3791 = vmatprep.subr.mxu0 0.0
        %3792 = vmatpush1.msra.mxu0 0.0
        %3793 = vmatprep.subr.mxu0 0.0
        %3794 = vmatpush1.msra.mxu0 0.0
        %3795 = vmatprep.subr.mxu0 0.0
        %3796 = vmatpush1.msra.mxu0 0.0
        %3797 = vmatprep.subr.mxu0 0.0
        %3798 = vmatpush1.msra.mxu0 0.0
        %3799 = vmatprep.subr.mxu0 0.0
        %3800 = vmatpush1.msra.mxu0 0.0
        %3801 = vmatprep.subr.mxu0 0.0
        %3802 = vmatpush1.msra.mxu0 0.0
        %3803 = vmatprep.subr.mxu0 0.0
        %3804 = vmatpush1.msra.mxu0 0.0
        %3805 = vmatprep.subr.mxu0 0.0
        %3806 = vmatpush1.msra.mxu0 0.0
        %3807 = vmatprep.subr.mxu0 0.0
        %3808 = vmatpush1.msra.mxu0 0.0
        %3809 = vmatprep.subr.mxu0 0.0
        %3810 = vmatpush1.msra.mxu0 0.0
        %3811 = vmatprep.subr.mxu0 0.0
        %3812 = vmatpush1.msra.mxu0 0.0
        %3813 = vmatprep.subr.mxu0 0.0
        %3814 = vmatpush1.msra.mxu0 %v629
        %3815 = vmatprep.subr.mxu0 0.0
        %3816 = vmatpush1.msra.mxu0 %v628
        %3817 = vmatprep.subr.mxu0 0.0
        %3818 = vmatpush1.msra.mxu0 %v627
        %3819 = vmatprep.subr.mxu0 0.0
        %3820 = vmatpush1.msra.mxu0 %v626
        %3821 = vmatprep.subr.mxu0 0.0
        %3822 = vmatpush2.msra.mxu0 0.0
        %3823 = vmatprep.subr.mxu0 0.0
        %3824 = vmatpush2.msra.mxu0 0.0
        %3825 = vmatprep.subr.mxu0 0.0
        %3826 = vmatpush2.msra.mxu0 0.0
        %3827 = vmatprep.subr.mxu0 0.0
        %3828 = vmatpush2.msra.mxu0 0.0
        %3829 = vmatprep.subr.mxu0 0.0
        %3830 = vmatpush2.msra.mxu0 0.0
        %3831 = vmatprep.subr.mxu0 0.0
        %3832 = vmatpush2.msra.mxu0 0.0
        %3833 = vmatprep.subr.mxu0 0.0
        %3834 = vmatpush2.msra.mxu0 0.0
        %3835 = vmatprep.subr.mxu0 0.0
        %3836 = vmatpush2.msra.mxu0 0.0
        %3837 = vmatprep.subr.mxu0 0.0
        %3838 = vmatpush2.msra.mxu0 0.0
        %3839 = vmatprep.subr.mxu0 0.0
        %3840 = vmatpush2.msra.mxu0 0.0
        %3841 = vmatprep.subr.mxu0 0.0
        %3842 = vmatpush2.msra.mxu0 0.0
        %3843 = vmatprep.subr.mxu0 0.0
        %3844 = vmatpush2.msra.mxu0 0.0
        %3845 = vmatprep.subr.mxu0 0.0
        %3846 = vmatpush2.msra.mxu0 0.0
        %3847 = vmatprep.subr.mxu0 0.0
        %3848 = vmatpush2.msra.mxu0 0.0
        %3849 = vmatprep.subr.mxu0 0.0
        %3850 = vmatpush2.msra.mxu0 0.0
        %3851 = vmatprep.subr.mxu0 0.0
        %3852 = vmatpush2.msra.mxu0 0.0
        %3853 = vmatprep.mubr.f32.mxu0 0.0
        %3854 = vmatmul.mubr.f32.gmra.mxu0 %v3787
        %v3855 = vpop.f32.mrf.mxu0
        %v3856 = vadd.f32 0.0, %v3855
        %v3857 = vpop.f32.mrf.mxu0
        %3858 = vdwg.mxu0
        %v3860 = vrot.slane %v3856, 5
        %v3862 = vadd.f32 %v3472, %v3860
        %v3863 = vxor.u32 %v3862, 2147483648
        %v3864 = vmul.f32 %v3863, 1.442695
        %v3865 = vpow.pop %v3864
        %v3866 = vadd.f32 %v3865, 1.0
        %v3867 = vrcp.pop %v3866
        %v3868 = vmul.f32 1.0, %v3867
        %v3869 = vtanh.pop %v3862
        %v3871 = vrot.slane %v3776, 7
        %v3873 = vmul.f32 %v3868, %v3871
        %3875 = vrot.lane.b32.xlu0 %v3869, 64
        %v3876 = vpop.permute.xlu0 %3875
        %v3878 = vmul.f32 %v3868, %v3876
        %3880 = vrot.lane.b32.xlu0 %v3878, 32
        %v3881 = vpop.permute.xlu0 %3880
        %v3883 = vadd.f32 %v3873, %v3881
        %v3884 = vtanh.pop %v3883
        %3886 = vrot.lane.b32.xlu0 %v3884, 64
        %v3887 = vpop.permute.xlu0 %3886
        %v3889 = vmul.f32 %v3868, %v3887
        %v3891 = vrot.slane %v3889, 3
        %3892 = vrot.lane.b32.xlu0 %v3891, 32
        %v3893 = vpop.permute.xlu0 %3892
        %v3894 = vsel %vm716, %v3893, 0
        %3896 = vmatprep.subr.mxu0 0.0
        %3897 = vmatpush1.msra.mxu0 0.0
        %3898 = vmatprep.subr.mxu0 0.0
        %3899 = vmatpush1.msra.mxu0 0.0
        %3900 = vmatprep.subr.mxu0 0.0
        %3901 = vmatpush1.msra.mxu0 0.0
        %3902 = vmatprep.subr.mxu0 0.0
        %3903 = vmatpush1.msra.mxu0 0.0
        %3904 = vmatprep.subr.mxu0 0.0
        %3905 = vmatpush1.msra.mxu0 0.0
        %3906 = vmatprep.subr.mxu0 0.0
        %3907 = vmatpush1.msra.mxu0 0.0
        %3908 = vmatprep.subr.mxu0 0.0
        %3909 = vmatpush1.msra.mxu0 0.0
        %3910 = vmatprep.subr.mxu0 0.0
        %3911 = vmatpush1.msra.mxu0 0.0
        %3912 = vmatprep.subr.mxu0 0.0
        %3913 = vmatpush1.msra.mxu0 0.0
        %3914 = vmatprep.subr.mxu0 0.0
        %3915 = vmatpush1.msra.mxu0 0.0
        %3916 = vmatprep.subr.mxu0 0.0
        %3917 = vmatpush1.msra.mxu0 0.0
        %3918 = vmatprep.subr.mxu0 0.0
        %3919 = vmatpush1.msra.mxu0 0.0
        %3920 = vmatprep.subr.mxu0 0.0
        %3921 = vmatpush1.msra.mxu0 %v629
        %3922 = vmatprep.subr.mxu0 0.0
        %3923 = vmatpush1.msra.mxu0 %v628
        %3924 = vmatprep.subr.mxu0 0.0
        %3925 = vmatpush1.msra.mxu0 %v627
        %3926 = vmatprep.subr.mxu0 0.0
        %3927 = vmatpush1.msra.mxu0 %v626
        %3928 = vmatprep.subr.mxu0 0.0
        %3929 = vmatpush2.msra.mxu0 0.0
        %3930 = vmatprep.subr.mxu0 0.0
        %3931 = vmatpush2.msra.mxu0 0.0
        %3932 = vmatprep.subr.mxu0 0.0
        %3933 = vmatpush2.msra.mxu0 0.0
        %3934 = vmatprep.subr.mxu0 0.0
        %3935 = vmatpush2.msra.mxu0 0.0
        %3936 = vmatprep.subr.mxu0 0.0
        %3937 = vmatpush2.msra.mxu0 0.0
        %3938 = vmatprep.subr.mxu0 0.0
        %3939 = vmatpush2.msra.mxu0 0.0
        %3940 = vmatprep.subr.mxu0 0.0
        %3941 = vmatpush2.msra.mxu0 0.0
        %3942 = vmatprep.subr.mxu0 0.0
        %3943 = vmatpush2.msra.mxu0 0.0
        %3944 = vmatprep.subr.mxu0 0.0
        %3945 = vmatpush2.msra.mxu0 0.0
        %3946 = vmatprep.subr.mxu0 0.0
        %3947 = vmatpush2.msra.mxu0 0.0
        %3948 = vmatprep.subr.mxu0 0.0
        %3949 = vmatpush2.msra.mxu0 0.0
        %3950 = vmatprep.subr.mxu0 0.0
        %3951 = vmatpush2.msra.mxu0 0.0
        %3952 = vmatprep.subr.mxu0 0.0
        %3953 = vmatpush2.msra.mxu0 0.0
        %3954 = vmatprep.subr.mxu0 0.0
        %3955 = vmatpush2.msra.mxu0 0.0
        %3956 = vmatprep.subr.mxu0 0.0
        %3957 = vmatpush2.msra.mxu0 0.0
        %3958 = vmatprep.subr.mxu0 0.0
        %3959 = vmatpush2.msra.mxu0 0.0
        %3960 = vmatprep.mubr.f32.mxu0 0.0
        %3961 = vmatmul.mubr.f32.gmra.mxu0 %v3894
        %v3962 = vpop.f32.mrf.mxu0
        %v3963 = vadd.f32 0.0, %v3962
        %v3964 = vpop.f32.mrf.mxu0
        %3965 = vdwg.mxu0
        %v3967 = vrot.slane %v3963, 4
        %v3969 = vadd.f32 %v3472, %v3967
        %v3970 = vxor.u32 %v3969, 2147483648
        %v3971 = vmul.f32 %v3970, 1.442695
        %v3972 = vpow.pop %v3971
        %v3973 = vadd.f32 %v3972, 1.0
        %v3974 = vrcp.pop %v3973
        %v3975 = vmul.f32 1.0, %v3974
        %v3976 = vtanh.pop %v3969
        %v3978 = vrot.slane %v3883, 7
        %v3980 = vmul.f32 %v3975, %v3978
        %3982 = vrot.lane.b32.xlu0 %v3976, 64
        %v3983 = vpop.permute.xlu0 %3982
        %v3985 = vmul.f32 %v3975, %v3983
        %3987 = vrot.lane.b32.xlu0 %v3985, 32
        %v3988 = vpop.permute.xlu0 %3987
        %v3990 = vadd.f32 %v3980, %v3988
        %v3991 = vtanh.pop %v3990
        %3993 = vrot.lane.b32.xlu0 %v3991, 64
        %v3994 = vpop.permute.xlu0 %3993
        %v3996 = vmul.f32 %v3975, %v3994
        %v3998 = vrot.slane %v3996, 4
        %3999 = vrot.lane.b32.xlu0 %v3998, 32
        %v4000 = vpop.permute.xlu0 %3999
        %v4001 = vsel %vm716, %v4000, 0
        %4003 = vmatprep.subr.mxu0 0.0
        %4004 = vmatpush1.msra.mxu0 0.0
        %4005 = vmatprep.subr.mxu0 0.0
        %4006 = vmatpush1.msra.mxu0 0.0
        %4007 = vmatprep.subr.mxu0 0.0
        %4008 = vmatpush1.msra.mxu0 0.0
        %4009 = vmatprep.subr.mxu0 0.0
        %4010 = vmatpush1.msra.mxu0 0.0
        %4011 = vmatprep.subr.mxu0 0.0
        %4012 = vmatpush1.msra.mxu0 0.0
        %4013 = vmatprep.subr.mxu0 0.0
        %4014 = vmatpush1.msra.mxu0 0.0
        %4015 = vmatprep.subr.mxu0 0.0
        %4016 = vmatpush1.msra.mxu0 0.0
        %4017 = vmatprep.subr.mxu0 0.0
        %4018 = vmatpush1.msra.mxu0 0.0
        %4019 = vmatprep.subr.mxu0 0.0
        %4020 = vmatpush1.msra.mxu0 0.0
        %4021 = vmatprep.subr.mxu0 0.0
        %4022 = vmatpush1.msra.mxu0 0.0
        %4023 = vmatprep.subr.mxu0 0.0
        %4024 = vmatpush1.msra.mxu0 0.0
        %4025 = vmatprep.subr.mxu0 0.0
        %4026 = vmatpush1.msra.mxu0 0.0
        %4027 = vmatprep.subr.mxu0 0.0
        %4028 = vmatpush1.msra.mxu0 %v629
        %4029 = vmatprep.subr.mxu0 0.0
        %4030 = vmatpush1.msra.mxu0 %v628
        %4031 = vmatprep.subr.mxu0 0.0
        %4032 = vmatpush1.msra.mxu0 %v627
        %4033 = vmatprep.subr.mxu0 0.0
        %4034 = vmatpush1.msra.mxu0 %v626
        %4035 = vmatprep.subr.mxu0 0.0
        %4036 = vmatpush2.msra.mxu0 0.0
        %4037 = vmatprep.subr.mxu0 0.0
        %4038 = vmatpush2.msra.mxu0 0.0
        %4039 = vmatprep.subr.mxu0 0.0
        %4040 = vmatpush2.msra.mxu0 0.0
        %4041 = vmatprep.subr.mxu0 0.0
        %4042 = vmatpush2.msra.mxu0 0.0
        %4043 = vmatprep.subr.mxu0 0.0
        %4044 = vmatpush2.msra.mxu0 0.0
        %4045 = vmatprep.subr.mxu0 0.0
        %4046 = vmatpush2.msra.mxu0 0.0
        %4047 = vmatprep.subr.mxu0 0.0
        %4048 = vmatpush2.msra.mxu0 0.0
        %4049 = vmatprep.subr.mxu0 0.0
        %4050 = vmatpush2.msra.mxu0 0.0
        %4051 = vmatprep.subr.mxu0 0.0
        %4052 = vmatpush2.msra.mxu0 0.0
        %4053 = vmatprep.subr.mxu0 0.0
        %4054 = vmatpush2.msra.mxu0 0.0
        %4055 = vmatprep.subr.mxu0 0.0
        %4056 = vmatpush2.msra.mxu0 0.0
        %4057 = vmatprep.subr.mxu0 0.0
        %4058 = vmatpush2.msra.mxu0 0.0
        %4059 = vmatprep.subr.mxu0 0.0
        %4060 = vmatpush2.msra.mxu0 0.0
        %4061 = vmatprep.subr.mxu0 0.0
        %4062 = vmatpush2.msra.mxu0 0.0
        %4063 = vmatprep.subr.mxu0 0.0
        %4064 = vmatpush2.msra.mxu0 0.0
        %4065 = vmatprep.subr.mxu0 0.0
        %4066 = vmatpush2.msra.mxu0 0.0
        %4067 = vmatprep.mubr.f32.mxu0 0.0
        %4068 = vmatmul.mubr.f32.gmra.mxu0 %v4001
        %v4069 = vpop.f32.mrf.mxu0
        %v4070 = vadd.f32 0.0, %v4069
        %v4071 = vpop.f32.mrf.mxu0
        %4072 = vdwg.mxu0
        %v4074 = vrot.slane %v4070, 3
        %v4076 = vadd.f32 %v3472, %v4074
        %v4077 = vxor.u32 %v4076, 2147483648
        %v4078 = vmul.f32 %v4077, 1.442695
        %v4079 = vpow.pop %v4078
        %v4080 = vadd.f32 %v4079, 1.0
        %v4081 = vrcp.pop %v4080
        %v4082 = vmul.f32 1.0, %v4081
        %v4083 = vtanh.pop %v4076
        %v4085 = vrot.slane %v3990, 7
        %v4087 = vmul.f32 %v4082, %v4085
        %4089 = vrot.lane.b32.xlu0 %v4083, 64
        %v4090 = vpop.permute.xlu0 %4089
        %v4092 = vmul.f32 %v4082, %v4090
        %4094 = vrot.lane.b32.xlu0 %v4092, 32
        %v4095 = vpop.permute.xlu0 %4094
        %v4097 = vadd.f32 %v4087, %v4095
        %v4098 = vtanh.pop %v4097
        %4100 = vrot.lane.b32.xlu0 %v4098, 64
        %v4101 = vpop.permute.xlu0 %4100
        %v4103 = vmul.f32 %v4082, %v4101
        %v4105 = vrot.slane %v4103, 5
        %4106 = vrot.lane.b32.xlu0 %v4105, 32
        %v4107 = vpop.permute.xlu0 %4106
        %v4108 = vsel %vm716, %v4107, 0
        %4110 = vmatprep.subr.mxu0 0.0
        %4111 = vmatpush1.msra.mxu0 0.0
        %4112 = vmatprep.subr.mxu0 0.0
        %4113 = vmatpush1.msra.mxu0 0.0
        %4114 = vmatprep.subr.mxu0 0.0
        %4115 = vmatpush1.msra.mxu0 0.0
        %4116 = vmatprep.subr.mxu0 0.0
        %4117 = vmatpush1.msra.mxu0 0.0
        %4118 = vmatprep.subr.mxu0 0.0
        %4119 = vmatpush1.msra.mxu0 0.0
        %4120 = vmatprep.subr.mxu0 0.0
        %4121 = vmatpush1.msra.mxu0 0.0
        %4122 = vmatprep.subr.mxu0 0.0
        %4123 = vmatpush1.msra.mxu0 0.0
        %4124 = vmatprep.subr.mxu0 0.0
        %4125 = vmatpush1.msra.mxu0 0.0
        %4126 = vmatprep.subr.mxu0 0.0
        %4127 = vmatpush1.msra.mxu0 0.0
        %4128 = vmatprep.subr.mxu0 0.0
        %4129 = vmatpush1.msra.mxu0 0.0
        %4130 = vmatprep.subr.mxu0 0.0
        %4131 = vmatpush1.msra.mxu0 0.0
        %4132 = vmatprep.subr.mxu0 0.0
        %4133 = vmatpush1.msra.mxu0 0.0
        %4134 = vmatprep.subr.mxu0 0.0
        %4135 = vmatpush1.msra.mxu0 %v629
        %4136 = vmatprep.subr.mxu0 0.0
        %4137 = vmatpush1.msra.mxu0 %v628
        %4138 = vmatprep.subr.mxu0 0.0
        %4139 = vmatpush1.msra.mxu0 %v627
        %4140 = vmatprep.subr.mxu0 0.0
        %4141 = vmatpush1.msra.mxu0 %v626
        %4142 = vmatprep.subr.mxu0 0.0
        %4143 = vmatpush2.msra.mxu0 0.0
        %4144 = vmatprep.subr.mxu0 0.0
        %4145 = vmatpush2.msra.mxu0 0.0
        %4146 = vmatprep.subr.mxu0 0.0
        %4147 = vmatpush2.msra.mxu0 0.0
        %4148 = vmatprep.subr.mxu0 0.0
        %4149 = vmatpush2.msra.mxu0 0.0
        %4150 = vmatprep.subr.mxu0 0.0
        %4151 = vmatpush2.msra.mxu0 0.0
        %4152 = vmatprep.subr.mxu0 0.0
        %4153 = vmatpush2.msra.mxu0 0.0
        %4154 = vmatprep.subr.mxu0 0.0
        %4155 = vmatpush2.msra.mxu0 0.0
        %4156 = vmatprep.subr.mxu0 0.0
        %4157 = vmatpush2.msra.mxu0 0.0
        %4158 = vmatprep.subr.mxu0 0.0
        %4159 = vmatpush2.msra.mxu0 0.0
        %4160 = vmatprep.subr.mxu0 0.0
        %4161 = vmatpush2.msra.mxu0 0.0
        %4162 = vmatprep.subr.mxu0 0.0
        %4163 = vmatpush2.msra.mxu0 0.0
        %4164 = vmatprep.subr.mxu0 0.0
        %4165 = vmatpush2.msra.mxu0 0.0
        %4166 = vmatprep.subr.mxu0 0.0
        %4167 = vmatpush2.msra.mxu0 0.0
        %4168 = vmatprep.subr.mxu0 0.0
        %4169 = vmatpush2.msra.mxu0 0.0
        %4170 = vmatprep.subr.mxu0 0.0
        %4171 = vmatpush2.msra.mxu0 0.0
        %4172 = vmatprep.subr.mxu0 0.0
        %4173 = vmatpush2.msra.mxu0 0.0
        %4174 = vmatprep.mubr.f32.mxu0 0.0
        %4175 = vmatmul.mubr.f32.gmra.mxu0 %v4108
        %v4176 = vpop.f32.mrf.mxu0
        %v4177 = vadd.f32 0.0, %v4176
        %v4178 = vpop.f32.mrf.mxu0
        %4179 = vdwg.mxu0
        %v4181 = vrot.slane %v4177, 2
        %v4183 = vadd.f32 %v3472, %v4181
        %v4184 = vxor.u32 %v4183, 2147483648
        %v4185 = vmul.f32 %v4184, 1.442695
        %v4186 = vpow.pop %v4185
        %v4187 = vadd.f32 %v4186, 1.0
        %v4188 = vrcp.pop %v4187
        %v4189 = vmul.f32 1.0, %v4188
        %v4190 = vtanh.pop %v4183
        %v4192 = vrot.slane %v4097, 7
        %v4194 = vmul.f32 %v4189, %v4192
        %4196 = vrot.lane.b32.xlu0 %v4190, 64
        %v4197 = vpop.permute.xlu0 %4196
        %v4199 = vmul.f32 %v4189, %v4197
        %4201 = vrot.lane.b32.xlu0 %v4199, 32
        %v4202 = vpop.permute.xlu0 %4201
        %v4204 = vadd.f32 %v4194, %v4202
        %v4205 = vtanh.pop %v4204
        %4207 = vrot.lane.b32.xlu0 %v4205, 64
        %v4208 = vpop.permute.xlu0 %4207
        %v4210 = vmul.f32 %v4189, %v4208
        %v4212 = vrot.slane %v4210, 6
        %4213 = vrot.lane.b32.xlu0 %v4212, 32
        %v4214 = vpop.permute.xlu0 %4213
        %v4215 = vsel %vm716, %v4214, 0
        %4217 = vmatprep.subr.mxu0 0.0
        %4218 = vmatpush1.msra.mxu0 0.0
        %4219 = vmatprep.subr.mxu0 0.0
        %4220 = vmatpush1.msra.mxu0 0.0
        %4221 = vmatprep.subr.mxu0 0.0
        %4222 = vmatpush1.msra.mxu0 0.0
        %4223 = vmatprep.subr.mxu0 0.0
        %4224 = vmatpush1.msra.mxu0 0.0
        %4225 = vmatprep.subr.mxu0 0.0
        %4226 = vmatpush1.msra.mxu0 0.0
        %4227 = vmatprep.subr.mxu0 0.0
        %4228 = vmatpush1.msra.mxu0 0.0
        %4229 = vmatprep.subr.mxu0 0.0
        %4230 = vmatpush1.msra.mxu0 0.0
        %4231 = vmatprep.subr.mxu0 0.0
        %4232 = vmatpush1.msra.mxu0 0.0
        %4233 = vmatprep.subr.mxu0 0.0
        %4234 = vmatpush1.msra.mxu0 0.0
        %4235 = vmatprep.subr.mxu0 0.0
        %4236 = vmatpush1.msra.mxu0 0.0
        %4237 = vmatprep.subr.mxu0 0.0
        %4238 = vmatpush1.msra.mxu0 0.0
        %4239 = vmatprep.subr.mxu0 0.0
        %4240 = vmatpush1.msra.mxu0 0.0
        %4241 = vmatprep.subr.mxu0 0.0
        %4242 = vmatpush1.msra.mxu0 %v629
        %4243 = vmatprep.subr.mxu0 0.0
        %4244 = vmatpush1.msra.mxu0 %v628
        %4245 = vmatprep.subr.mxu0 0.0
        %4246 = vmatpush1.msra.mxu0 %v627
        %4247 = vmatprep.subr.mxu0 0.0
        %4248 = vmatpush1.msra.mxu0 %v626
        %4249 = vmatprep.subr.mxu0 0.0
        %4250 = vmatpush2.msra.mxu0 0.0
        %4251 = vmatprep.subr.mxu0 0.0
        %4252 = vmatpush2.msra.mxu0 0.0
        %4253 = vmatprep.subr.mxu0 0.0
        %4254 = vmatpush2.msra.mxu0 0.0
        %4255 = vmatprep.subr.mxu0 0.0
        %4256 = vmatpush2.msra.mxu0 0.0
        %4257 = vmatprep.subr.mxu0 0.0
        %4258 = vmatpush2.msra.mxu0 0.0
        %4259 = vmatprep.subr.mxu0 0.0
        %4260 = vmatpush2.msra.mxu0 0.0
        %4261 = vmatprep.subr.mxu0 0.0
        %4262 = vmatpush2.msra.mxu0 0.0
        %4263 = vmatprep.subr.mxu0 0.0
        %4264 = vmatpush2.msra.mxu0 0.0
        %4265 = vmatprep.subr.mxu0 0.0
        %4266 = vmatpush2.msra.mxu0 0.0
        %4267 = vmatprep.subr.mxu0 0.0
        %4268 = vmatpush2.msra.mxu0 0.0
        %4269 = vmatprep.subr.mxu0 0.0
        %4270 = vmatpush2.msra.mxu0 0.0
        %4271 = vmatprep.subr.mxu0 0.0
        %4272 = vmatpush2.msra.mxu0 0.0
        %4273 = vmatprep.subr.mxu0 0.0
        %4274 = vmatpush2.msra.mxu0 0.0
        %4275 = vmatprep.subr.mxu0 0.0
        %4276 = vmatpush2.msra.mxu0 0.0
        %4277 = vmatprep.subr.mxu0 0.0
        %4278 = vmatpush2.msra.mxu0 0.0
        %4279 = vmatprep.subr.mxu0 0.0
        %4280 = vmatpush2.msra.mxu0 0.0
        %4281 = vmatprep.mubr.f32.mxu0 0.0
        %4282 = vmatmul.mubr.f32.gmra.mxu0 %v4215
        %v4283 = vpop.f32.mrf.mxu0
        %v4284 = vadd.f32 0.0, %v4283
        %v4285 = vpop.f32.mrf.mxu0
        %4286 = vdwg.mxu0
        %v4288 = vrot.slane %v4284, 1
        %v4290 = vadd.f32 %v3472, %v4288
        %v4291 = vxor.u32 %v4290, 2147483648
        %v4292 = vmul.f32 %v4291, 1.442695
        %v4293 = vpow.pop %v4292
        %v4294 = vadd.f32 %v4293, 1.0
        %v4295 = vrcp.pop %v4294
        %v4296 = vmul.f32 1.0, %v4295
        %v4297 = vtanh.pop %v4290
        %v4299 = vrot.slane %v4204, 7
        %v4301 = vmul.f32 %v4296, %v4299
        %4303 = vrot.lane.b32.xlu0 %v4297, 64
        %v4304 = vpop.permute.xlu0 %4303
        %v4306 = vmul.f32 %v4296, %v4304
        %4308 = vrot.lane.b32.xlu0 %v4306, 32
        %v4309 = vpop.permute.xlu0 %4308
        %v4311 = vadd.f32 %v4301, %v4309
        %v4312 = vtanh.pop %v4311
        %4314 = vrot.lane.b32.xlu0 %v4312, 64
        %v4315 = vpop.permute.xlu0 %4314
        %v4317 = vmul.f32 %v4296, %v4315
        %vm4318 = vcmask 1040384
        %v4319 = vsel %vm4318, %v3569, %v3675
        %vm4320 = vcmask 1041408
        %v4321 = vsel %vm4320, %v4319, %v3782
        %vm4322 = vcmask 1042432
        %v4323 = vsel %vm4322, %v4321, %v3889
        %vm4324 = vcmask 1043456
        %v4325 = vsel %vm4324, %v4323, %v3996
        %vm4326 = vcmask 1044480
        %v4327 = vsel %vm4326, %v4325, %v4103
        %vm4328 = vcmask 1045504
        %v4329 = vsel %vm4328, %v4327, %v4210
        %vm4330 = vcmask 1046528
        %v4331 = vsel %vm4330, %v4329, %v4317
        %v4333 = vlaneseq
        %v4334 = vshrl.u32 %v4333, 7
        %v4335 = vsub.s32 0, %v4334
        %v4336 = vrot.slane %v635, %v4335
        %4339 = vrot.lane.b32.xlu0 %v4331, 32
        %v4340 = vpop.permute.xlu0 %4339
        %v4341 = vsel %vm716, %v4340, 0
        %4343 = vmatprep.subr.mxu0 0.0
        %4344 = vmatpush1.msra.mxu0 0.0
        %4345 = vmatprep.subr.mxu0 0.0
        %4346 = vmatpush1.msra.mxu0 0.0
        %4347 = vmatprep.subr.mxu0 0.0
        %4348 = vmatpush1.msra.mxu0 0.0
        %4349 = vmatprep.subr.mxu0 0.0
        %4350 = vmatpush1.msra.mxu0 0.0
        %4351 = vmatprep.subr.mxu0 0.0
        %4352 = vmatpush1.msra.mxu0 0.0
        %4353 = vmatprep.subr.mxu0 0.0
        %4354 = vmatpush1.msra.mxu0 0.0
        %4355 = vmatprep.subr.mxu0 0.0
        %4356 = vmatpush1.msra.mxu0 0.0
        %4357 = vmatprep.subr.mxu0 0.0
        %4358 = vmatpush1.msra.mxu0 0.0
        %4359 = vmatprep.subr.mxu0 0.0
        %4360 = vmatpush1.msra.mxu0 0.0
        %4361 = vmatprep.subr.mxu0 0.0
        %4362 = vmatpush1.msra.mxu0 0.0
        %4363 = vmatprep.subr.mxu0 0.0
        %4364 = vmatpush1.msra.mxu0 0.0
        %4365 = vmatprep.subr.mxu0 0.0
        %4366 = vmatpush1.msra.mxu0 0.0
        %4367 = vmatprep.subr.mxu0 0.0
        %4368 = vmatpush1.msra.mxu0 %v634
        %4369 = vmatprep.subr.mxu0 0.0
        %4370 = vmatpush1.msra.mxu0 %v633
        %4371 = vmatprep.subr.mxu0 0.0
        %4372 = vmatpush1.msra.mxu0 %v632
        %4373 = vmatprep.subr.mxu0 0.0
        %4374 = vmatpush1.msra.mxu0 %v631
        %4375 = vmatprep.subr.mxu0 0.0
        %4376 = vmatpush2.msra.mxu0 0.0
        %4377 = vmatprep.subr.mxu0 0.0
        %4378 = vmatpush2.msra.mxu0 0.0
        %4379 = vmatprep.subr.mxu0 0.0
        %4380 = vmatpush2.msra.mxu0 0.0
        %4381 = vmatprep.subr.mxu0 0.0
        %4382 = vmatpush2.msra.mxu0 0.0
        %4383 = vmatprep.subr.mxu0 0.0
        %4384 = vmatpush2.msra.mxu0 0.0
        %4385 = vmatprep.subr.mxu0 0.0
        %4386 = vmatpush2.msra.mxu0 0.0
        %4387 = vmatprep.subr.mxu0 0.0
        %4388 = vmatpush2.msra.mxu0 0.0
        %4389 = vmatprep.subr.mxu0 0.0
        %4390 = vmatpush2.msra.mxu0 0.0
        %4391 = vmatprep.subr.mxu0 0.0
        %4392 = vmatpush2.msra.mxu0 0.0
        %4393 = vmatprep.subr.mxu0 0.0
        %4394 = vmatpush2.msra.mxu0 0.0
        %4395 = vmatprep.subr.mxu0 0.0
        %4396 = vmatpush2.msra.mxu0 0.0
        %4397 = vmatprep.subr.mxu0 0.0
        %4398 = vmatpush2.msra.mxu0 0.0
        %4399 = vmatprep.subr.mxu0 0.0
        %4400 = vmatpush2.msra.mxu0 0.0
        %4401 = vmatprep.subr.mxu0 0.0
        %4402 = vmatpush2.msra.mxu0 0.0
        %4403 = vmatprep.subr.mxu0 0.0
        %4404 = vmatpush2.msra.mxu0 0.0
        %4405 = vmatprep.subr.mxu0 0.0
        %4406 = vmatpush2.msra.mxu0 0.0
        %4407 = vmatprep.mubr.f32.mxu0 0.0
        %4408 = vmatmul.mubr.f32.gmra.mxu0 %v4341
        %v4409 = vpop.f32.mrf.mxu0
        %v4410 = vadd.f32 %v4336, %v4409
        %v4411 = vpop.f32.mrf.mxu0
        %4412 = vdwg.mxu0
        %4413 = vst.msk [vmem:[%s596] sm:$0xff] %vm642, %v4410
        %s4414 = sand.u32 %s363, 1
        %s4415 = scalar_lea.sflag [#allocation4], %s4414
        %s4416 = sand.u32 %s363, 1
        %s4417 = smul.addr %s4416, 8
        %s4418 = scalar_lea.vmem [#allocation14], %s4417
        // Predicated region
        $region109: #{tpu_custom_call.1} parent=79 // pred_check
          %p4419 = pneg %p373
        $region110: #{tpu_custom_call.1} parent=79 // pred_check_branch
          %4421 = sbr.rel (%p4419) target = $region112
        $region111: #{tpu_custom_call.1} parent=79 // pred_region
          %s4423 = ssub.s32 128, 128
          %4424 = vsyncadd %s4415, %s4423
          %s4425 = smul.addr %s35, 128
          %s4426 = scalar_lea.hbm %s15, %s4425
          %s4428 = sshll.u32 %s4418, 4
          %s4429 = int_to_ptr.vmem [resolvable:$true] %s4428
          %4431 = dma.vmem_to_hbm [thread:$0]  %s4429, 128, %s4426, %s4415
        $region112: #{tpu_custom_call.1} parent=79 // pred_fallthru
          _
      $region80: #{tpu_custom_call.1} parent=5 // pred_fallthru
        _
      %p4432 = scmp.le.s32.totalorder 2, %s30
      // Predicated region
      $region113: #{tpu_custom_call.1} parent=5 // pred_check
        %p4433 = pneg %p4432
      $region114: #{tpu_custom_call.1} parent=5 // pred_check_branch
        %4435 = sbr.rel (%p4433) target = $region116
      $region115: #{tpu_custom_call.1} parent=5 // pred_region
        %s4436 = ssub.s32 %s30, 2
        // Predicated region
        $region117: #{tpu_custom_call.1} parent=115 // pred_check
          %p4437 = pneg %p379
        $region118: #{tpu_custom_call.1} parent=115 // pred_check_branch
          %4439 = sbr.rel (%p4437) target = $region120
        $region119: #{tpu_custom_call.1} parent=115 // pred_region
          %s4440 = sand.u32 %s364, 1
          %s4441 = scalar_lea.sflag [#allocation4], %s4440
          %s4442 = sand.u32 %s364, 1
          %s4443 = smul.addr %s4442, 8
          %s4444 = scalar_lea.vmem [#allocation14], %s4443
          %4445 = dma.done %s4441, 128
        $region120: #{tpu_custom_call.1} parent=115 // pred_fallthru
          _
      $region116: #{tpu_custom_call.1} parent=5 // pred_fallthru
        _
    $region6: #{tpu_custom_call.1} parent=1 // loop_footer
      %s34 = sadd.s32 1, %s30
    $region7: #{tpu_custom_call.1} parent=1 // loop_footer_branch
      %29 = sbr.rel target = $region3
    $region8: #{tpu_custom_call.1} parent=1 // loop_exit
      _
    %4446 = vsyncpa [#allocation3], 1
    %s4447 = scalar_lea.sflag [#allocation3], 1
    %4448 = vsyncpa %s4447, 1
    %4449 = vsyncpa [#allocation6], 1
    %4450 = vsyncpa [#allocation9], 1
    %4451 = vsyncpa [#allocation12], 1
    %4452 = vsyncpa [#allocation4], 1
    %s4453 = scalar_lea.sflag [#allocation4], 1
    %4454 = vsyncpa %s4453, 1

</llo_original>
